<compile_context>
chip_gen: v6e
topology: v6e:2x2x1
jax: 0.10.0
libtpu: 0.0.40
codegen_flags: <defaults>
</compile_context>

<pallas_src>
import functools

import jax
import jax.numpy as jnp
from jax.experimental import pallas as pl
from jax.experimental.pallas import tpu as pltpu


def _round_up(v, m):
    return (v + m - 1) // m * m


# ----------------------------- Pallas kernel -------------------------------

def fused_cnn_kernel(lhs_ref, wk_ref, bc_ref, w1_ref, b1_ref, w2_ref, b2_ref,
                     o_ref):
    """conv(5x5,20) + relu + maxpool(2x2) + fc1 + relu + fc2 + log_softmax.

    lhs_ref: (tb*24, 140)    bf16  im2row slab, rows = y*tb + b, cols = dy*28+u
    wk_ref : (140, 512)      bf16  conv weights, lanes = parity*256 + w*20 + c
    bc_ref : (1, 512)        f32   conv bias tiled over (parity, w)
    w1_ref : (12, 256, 512)  bf16  fc1 weights, [h][w*20+c (pad 16), k (pad 12)]
    b1_ref : (1, 512)        f32   fc1 bias (pad lanes 0)
    w2_ref : (512, 128)      bf16  fc2 weights (K pad 12, N pad 118)
    b2_ref : (1, 128)        f32   fc2 bias, pad lanes = -1e30 (masks softmax)
    o_ref  : (tb, 128)       f32   log-probabilities (first 10 lanes valid)
    """
    tb = o_ref.shape[0]

    # conv1 as a single K=140 matmul (5 row taps fused along K).
    conv = jnp.dot(lhs_ref[...], wk_ref[...],
                   preferred_element_type=jnp.float32)      # (tb*24, 512)
    conv = jnp.maximum(conv + bc_ref[...], 0.0)              # bias + relu, f32

    # 2x2 width-pool: aligned 256-lane split -> pure full-vreg VPU max in f32.
    p = jnp.maximum(conv[:, :256], conv[:, 256:])            # (tb*24, 256)

    # 2x2 height-pool fused with fc1: 12 accumulated (tb,256)x(256,512) matmuls.
    # Row slabs are contiguous, sublane-aligned slices (rows are y-major).
    z = jnp.zeros((tb, 512), jnp.float32)
    for hp in range(12):                                     # static unroll
        r0 = p[(2 * hp) * tb:(2 * hp + 1) * tb, :]
        r1 = p[(2 * hp + 1) * tb:(2 * hp + 2) * tb, :]
        row = jnp.maximum(r0, r1)                            # f32 max
        z = z + jnp.dot(row.astype(jnp.bfloat16), w1_ref[hp],
                        preferred_element_type=jnp.float32)
    z = jnp.maximum(z + b1_ref[...], 0.0)                    # fc1 bias + relu

    # fc2 + log_softmax.  Padded class lanes carry bias -1e30 -> exp() == 0.
    logits = jnp.dot(z.astype(jnp.bfloat16), w2_ref[...],
                     preferred_element_type=jnp.float32) + b2_ref[...]
    m = jnp.max(logits, axis=-1, keepdims=True)
    lse = m + jnp.log(jnp.sum(jnp.exp(logits - m), axis=-1, keepdims=True))
    o_ref[...] = logits - lse


# ------------------------------ JAX wrapper ---------------------------------

def _prep_params(params):
    """Re-layout PyTorch-shaped parameters for the fused kernel (one-off, XLA)."""
    wc, bc, w1, b1, w2, b2 = params

    # Conv weights -> (140, 512):  wk[dy*28+u, parity*256 + w*20 + c]
    #   = wc[c, 0, dy, u - x] for x = 2*w + parity and 0 <= u - x < 5, else 0.
    w = wc.reshape(20, 5, 5)                                  # [c, dy, dx]
    u = jnp.arange(28)[:, None]
    xs = jnp.arange(24)[None, :]
    dxm = u - xs                                              # (28, 24)
    valid = (dxm >= 0) & (dxm < 5)
    wd = w[:, :, jnp.clip(dxm, 0, 4)]                         # [c, dy, u, x]
    wd = jnp.where(valid[None, None], wd, 0.0)
    wd = wd.transpose(1, 2, 3, 0)                             # [dy, u, x, c]
    wd = wd.reshape(5, 28, 12, 2, 20).transpose(0, 1, 3, 2, 4)   # [dy,u,par,w,c]
    wd = wd.reshape(5, 28, 2, 240)
    wd = jnp.pad(wd, ((0, 0), (0, 0), (0, 0), (0, 16)))       # pad 240 -> 256
    wk = wd.reshape(140, 512).astype(jnp.bfloat16)

    bq = jnp.tile(bc, 12)                                     # (240,)  [w*20+c]
    bh = jnp.pad(bq, (0, 16))                                 # (256,)
    bc512 = jnp.concatenate([bh, bh]).reshape(1, 512).astype(jnp.float32)

    # fc1 weights: PyTorch flatten order (c*144 + h*12 + w) -> [h][w*20+c, k],
    # K padded 240->256, N padded 500->512 (zeros).
    w1r = (w1.reshape(500, 20, 12, 12).transpose(2, 3, 1, 0)  # [h, w, c, k]
           .reshape(12, 240, 500))
    w1c = jnp.pad(w1r, ((0, 0), (0, 16), (0, 12))).astype(jnp.bfloat16)
    b1p = jnp.pad(b1, (0, 12)).reshape(1, 512).astype(jnp.float32)

    # fc2: K padded 500->512, N padded 10->128; pad biases -1e30 mask softmax.
    w2p = jnp.pad(w2.T, ((0, 12), (0, 118))).astype(jnp.bfloat16)   # (512, 128)
    b2p = jnp.concatenate(
        [b2.astype(jnp.float32),
         jnp.full((118,), -1e30, jnp.float32)]).reshape(1, 128)
    return wk, bc512, w1c, b1p, w2p, b2p


@functools.partial(jax.jit, static_argnames=("block_batch",))
def simple_cnn_forward(x, params, *, block_batch=256):
    """Forward pass matching SimpleCNNNet. x: (N, 1, 28, 28) float32."""
    wk, bc512, w1c, b1p, w2p, b2p = _prep_params(params)
    n = x.shape[0]

    # Batch tile: big (feeds the MXU on the fc half), multiple of 8 (sublane),
    # and small enough that the grid always has >= 2 steps (v7x megacore).
    tb = min(block_batch, max(8, _round_up((n + 1) // 2, 8)))
    n_pad = _round_up(n, tb)
    if n_pad // tb < 2:
        n_pad = 2 * tb

    imgs = x.reshape(n, 28, 28).astype(jnp.float32)
    if n_pad != n:
        imgs = jnp.pad(imgs, ((0, n_pad - n), (0, 0), (0, 0)))

    # im2row slab: slab[b, y, dy*28 + u] = img[b, y+dy, u]  (bf16, 6.7 KB/sample),
    # reordered per batch-tile to y-major rows (row = y*tb + b) so the in-kernel
    # height-pool slices are contiguous sublane blocks.
    slab = jnp.concatenate([imgs[:, dy:dy + 24, :] for dy in range(5)], axis=2)
    slab = (slab.reshape(n_pad // tb, tb, 24, 140)
                .transpose(0, 2, 1, 3)
                .reshape(n_pad * 24, 140)
                .astype(jnp.bfloat16))

    out = pl.pallas_call(
        fused_cnn_kernel,
        out_shape=jax.ShapeDtypeStruct((n_pad, 128), jnp.float32),
        grid=(n_pad // tb,),
        in_specs=[
            pl.BlockSpec((tb * 24, 140), lambda i: (i, 0)),          # image slab
            pl.BlockSpec((140, 512), lambda i: (0, 0),
                         pipeline_mode=pl.Buffered(1)),              # conv W
            pl.BlockSpec((1, 512), lambda i: (0, 0),
                         pipeline_mode=pl.Buffered(1)),              # conv b
            pl.BlockSpec((12, 256, 512), lambda i: (0, 0, 0),
                         pipeline_mode=pl.Buffered(1)),              # fc1 W
            pl.BlockSpec((1, 512), lambda i: (0, 0),
                         pipeline_mode=pl.Buffered(1)),              # fc1 b
            pl.BlockSpec((512, 128), lambda i: (0, 0),
                         pipeline_mode=pl.Buffered(1)),              # fc2 W
            pl.BlockSpec((1, 128), lambda i: (0, 0),
                         pipeline_mode=pl.Buffered(1)),              # fc2 b
        ],
        out_specs=pl.BlockSpec((tb, 128), lambda i: (i, 0)),
        compiler_params=pltpu.CompilerParams(
            dimension_semantics=("parallel",),   # shards grid over v7x's 2 TCs
            vmem_limit_bytes=48 << 20,           # < v7x's 64 MiB physical VMEM
        ),
    )(slab, wk, bc512, w1c, b1p, w2p, b2p)
    return out[:n, :10]


def reference_forward(x, params):
    """Pure-JAX f32 reference reproducing the PyTorch forward."""
    wc, bc, w1, b1, w2, b2 = params
    n = x.shape[0]
    conv = jax.lax.conv_general_dilated(
        x, wc, window_strides=(1, 1), padding="VALID",
        dimension_numbers=("NCHW", "OIHW", "NCHW")) + bc.reshape(1, 20, 1, 1)
    conv = jnp.maximum(conv, 0.0)                                     # (N,20,24,24)
    pooled = jnp.max(conv.reshape(n, 20, 12, 2, 12, 2), axis=(3, 5))  # (N,20,12,12)
    flat = pooled.reshape(n, 2880)
    h = jnp.maximum(flat @ w1.T + b1, 0.0)
    logits = h @ w2.T + b2
    return jax.nn.log_softmax(logits, axis=1)


def init_params(key):
    """Deterministic parameter init with PyTorch parameter shapes."""
    k = jax.random.split(key, 6)
    wc = jax.random.normal(k[0], (20, 1, 5, 5), jnp.float32) * 0.1   # conv1.weight
    bc = jax.random.normal(k[1], (20,), jnp.float32) * 0.1           # conv1.bias
    w1 = jax.random.normal(k[2], (500, 2880), jnp.float32) * 0.02    # fc1.weight
    b1 = jax.random.normal(k[3], (500,), jnp.float32) * 0.02         # fc1.bias
    w2 = jax.random.normal(k[4], (10, 500), jnp.float32) * 0.05      # fc2.weight
    b2 = jax.random.normal(k[5], (10,), jnp.float32) * 0.05          # fc2.bias
    return (wc, bc, w1, b1, w2, b2)


if __name__ == "__main__":
    key = jax.random.PRNGKey(0)
    kx, kp = jax.random.split(key)
    # forward() hard-codes 12*12*20, which implies 28x28 single-channel input.
    x = jax.random.normal(kx, (2, 1, 28, 28), jnp.float32)
    params = init_params(kp)

    out = jax.block_until_ready(simple_cnn_forward(x, params))
    ref = jax.block_until_ready(reference_forward(x, params))

    assert out.shape == (2, 10), out.shape
    # bf16 matmul operands (f32 accumulation) -> explicit bf16-level tolerance.
    assert jnp.allclose(out, ref, atol=3e-2, rtol=3e-2), (
        "mismatch vs reference: max abs err = %f"
        % float(jnp.max(jnp.abs(out - ref))))
    print("KERNEL_OK")
</pallas_src>

<mosaic_0001>
module attributes {stable_mosaic.version = 11 : i64} {
  func.func @fused_cnn_kernel(%arg0: i32, %arg1: memref<192x140xbf16, #tpu.memory_space<vmem>>, %arg2: memref<140x512xbf16, #tpu.memory_space<vmem>>, %arg3: memref<1x512xf32, #tpu.memory_space<vmem>>, %arg4: memref<12x256x512xbf16, #tpu.memory_space<vmem>>, %arg5: memref<1x512xf32, #tpu.memory_space<vmem>>, %arg6: memref<512x128xbf16, #tpu.memory_space<vmem>>, %arg7: memref<1x128xf32, #tpu.memory_space<vmem>>, %arg8: memref<8x128xf32, #tpu.memory_space<vmem>>) attributes {dimension_semantics = [#tpu.dimension_semantics<parallel>], iteration_bounds = array<i64: 2>, scalar_prefetch = 0 : i64, scratch_operands = 0 : i64, tpu.core_type = #tpu.core_type<tc>, window_params = [{transform_indices = @transform_0, window_bounds = array<i64: 192, 140>}, {pipeline_mode = #tpu.pipeline_mode<synchronous>, transform_indices = @transform_1, window_bounds = array<i64: 140, 512>}, {pipeline_mode = #tpu.pipeline_mode<synchronous>, transform_indices = @transform_2, window_bounds = array<i64: 1, 512>}, {pipeline_mode = #tpu.pipeline_mode<synchronous>, transform_indices = @transform_3, window_bounds = array<i64: 12, 256, 512>}, {pipeline_mode = #tpu.pipeline_mode<synchronous>, transform_indices = @transform_4, window_bounds = array<i64: 1, 512>}, {pipeline_mode = #tpu.pipeline_mode<synchronous>, transform_indices = @transform_5, window_bounds = array<i64: 512, 128>}, {pipeline_mode = #tpu.pipeline_mode<synchronous>, transform_indices = @transform_6, window_bounds = array<i64: 1, 128>}, {transform_indices = @transform_7, window_bounds = array<i64: 8, 128>}]} {
    %c0 = arith.constant 0 : index
    %c0_0 = arith.constant 0 : index
    %0 = vector.load %arg1[%c0, %c0_0] : memref<192x140xbf16, #tpu.memory_space<vmem>>, vector<192x140xbf16>
    %c0_1 = arith.constant 0 : index
    %c0_2 = arith.constant 0 : index
    %1 = vector.load %arg2[%c0_1, %c0_2] : memref<140x512xbf16, #tpu.memory_space<vmem>>, vector<140x512xbf16>
    %cst = arith.constant dense<0.000000e+00> : vector<192x512xf32>
    %2 = tpu.matmul %0, %1, %cst {dimension_numbers = #tpu.dot_dimension_numbers<[1], [0], [0], [1], [0, 0, 1, 1], [], []>} : vector<192x140xbf16>, vector<140x512xbf16>, vector<192x512xf32> -> vector<192x512xf32>
    %c0_3 = arith.constant 0 : index
    %c0_4 = arith.constant 0 : index
    %3 = vector.load %arg3[%c0_3, %c0_4] : memref<1x512xf32, #tpu.memory_space<vmem>>, vector<1x512xf32>
    %4 = vector.broadcast %3 : vector<1x512xf32> to vector<192x512xf32>
    %5 = arith.addf %2, %4 : vector<192x512xf32>
    %cst_5 = arith.constant 0.000000e+00 : f32
    %6 = vector.broadcast %cst_5 : f32 to vector<192x512xf32>
    %7 = arith.maximumf %5, %6 : vector<192x512xf32>
    %8 = vector.extract_strided_slice %7 {offsets = [0, 0], sizes = [192, 256], strides = [1, 1]} : vector<192x512xf32> to vector<192x256xf32>
    %9 = vector.extract_strided_slice %7 {offsets = [0, 256], sizes = [192, 256], strides = [1, 1]} : vector<192x512xf32> to vector<192x256xf32>
    %10 = arith.maximumf %8, %9 : vector<192x256xf32>
    %cst_6 = arith.constant 0.000000e+00 : f32
    %11 = vector.broadcast %cst_6 : f32 to vector<8x512xf32>
    %12 = vector.extract_strided_slice %10 {offsets = [0, 0], sizes = [8, 256], strides = [1, 1]} : vector<192x256xf32> to vector<8x256xf32>
    %13 = vector.extract_strided_slice %10 {offsets = [8, 0], sizes = [8, 256], strides = [1, 1]} : vector<192x256xf32> to vector<8x256xf32>
    %14 = arith.maximumf %12, %13 : vector<8x256xf32>
    %15 = arith.truncf %14 : vector<8x256xf32> to vector<8x256xbf16>
    %c0_7 = arith.constant 0 : index
    %c0_8 = arith.constant 0 : index
    %c0_9 = arith.constant 0 : index
    %16 = vector.load %arg4[%c0_7, %c0_8, %c0_9] : memref<12x256x512xbf16, #tpu.memory_space<vmem>>, vector<1x256x512xbf16>
    %17 = vector.shape_cast %16 : vector<1x256x512xbf16> to vector<256x512xbf16>
    %cst_10 = arith.constant dense<0.000000e+00> : vector<8x512xf32>
    %18 = tpu.matmul %15, %17, %cst_10 {dimension_numbers = #tpu.dot_dimension_numbers<[1], [0], [0], [1], [0, 0, 1, 1], [], []>} : vector<8x256xbf16>, vector<256x512xbf16>, vector<8x512xf32> -> vector<8x512xf32>
    %19 = arith.addf %11, %18 : vector<8x512xf32>
    %20 = vector.extract_strided_slice %10 {offsets = [16, 0], sizes = [8, 256], strides = [1, 1]} : vector<192x256xf32> to vector<8x256xf32>
    %21 = vector.extract_strided_slice %10 {offsets = [24, 0], sizes = [8, 256], strides = [1, 1]} : vector<192x256xf32> to vector<8x256xf32>
    %22 = arith.maximumf %20, %21 : vector<8x256xf32>
    %23 = arith.truncf %22 : vector<8x256xf32> to vector<8x256xbf16>
    %c1 = arith.constant 1 : index
    %c0_11 = arith.constant 0 : index
    %c0_12 = arith.constant 0 : index
    %24 = vector.load %arg4[%c1, %c0_11, %c0_12] : memref<12x256x512xbf16, #tpu.memory_space<vmem>>, vector<1x256x512xbf16>
    %25 = vector.shape_cast %24 : vector<1x256x512xbf16> to vector<256x512xbf16>
    %cst_13 = arith.constant dense<0.000000e+00> : vector<8x512xf32>
    %26 = tpu.matmul %23, %25, %cst_13 {dimension_numbers = #tpu.dot_dimension_numbers<[1], [0], [0], [1], [0, 0, 1, 1], [], []>} : vector<8x256xbf16>, vector<256x512xbf16>, vector<8x512xf32> -> vector<8x512xf32>
    %27 = arith.addf %19, %26 : vector<8x512xf32>
    %28 = vector.extract_strided_slice %10 {offsets = [32, 0], sizes = [8, 256], strides = [1, 1]} : vector<192x256xf32> to vector<8x256xf32>
    %29 = vector.extract_strided_slice %10 {offsets = [40, 0], sizes = [8, 256], strides = [1, 1]} : vector<192x256xf32> to vector<8x256xf32>
    %30 = arith.maximumf %28, %29 : vector<8x256xf32>
    %31 = arith.truncf %30 : vector<8x256xf32> to vector<8x256xbf16>
    %c2 = arith.constant 2 : index
    %c0_14 = arith.constant 0 : index
    %c0_15 = arith.constant 0 : index
    %32 = vector.load %arg4[%c2, %c0_14, %c0_15] : memref<12x256x512xbf16, #tpu.memory_space<vmem>>, vector<1x256x512xbf16>
    %33 = vector.shape_cast %32 : vector<1x256x512xbf16> to vector<256x512xbf16>
    %cst_16 = arith.constant dense<0.000000e+00> : vector<8x512xf32>
    %34 = tpu.matmul %31, %33, %cst_16 {dimension_numbers = #tpu.dot_dimension_numbers<[1], [0], [0], [1], [0, 0, 1, 1], [], []>} : vector<8x256xbf16>, vector<256x512xbf16>, vector<8x512xf32> -> vector<8x512xf32>
    %35 = arith.addf %27, %34 : vector<8x512xf32>
    %36 = vector.extract_strided_slice %10 {offsets = [48, 0], sizes = [8, 256], strides = [1, 1]} : vector<192x256xf32> to vector<8x256xf32>
    %37 = vector.extract_strided_slice %10 {offsets = [56, 0], sizes = [8, 256], strides = [1, 1]} : vector<192x256xf32> to vector<8x256xf32>
    %38 = arith.maximumf %36, %37 : vector<8x256xf32>
    %39 = arith.truncf %38 : vector<8x256xf32> to vector<8x256xbf16>
    %c3 = arith.constant 3 : index
    %c0_17 = arith.constant 0 : index
    %c0_18 = arith.constant 0 : index
    %40 = vector.load %arg4[%c3, %c0_17, %c0_18] : memref<12x256x512xbf16, #tpu.memory_space<vmem>>, vector<1x256x512xbf16>
    %41 = vector.shape_cast %40 : vector<1x256x512xbf16> to vector<256x512xbf16>
    %cst_19 = arith.constant dense<0.000000e+00> : vector<8x512xf32>
    %42 = tpu.matmul %39, %41, %cst_19 {dimension_numbers = #tpu.dot_dimension_numbers<[1], [0], [0], [1], [0, 0, 1, 1], [], []>} : vector<8x256xbf16>, vector<256x512xbf16>, vector<8x512xf32> -> vector<8x512xf32>
    %43 = arith.addf %35, %42 : vector<8x512xf32>
    %44 = vector.extract_strided_slice %10 {offsets = [64, 0], sizes = [8, 256], strides = [1, 1]} : vector<192x256xf32> to vector<8x256xf32>
    %45 = vector.extract_strided_slice %10 {offsets = [72, 0], sizes = [8, 256], strides = [1, 1]} : vector<192x256xf32> to vector<8x256xf32>
    %46 = arith.maximumf %44, %45 : vector<8x256xf32>
    %47 = arith.truncf %46 : vector<8x256xf32> to vector<8x256xbf16>
    %c4 = arith.constant 4 : index
    %c0_20 = arith.constant 0 : index
    %c0_21 = arith.constant 0 : index
    %48 = vector.load %arg4[%c4, %c0_20, %c0_21] : memref<12x256x512xbf16, #tpu.memory_space<vmem>>, vector<1x256x512xbf16>
    %49 = vector.shape_cast %48 : vector<1x256x512xbf16> to vector<256x512xbf16>
    %cst_22 = arith.constant dense<0.000000e+00> : vector<8x512xf32>
    %50 = tpu.matmul %47, %49, %cst_22 {dimension_numbers = #tpu.dot_dimension_numbers<[1], [0], [0], [1], [0, 0, 1, 1], [], []>} : vector<8x256xbf16>, vector<256x512xbf16>, vector<8x512xf32> -> vector<8x512xf32>
    %51 = arith.addf %43, %50 : vector<8x512xf32>
    %52 = vector.extract_strided_slice %10 {offsets = [80, 0], sizes = [8, 256], strides = [1, 1]} : vector<192x256xf32> to vector<8x256xf32>
    %53 = vector.extract_strided_slice %10 {offsets = [88, 0], sizes = [8, 256], strides = [1, 1]} : vector<192x256xf32> to vector<8x256xf32>
    %54 = arith.maximumf %52, %53 : vector<8x256xf32>
    %55 = arith.truncf %54 : vector<8x256xf32> to vector<8x256xbf16>
    %c5 = arith.constant 5 : index
    %c0_23 = arith.constant 0 : index
    %c0_24 = arith.constant 0 : index
    %56 = vector.load %arg4[%c5, %c0_23, %c0_24] : memref<12x256x512xbf16, #tpu.memory_space<vmem>>, vector<1x256x512xbf16>
    %57 = vector.shape_cast %56 : vector<1x256x512xbf16> to vector<256x512xbf16>
    %cst_25 = arith.constant dense<0.000000e+00> : vector<8x512xf32>
    %58 = tpu.matmul %55, %57, %cst_25 {dimension_numbers = #tpu.dot_dimension_numbers<[1], [0], [0], [1], [0, 0, 1, 1], [], []>} : vector<8x256xbf16>, vector<256x512xbf16>, vector<8x512xf32> -> vector<8x512xf32>
    %59 = arith.addf %51, %58 : vector<8x512xf32>
    %60 = vector.extract_strided_slice %10 {offsets = [96, 0], sizes = [8, 256], strides = [1, 1]} : vector<192x256xf32> to vector<8x256xf32>
    %61 = vector.extract_strided_slice %10 {offsets = [104, 0], sizes = [8, 256], strides = [1, 1]} : vector<192x256xf32> to vector<8x256xf32>
    %62 = arith.maximumf %60, %61 : vector<8x256xf32>
    %63 = arith.truncf %62 : vector<8x256xf32> to vector<8x256xbf16>
    %c6 = arith.constant 6 : index
    %c0_26 = arith.constant 0 : index
    %c0_27 = arith.constant 0 : index
    %64 = vector.load %arg4[%c6, %c0_26, %c0_27] : memref<12x256x512xbf16, #tpu.memory_space<vmem>>, vector<1x256x512xbf16>
    %65 = vector.shape_cast %64 : vector<1x256x512xbf16> to vector<256x512xbf16>
    %cst_28 = arith.constant dense<0.000000e+00> : vector<8x512xf32>
    %66 = tpu.matmul %63, %65, %cst_28 {dimension_numbers = #tpu.dot_dimension_numbers<[1], [0], [0], [1], [0, 0, 1, 1], [], []>} : vector<8x256xbf16>, vector<256x512xbf16>, vector<8x512xf32> -> vector<8x512xf32>
    %67 = arith.addf %59, %66 : vector<8x512xf32>
    %68 = vector.extract_strided_slice %10 {offsets = [112, 0], sizes = [8, 256], strides = [1, 1]} : vector<192x256xf32> to vector<8x256xf32>
    %69 = vector.extract_strided_slice %10 {offsets = [120, 0], sizes = [8, 256], strides = [1, 1]} : vector<192x256xf32> to vector<8x256xf32>
    %70 = arith.maximumf %68, %69 : vector<8x256xf32>
    %71 = arith.truncf %70 : vector<8x256xf32> to vector<8x256xbf16>
    %c7 = arith.constant 7 : index
    %c0_29 = arith.constant 0 : index
    %c0_30 = arith.constant 0 : index
    %72 = vector.load %arg4[%c7, %c0_29, %c0_30] : memref<12x256x512xbf16, #tpu.memory_space<vmem>>, vector<1x256x512xbf16>
    %73 = vector.shape_cast %72 : vector<1x256x512xbf16> to vector<256x512xbf16>
    %cst_31 = arith.constant dense<0.000000e+00> : vector<8x512xf32>
    %74 = tpu.matmul %71, %73, %cst_31 {dimension_numbers = #tpu.dot_dimension_numbers<[1], [0], [0], [1], [0, 0, 1, 1], [], []>} : vector<8x256xbf16>, vector<256x512xbf16>, vector<8x512xf32> -> vector<8x512xf32>
    %75 = arith.addf %67, %74 : vector<8x512xf32>
    %76 = vector.extract_strided_slice %10 {offsets = [128, 0], sizes = [8, 256], strides = [1, 1]} : vector<192x256xf32> to vector<8x256xf32>
    %77 = vector.extract_strided_slice %10 {offsets = [136, 0], sizes = [8, 256], strides = [1, 1]} : vector<192x256xf32> to vector<8x256xf32>
    %78 = arith.maximumf %76, %77 : vector<8x256xf32>
    %79 = arith.truncf %78 : vector<8x256xf32> to vector<8x256xbf16>
    %c8 = arith.constant 8 : index
    %c0_32 = arith.constant 0 : index
    %c0_33 = arith.constant 0 : index
    %80 = vector.load %arg4[%c8, %c0_32, %c0_33] : memref<12x256x512xbf16, #tpu.memory_space<vmem>>, vector<1x256x512xbf16>
    %81 = vector.shape_cast %80 : vector<1x256x512xbf16> to vector<256x512xbf16>
    %cst_34 = arith.constant dense<0.000000e+00> : vector<8x512xf32>
    %82 = tpu.matmul %79, %81, %cst_34 {dimension_numbers = #tpu.dot_dimension_numbers<[1], [0], [0], [1], [0, 0, 1, 1], [], []>} : vector<8x256xbf16>, vector<256x512xbf16>, vector<8x512xf32> -> vector<8x512xf32>
    %83 = arith.addf %75, %82 : vector<8x512xf32>
    %84 = vector.extract_strided_slice %10 {offsets = [144, 0], sizes = [8, 256], strides = [1, 1]} : vector<192x256xf32> to vector<8x256xf32>
    %85 = vector.extract_strided_slice %10 {offsets = [152, 0], sizes = [8, 256], strides = [1, 1]} : vector<192x256xf32> to vector<8x256xf32>
    %86 = arith.maximumf %84, %85 : vector<8x256xf32>
    %87 = arith.truncf %86 : vector<8x256xf32> to vector<8x256xbf16>
    %c9 = arith.constant 9 : index
    %c0_35 = arith.constant 0 : index
    %c0_36 = arith.constant 0 : index
    %88 = vector.load %arg4[%c9, %c0_35, %c0_36] : memref<12x256x512xbf16, #tpu.memory_space<vmem>>, vector<1x256x512xbf16>
    %89 = vector.shape_cast %88 : vector<1x256x512xbf16> to vector<256x512xbf16>
    %cst_37 = arith.constant dense<0.000000e+00> : vector<8x512xf32>
    %90 = tpu.matmul %87, %89, %cst_37 {dimension_numbers = #tpu.dot_dimension_numbers<[1], [0], [0], [1], [0, 0, 1, 1], [], []>} : vector<8x256xbf16>, vector<256x512xbf16>, vector<8x512xf32> -> vector<8x512xf32>
    %91 = arith.addf %83, %90 : vector<8x512xf32>
    %92 = vector.extract_strided_slice %10 {offsets = [160, 0], sizes = [8, 256], strides = [1, 1]} : vector<192x256xf32> to vector<8x256xf32>
    %93 = vector.extract_strided_slice %10 {offsets = [168, 0], sizes = [8, 256], strides = [1, 1]} : vector<192x256xf32> to vector<8x256xf32>
    %94 = arith.maximumf %92, %93 : vector<8x256xf32>
    %95 = arith.truncf %94 : vector<8x256xf32> to vector<8x256xbf16>
    %c10 = arith.constant 10 : index
    %c0_38 = arith.constant 0 : index
    %c0_39 = arith.constant 0 : index
    %96 = vector.load %arg4[%c10, %c0_38, %c0_39] : memref<12x256x512xbf16, #tpu.memory_space<vmem>>, vector<1x256x512xbf16>
    %97 = vector.shape_cast %96 : vector<1x256x512xbf16> to vector<256x512xbf16>
    %cst_40 = arith.constant dense<0.000000e+00> : vector<8x512xf32>
    %98 = tpu.matmul %95, %97, %cst_40 {dimension_numbers = #tpu.dot_dimension_numbers<[1], [0], [0], [1], [0, 0, 1, 1], [], []>} : vector<8x256xbf16>, vector<256x512xbf16>, vector<8x512xf32> -> vector<8x512xf32>
    %99 = arith.addf %91, %98 : vector<8x512xf32>
    %100 = vector.extract_strided_slice %10 {offsets = [176, 0], sizes = [8, 256], strides = [1, 1]} : vector<192x256xf32> to vector<8x256xf32>
    %101 = vector.extract_strided_slice %10 {offsets = [184, 0], sizes = [8, 256], strides = [1, 1]} : vector<192x256xf32> to vector<8x256xf32>
    %102 = arith.maximumf %100, %101 : vector<8x256xf32>
    %103 = arith.truncf %102 : vector<8x256xf32> to vector<8x256xbf16>
    %c11 = arith.constant 11 : index
    %c0_41 = arith.constant 0 : index
    %c0_42 = arith.constant 0 : index
    %104 = vector.load %arg4[%c11, %c0_41, %c0_42] : memref<12x256x512xbf16, #tpu.memory_space<vmem>>, vector<1x256x512xbf16>
    %105 = vector.shape_cast %104 : vector<1x256x512xbf16> to vector<256x512xbf16>
    %cst_43 = arith.constant dense<0.000000e+00> : vector<8x512xf32>
    %106 = tpu.matmul %103, %105, %cst_43 {dimension_numbers = #tpu.dot_dimension_numbers<[1], [0], [0], [1], [0, 0, 1, 1], [], []>} : vector<8x256xbf16>, vector<256x512xbf16>, vector<8x512xf32> -> vector<8x512xf32>
    %107 = arith.addf %99, %106 : vector<8x512xf32>
    %c0_44 = arith.constant 0 : index
    %c0_45 = arith.constant 0 : index
    %108 = vector.load %arg5[%c0_44, %c0_45] : memref<1x512xf32, #tpu.memory_space<vmem>>, vector<1x512xf32>
    %109 = vector.broadcast %108 : vector<1x512xf32> to vector<8x512xf32>
    %110 = arith.addf %107, %109 : vector<8x512xf32>
    %cst_46 = arith.constant 0.000000e+00 : f32
    %111 = vector.broadcast %cst_46 : f32 to vector<8x512xf32>
    %112 = arith.maximumf %110, %111 : vector<8x512xf32>
    %113 = arith.truncf %112 : vector<8x512xf32> to vector<8x512xbf16>
    %c0_47 = arith.constant 0 : index
    %c0_48 = arith.constant 0 : index
    %114 = vector.load %arg6[%c0_47, %c0_48] : memref<512x128xbf16, #tpu.memory_space<vmem>>, vector<512x128xbf16>
    %cst_49 = arith.constant dense<0.000000e+00> : vector<8x128xf32>
    %115 = tpu.matmul %113, %114, %cst_49 {dimension_numbers = #tpu.dot_dimension_numbers<[1], [0], [0], [1], [0, 0, 1, 1], [], []>} : vector<8x512xbf16>, vector<512x128xbf16>, vector<8x128xf32> -> vector<8x128xf32>
    %c0_50 = arith.constant 0 : index
    %c0_51 = arith.constant 0 : index
    %116 = vector.load %arg7[%c0_50, %c0_51] : memref<1x128xf32, #tpu.memory_space<vmem>>, vector<1x128xf32>
    %117 = vector.broadcast %116 : vector<1x128xf32> to vector<8x128xf32>
    %118 = arith.addf %115, %117 : vector<8x128xf32>
    %cst_52 = arith.constant dense<0xFF800000> : vector<8xf32>
    %119 = vector.multi_reduction <maximumf>, %118, %cst_52 [1] : vector<8x128xf32> to vector<8xf32>
    %120 = vector.shape_cast %119 : vector<8xf32> to vector<8x1xf32>
    %121 = vector.broadcast %120 : vector<8x1xf32> to vector<8x128xf32>
    %122 = arith.subf %118, %121 : vector<8x128xf32>
    %123 = math.exp %122 : vector<8x128xf32>
    %cst_53 = arith.constant dense<0.000000e+00> : vector<8xf32>
    %124 = vector.multi_reduction <add>, %123, %cst_53 [1] : vector<8x128xf32> to vector<8xf32>
    %125 = vector.shape_cast %124 : vector<8xf32> to vector<8x1xf32>
    %126 = math.log %125 : vector<8x1xf32>
    %127 = arith.addf %120, %126 : vector<8x1xf32>
    %128 = vector.broadcast %127 : vector<8x1xf32> to vector<8x128xf32>
    %129 = arith.subf %118, %128 : vector<8x128xf32>
    %c0_54 = arith.constant 0 : index
    %c0_55 = arith.constant 0 : index
    %130 = vector.load %arg8[%c0_54, %c0_55] : memref<8x128xf32, #tpu.memory_space<vmem>>, vector<8x128xf32>
    tpu.vector_store %arg8[%c0_54, %c0_55], %129 {strides = array<i32>} : memref<8x128xf32, #tpu.memory_space<vmem>>, vector<8x128xf32>,
    return
  }
  func.func @transform_0(%arg0: i32) -> (i32, i32) {
    %c0_i32 = arith.constant 0 : i32
    %c0_i32_0 = arith.constant 0 : i32
    return %arg0, %c0_i32 : i32, i32
  }
  func.func @transform_1(%arg0: i32) -> (i32, i32) {
    %c0_i32 = arith.constant 0 : i32
    %c0_i32_0 = arith.constant 0 : i32
    %c0_i32_1 = arith.constant 0 : i32
    return %c0_i32, %c0_i32_0 : i32, i32
  }
  func.func @transform_2(%arg0: i32) -> (i32, i32) {
    %c0_i32 = arith.constant 0 : i32
    %c0_i32_0 = arith.constant 0 : i32
    %c0_i32_1 = arith.constant 0 : i32
    return %c0_i32, %c0_i32_0 : i32, i32
  }
  func.func @transform_3(%arg0: i32) -> (i32, i32, i32) {
    %c0_i32 = arith.constant 0 : i32
    %c0_i32_0 = arith.constant 0 : i32
    %c0_i32_1 = arith.constant 0 : i32
    %c0_i32_2 = arith.constant 0 : i32
    return %c0_i32, %c0_i32_0, %c0_i32_1 : i32, i32, i32
  }
  func.func @transform_4(%arg0: i32) -> (i32, i32) {
    %c0_i32 = arith.constant 0 : i32
    %c0_i32_0 = arith.constant 0 : i32
    %c0_i32_1 = arith.constant 0 : i32
    return %c0_i32, %c0_i32_0 : i32, i32
  }
  func.func @transform_5(%arg0: i32) -> (i32, i32) {
    %c0_i32 = arith.constant 0 : i32
    %c0_i32_0 = arith.constant 0 : i32
    %c0_i32_1 = arith.constant 0 : i32
    return %c0_i32, %c0_i32_0 : i32, i32
  }
  func.func @transform_6(%arg0: i32) -> (i32, i32) {
    %c0_i32 = arith.constant 0 : i32
    %c0_i32_0 = arith.constant 0 : i32
    %c0_i32_1 = arith.constant 0 : i32
    return %c0_i32, %c0_i32_0 : i32, i32
  }
  func.func @transform_7(%arg0: i32) -> (i32, i32) {
    %c0_i32 = arith.constant 0 : i32
    %c0_i32_0 = arith.constant 0 : i32
    return %arg0, %c0_i32 : i32, i32
  }
}

</mosaic_0001>

<llo_original>
// kernel: tile.8
$region0: #{tile.8}
  #allocation0 [shape = 's32[1]{0}', space=sflag, size = 0x4, scoped, tag = 'scoped memory for tile.8']
  %s0 = inlined_call_operand.vmem [shape: f32[20], index: 0, kind: input, shape index: {}]
  %s1 = inlined_call_operand.vmem [shape: f32[12,20], index: 1, kind: output, shape index: {}]
  // Predicated region
  $region2: #{tile.8} parent=0 // pred_check
    _
  $region3: #{tile.8} parent=0 // pred_check_branch
    %3 = sbr.rel (0) target = $region5
  $region4: #{tile.8} parent=0 // pred_region
    _
  $region5: #{tile.8} parent=0 // pred_fallthru
    _
  %v4 = vld [vmem:[%s0] ss:$0 sm:$0xff]
  %5 = vst [vmem:[%s1] sm:$0xff] %v4
  %s6 = scalar_lea.vmem %s1, 8
  %7 = vst [vmem:[%s6] sm:$0xff] %v4

// kernel: tile.9
$region0: #{tile.9}
  %s0 = inlined_call_operand.vmem [shape: f32[12,20], index: 0, kind: input, shape index: {}]
  %s1 = inlined_call_operand.vmem [shape: f32[240], index: 1, kind: output, shape index: {}]
  $region1: #{tile.9} parent=0
    #allocation0 [shape = 'u8[4096]{0}', space=vmem, size = 0x1000, scoped, tag = 'scoped mem for output reshape']
    %v2 = vld [vmem:[%s0] sm:$0x1]
    %vm3 = vcmask 162816
    %4 = vst.msk [vmem:[#allocation0] sm:$0x1] %vm3, %v2
    %s5 = scalar_lea.vmem %s0, 6
    %v6 = vld [vmem:[%s5] sm:$0x1]
    %s7 = scalar_lea.vmem %s0, 6
    %v8 = vld [vmem:[%s7] sm:$0x1]
    %vm9 = vcmask 64512
    %v10 = vsel %vm9, %v8, %v6
    %11 = vrot.lane.b32.xlu0 %v10, 120
    %v12 = vpop.permute.xlu0 %11
    %vm13 = vcmask 97280
    %s14 = scalar_lea.vmem [#allocation0], 1
    %15 = vst.msk [vmem:[%s14] sm:$0x1] %vm13, %v12
    %vm16 = vcmask 1048512
    %17 = vst.msk [vmem:[#allocation0] sm:$0x1] %vm16, %v12
    %s18 = scalar_lea.vmem %s0, 5
    %v19 = vld [vmem:[%s18] sm:$0x1]
    %20 = vrot.lane.b32.xlu0 %v19, 100
    %v21 = vpop.permute.xlu0 %20
    %vm22 = vcmask 982816
    %23 = vst.msk [vmem:[#allocation0] sm:$0x1] %vm22, %v21
    %s24 = scalar_lea.vmem %s0, 11
    %v25 = vld [vmem:[%s24] sm:$0x1]
    %26 = vrot.lane.b32.xlu0 %v25, 92
    %v27 = vpop.permute.xlu0 %26
    %vm28 = vcmask 917216
    %s29 = scalar_lea.vmem [#allocation0], 1
    %30 = vst.msk [vmem:[%s29] sm:$0x1] %vm28, %v27
    %s31 = scalar_lea.vmem %s0, 4
    %v32 = vld [vmem:[%s31] sm:$0x1]
    %33 = vrot.lane.b32.xlu0 %v32, 80
    %v34 = vpop.permute.xlu0 %33
    %vm35 = vcmask 818816
    %36 = vst.msk [vmem:[#allocation0] sm:$0x1] %vm35, %v34
    %s37 = scalar_lea.vmem %s0, 10
    %v38 = vld [vmem:[%s37] sm:$0x1]
    %39 = vrot.lane.b32.xlu0 %v38, 72
    %v40 = vpop.permute.xlu0 %39
    %vm41 = vcmask 753216
    %s42 = scalar_lea.vmem [#allocation0], 1
    %43 = vst.msk [vmem:[%s42] sm:$0x1] %vm41, %v40
    %s44 = scalar_lea.vmem %s0, 3
    %v45 = vld [vmem:[%s44] sm:$0x1]
    %46 = vrot.lane.b32.xlu0 %v45, 60
    %v47 = vpop.permute.xlu0 %46
    %vm48 = vcmask 654816
    %49 = vst.msk [vmem:[#allocation0] sm:$0x1] %vm48, %v47
    %s50 = scalar_lea.vmem %s0, 9
    %v51 = vld [vmem:[%s50] sm:$0x1]
    %52 = vrot.lane.b32.xlu0 %v51, 52
    %v53 = vpop.permute.xlu0 %52
    %vm54 = vcmask 589216
    %s55 = scalar_lea.vmem [#allocation0], 1
    %56 = vst.msk [vmem:[%s55] sm:$0x1] %vm54, %v53
    %s57 = scalar_lea.vmem %s0, 2
    %v58 = vld [vmem:[%s57] sm:$0x1]
    %59 = vrot.lane.b32.xlu0 %v58, 40
    %v60 = vpop.permute.xlu0 %59
    %vm61 = vcmask 490816
    %62 = vst.msk [vmem:[#allocation0] sm:$0x1] %vm61, %v60
    %s63 = scalar_lea.vmem %s0, 8
    %v64 = vld [vmem:[%s63] sm:$0x1]
    %65 = vrot.lane.b32.xlu0 %v64, 32
    %v66 = vpop.permute.xlu0 %65
    %vm67 = vcmask 425216
    %s68 = scalar_lea.vmem [#allocation0], 1
    %69 = vst.msk [vmem:[%s68] sm:$0x1] %vm67, %v66
    %s70 = scalar_lea.vmem %s0, 1
    %v71 = vld [vmem:[%s70] sm:$0x1]
    %72 = vrot.lane.b32.xlu0 %v71, 20
    %v73 = vpop.permute.xlu0 %72
    %vm74 = vcmask 326816
    %75 = vst.msk [vmem:[#allocation0] sm:$0x1] %vm74, %v73
    %s76 = scalar_lea.vmem %s0, 7
    %v77 = vld [vmem:[%s76] sm:$0x1]
    %78 = vrot.lane.b32.xlu0 %v77, 12
    %v79 = vpop.permute.xlu0 %78
    %vm80 = vcmask 261216
    %s81 = scalar_lea.vmem [#allocation0], 1
    %82 = vst.msk [vmem:[%s81] sm:$0x1] %vm80, %v79
    %s84 = sshll.u32 1, 2
    %s85 = ssub.s32 %s84, 1
    %v87 = vld [vmem:[#allocation0] sm:%s85]
    %s88 = sshll.u32 1, 2
    %s89 = ssub.s32 %s88, 1
    %90 = vst [vmem:[%s1] sm:%s89] %v87

// kernel: simple_cnn_forward.1
$region0: #{simple_cnn_forward.1}
  #allocation0 [shape = 'u32[]', space=smem, size = 0x4, offset = 0x4, fixed_abs, tag = 'smem constant byte address 0x4 - core index']
  #allocation1 [shape = 'u32[144,128]{1,0:T(1,128)}', space=vmem, size = 0x12000, scoped, tag = 'internal scratch']
  %s0 = inlined_call_operand.vmem [shape: bf16[384,140], index: 0, kind: input, shape index: {}]
  %s1 = inlined_call_operand.vmem [shape: bf16[140,512], index: 1, kind: input, shape index: {}]
  %s2 = inlined_call_operand.vmem [shape: f32[1,512], index: 2, kind: input, shape index: {}]
  %s3 = inlined_call_operand.vmem [shape: bf16[12,256,512], index: 3, kind: input, shape index: {}]
  %s4 = inlined_call_operand.vmem [shape: f32[1,512], index: 4, kind: input, shape index: {}]
  %s5 = inlined_call_operand.vmem [shape: bf16[512,128], index: 5, kind: input, shape index: {}]
  %s6 = inlined_call_operand.vmem [shape: f32[1,128], index: 6, kind: input, shape index: {}]
  %s7 = inlined_call_operand.vmem [shape: f32[16,128], index: 7, kind: output, shape index: {}]
  %s8 = sld [smem:[#allocation0]]
  $region61: #{simple_cnn_forward.1} parent=0
    _
  %s10 = ssub.s32 1, %s8
  %s11 = scalar_select 0, %s10, %s8
  loop: start=0, step=1, limit=4
  $region2: #{simple_cnn_forward.1} parent=0 // loop_pre_header
    _
  $region3: #{simple_cnn_forward.1} parent=0 // loop_header
    %s13 = sphi 0, %s17
    %p14 = scmp.ge.s32.totalorder %s13, 4
    %s23 = sphi 0, %s25
    %s26 = sphi 0, %s23
    %s27 = sphi 0, %s26
    %s43 = sphi 0, %s27
    %s47 = sphi 0, %s47
    %s49 = sphi 0, %s47
    %s50 = sphi 0, %s49
    %s64 = sphi 0, %s50
    %s68 = sphi 0, %s68
    %s70 = sphi 0, %s68
    %s71 = sphi 0, %s70
    %s85 = sphi 0, %s71
    %s89 = sphi 0, %s89
    %s91 = sphi 0, %s89
    %s92 = sphi 0, %s91
    %s106 = sphi 0, %s92
    %s110 = sphi 0, %s110
    %s112 = sphi 0, %s110
    %s113 = sphi 0, %s112
    %s127 = sphi 0, %s113
    %s131 = sphi 0, %s131
    %s133 = sphi 0, %s131
    %s134 = sphi 0, %s133
    %s148 = sphi 0, %s134
    %s152 = sphi 0, %s152
    %s154 = sphi 0, %s152
    %s155 = sphi 0, %s154
    %s169 = sphi 0, %s155
    %s175 = sphi 0, %s177
    %s178 = sphi 0, %s175
    %s179 = sphi 0, %s178
    %s195 = sphi 0, %s179
  $region4: #{simple_cnn_forward.1} parent=0 // loop_header_branch
    %16 = sbr.rel (%p14) target = $region8
  $region5: #{simple_cnn_forward.1} parent=0 // loop_body
    %s18 = ssub.s32 %s13, 1
    %s19 = ssub.s32 %s13, 2
    %s20 = sadd.s32 %s13, 1
    %s21 = ssub.s32 %s13, %s20
    %p22 = scmp.eq.s32.totalorder %s21, 0
    %s24 = sadd.s32 %s23, 1
    %s25 = scalar_select %p22, %s23, %s24
    %p28 = pneg %p22
    %p29 = scmp.eq.s32.totalorder %s13, 1
    %p30 = por %p28, %p29
    %p31 = scmp.ne.s32.totalorder %s23, %s26
    %p32 = scmp.eq.s32.totalorder %s13, 0
    %p33 = por %p31, %p32
    %p34 = scmp.ne.s32.totalorder %s23, %s26
    %p35 = scmp.eq.s32.totalorder %s18, 1
    %p36 = por %p34, %p35
    %p37 = scmp.ne.s32.totalorder %s26, %s27
    %p38 = scmp.eq.s32.totalorder %s18, 0
    %p39 = por %p37, %p38
    %p40 = scmp.ne.s32.totalorder %s26, %s27
    %p41 = scmp.eq.s32.totalorder %s19, 1
    %p42 = por %p40, %p41
    %p44 = scmp.ne.s32.totalorder %s27, %s43
    %p45 = scmp.eq.s32.totalorder %s19, 0
    %p46 = por %p44, %p45
    %s48 = sadd.s32 %s47, 1
    %p51 = scmp.eq.s32.totalorder %s13, 1
    %p52 = scmp.ne.s32.totalorder %s47, %s49
    %p53 = scmp.eq.s32.totalorder %s13, 0
    %p54 = por %p52, %p53
    %p55 = scmp.ne.s32.totalorder %s47, %s49
    %p56 = scmp.eq.s32.totalorder %s18, 1
    %p57 = por %p55, %p56
    %p58 = scmp.ne.s32.totalorder %s49, %s50
    %p59 = scmp.eq.s32.totalorder %s18, 0
    %p60 = por %p58, %p59
    %p61 = scmp.ne.s32.totalorder %s49, %s50
    %p62 = scmp.eq.s32.totalorder %s19, 1
    %p63 = por %p61, %p62
    %p65 = scmp.ne.s32.totalorder %s50, %s64
    %p66 = scmp.eq.s32.totalorder %s19, 0
    %p67 = por %p65, %p66
    %s69 = sadd.s32 %s68, 1
    %p72 = scmp.eq.s32.totalorder %s13, 1
    %p73 = scmp.ne.s32.totalorder %s68, %s70
    %p74 = scmp.eq.s32.totalorder %s13, 0
    %p75 = por %p73, %p74
    %p76 = scmp.ne.s32.totalorder %s68, %s70
    %p77 = scmp.eq.s32.totalorder %s18, 1
    %p78 = por %p76, %p77
    %p79 = scmp.ne.s32.totalorder %s70, %s71
    %p80 = scmp.eq.s32.totalorder %s18, 0
    %p81 = por %p79, %p80
    %p82 = scmp.ne.s32.totalorder %s70, %s71
    %p83 = scmp.eq.s32.totalorder %s19, 1
    %p84 = por %p82, %p83
    %p86 = scmp.ne.s32.totalorder %s71, %s85
    %p87 = scmp.eq.s32.totalorder %s19, 0
    %p88 = por %p86, %p87
    %s90 = sadd.s32 %s89, 1
    %p93 = scmp.eq.s32.totalorder %s13, 1
    %p94 = scmp.ne.s32.totalorder %s89, %s91
    %p95 = scmp.eq.s32.totalorder %s13, 0
    %p96 = por %p94, %p95
    %p97 = scmp.ne.s32.totalorder %s89, %s91
    %p98 = scmp.eq.s32.totalorder %s18, 1
    %p99 = por %p97, %p98
    %p100 = scmp.ne.s32.totalorder %s91, %s92
    %p101 = scmp.eq.s32.totalorder %s18, 0
    %p102 = por %p100, %p101
    %p103 = scmp.ne.s32.totalorder %s91, %s92
    %p104 = scmp.eq.s32.totalorder %s19, 1
    %p105 = por %p103, %p104
    %p107 = scmp.ne.s32.totalorder %s92, %s106
    %p108 = scmp.eq.s32.totalorder %s19, 0
    %p109 = por %p107, %p108
    %s111 = sadd.s32 %s110, 1
    %p114 = scmp.eq.s32.totalorder %s13, 1
    %p115 = scmp.ne.s32.totalorder %s110, %s112
    %p116 = scmp.eq.s32.totalorder %s13, 0
    %p117 = por %p115, %p116
    %p118 = scmp.ne.s32.totalorder %s110, %s112
    %p119 = scmp.eq.s32.totalorder %s18, 1
    %p120 = por %p118, %p119
    %p121 = scmp.ne.s32.totalorder %s112, %s113
    %p122 = scmp.eq.s32.totalorder %s18, 0
    %p123 = por %p121, %p122
    %p124 = scmp.ne.s32.totalorder %s112, %s113
    %p125 = scmp.eq.s32.totalorder %s19, 1
    %p126 = por %p124, %p125
    %p128 = scmp.ne.s32.totalorder %s113, %s127
    %p129 = scmp.eq.s32.totalorder %s19, 0
    %p130 = por %p128, %p129
    %s132 = sadd.s32 %s131, 1
    %p135 = scmp.eq.s32.totalorder %s13, 1
    %p136 = scmp.ne.s32.totalorder %s131, %s133
    %p137 = scmp.eq.s32.totalorder %s13, 0
    %p138 = por %p136, %p137
    %p139 = scmp.ne.s32.totalorder %s131, %s133
    %p140 = scmp.eq.s32.totalorder %s18, 1
    %p141 = por %p139, %p140
    %p142 = scmp.ne.s32.totalorder %s133, %s134
    %p143 = scmp.eq.s32.totalorder %s18, 0
    %p144 = por %p142, %p143
    %p145 = scmp.ne.s32.totalorder %s133, %s134
    %p146 = scmp.eq.s32.totalorder %s19, 1
    %p147 = por %p145, %p146
    %p149 = scmp.ne.s32.totalorder %s134, %s148
    %p150 = scmp.eq.s32.totalorder %s19, 0
    %p151 = por %p149, %p150
    %s153 = sadd.s32 %s152, 1
    %p156 = scmp.eq.s32.totalorder %s13, 1
    %p157 = scmp.ne.s32.totalorder %s152, %s154
    %p158 = scmp.eq.s32.totalorder %s13, 0
    %p159 = por %p157, %p158
    %p160 = scmp.ne.s32.totalorder %s152, %s154
    %p161 = scmp.eq.s32.totalorder %s18, 1
    %p162 = por %p160, %p161
    %p163 = scmp.ne.s32.totalorder %s154, %s155
    %p164 = scmp.eq.s32.totalorder %s18, 0
    %p165 = por %p163, %p164
    %p166 = scmp.ne.s32.totalorder %s154, %s155
    %p167 = scmp.eq.s32.totalorder %s19, 1
    %p168 = por %p166, %p167
    %p170 = scmp.ne.s32.totalorder %s155, %s169
    %p171 = scmp.eq.s32.totalorder %s19, 0
    %p172 = por %p170, %p171
    %s173 = ssub.s32 %s13, %s20
    %p174 = scmp.eq.s32.totalorder %s173, 0
    %s176 = sadd.s32 %s175, 1
    %s177 = scalar_select %p174, %s175, %s176
    %p180 = pneg %p174
    %p181 = scmp.eq.s32.totalorder %s13, 1
    %p182 = por %p180, %p181
    %p183 = scmp.ne.s32.totalorder %s175, %s178
    %p184 = scmp.eq.s32.totalorder %s13, 0
    %p185 = por %p183, %p184
    %p186 = scmp.ne.s32.totalorder %s175, %s178
    %p187 = scmp.eq.s32.totalorder %s18, 1
    %p188 = por %p186, %p187
    %p189 = scmp.ne.s32.totalorder %s178, %s179
    %p190 = scmp.eq.s32.totalorder %s18, 0
    %p191 = por %p189, %p190
    %p192 = scmp.ne.s32.totalorder %s178, %s179
    %p193 = scmp.eq.s32.totalorder %s19, 1
    %p194 = por %p192, %p193
    %p196 = scmp.ne.s32.totalorder %s179, %s195
    %p197 = scmp.eq.s32.totalorder %s19, 0
    %p198 = por %p196, %p197
    %p199 = scmp.le.s32.totalorder 1, %s13
    %p200 = scmp.lt.s32.totalorder %s13, 3
    %p201 = pnand %p199, %p200
    %p202 = pneg %p201
    // Predicated region
    $region9: #{simple_cnn_forward.1} parent=5 // pred_check
      _
    $region10: #{simple_cnn_forward.1} parent=5 // pred_check_branch
      %204 = sbr.rel (%p201) target = $region12
    $region11: #{simple_cnn_forward.1} parent=5 // pred_region
      %s205 = ssub.s32 %s13, 1
      // Predicated region
      $region13: #{simple_cnn_forward.1} parent=11 // pred_check
        %p206 = pneg %p60
      $region14: #{simple_cnn_forward.1} parent=11 // pred_check_branch
        %208 = sbr.rel (%p206) target = $region16
      $region15: #{simple_cnn_forward.1} parent=11 // pred_region
        _
      $region16: #{simple_cnn_forward.1} parent=11 // pred_fallthru
        _
      // Predicated region
      $region17: #{simple_cnn_forward.1} parent=11 // pred_check
        %p209 = pneg %p81
      $region18: #{simple_cnn_forward.1} parent=11 // pred_check_branch
        %211 = sbr.rel (%p209) target = $region20
      $region19: #{simple_cnn_forward.1} parent=11 // pred_region
        _
      $region20: #{simple_cnn_forward.1} parent=11 // pred_fallthru
        _
      // Predicated region
      $region21: #{simple_cnn_forward.1} parent=11 // pred_check
        %p212 = pneg %p102
      $region22: #{simple_cnn_forward.1} parent=11 // pred_check_branch
        %214 = sbr.rel (%p212) target = $region24
      $region23: #{simple_cnn_forward.1} parent=11 // pred_region
        _
      $region24: #{simple_cnn_forward.1} parent=11 // pred_fallthru
        _
      // Predicated region
      $region25: #{simple_cnn_forward.1} parent=11 // pred_check
        %p215 = pneg %p123
      $region26: #{simple_cnn_forward.1} parent=11 // pred_check_branch
        %217 = sbr.rel (%p215) target = $region28
      $region27: #{simple_cnn_forward.1} parent=11 // pred_region
        _
      $region28: #{simple_cnn_forward.1} parent=11 // pred_fallthru
        _
      // Predicated region
      $region29: #{simple_cnn_forward.1} parent=11 // pred_check
        %p218 = pneg %p144
      $region30: #{simple_cnn_forward.1} parent=11 // pred_check_branch
        %220 = sbr.rel (%p218) target = $region32
      $region31: #{simple_cnn_forward.1} parent=11 // pred_region
        _
      $region32: #{simple_cnn_forward.1} parent=11 // pred_fallthru
        _
      // Predicated region
      $region33: #{simple_cnn_forward.1} parent=11 // pred_check
        %p221 = pneg %p165
      $region34: #{simple_cnn_forward.1} parent=11 // pred_check_branch
        %223 = sbr.rel (%p221) target = $region36
      $region35: #{simple_cnn_forward.1} parent=11 // pred_region
        _
      $region36: #{simple_cnn_forward.1} parent=11 // pred_fallthru
        _
    $region12: #{simple_cnn_forward.1} parent=5 // pred_fallthru
      _
    %p224 = scmp.lt.s32.totalorder %s13, 2
    // Predicated region
    $region37: #{simple_cnn_forward.1} parent=5 // pred_check
      %p225 = pneg %p224
    $region38: #{simple_cnn_forward.1} parent=5 // pred_check_branch
      %227 = sbr.rel (%p225) target = $region40
    $region39: #{simple_cnn_forward.1} parent=5 // pred_region
      // Predicated region
      $region41: #{simple_cnn_forward.1} parent=39 // pred_check
        %p228 = pneg %p33
      $region42: #{simple_cnn_forward.1} parent=39 // pred_check_branch
        %230 = sbr.rel (%p228) target = $region44
      $region43: #{simple_cnn_forward.1} parent=39 // pred_region
        %s231 = smul.u32 24, %s13
        %p232 = scmp.lt.s32.totalorder %s231, 47
        %s233 = scalar_select %p232, %s231, 47
        %s234 = smul.addr %s233, 2
        %s235 = smul.addr %s234, 4
        %s236 = scalar_lea.vmem %s0, %s235
        %s237 = smul.u32 24, %s13
      $region44: #{simple_cnn_forward.1} parent=39 // pred_fallthru
        _
    $region40: #{simple_cnn_forward.1} parent=5 // pred_fallthru
      _
    %p238 = scmp.le.s32.totalorder 1, %s13
    %p239 = scmp.lt.s32.totalorder %s13, 3
    %p240 = pnand %p238, %p239
    %p241 = pneg %p240
    // Predicated region
    $region45: #{simple_cnn_forward.1} parent=5 // pred_check
      _
    $region46: #{simple_cnn_forward.1} parent=5 // pred_check_branch
      %243 = sbr.rel (%p240) target = $region48
    $region47: #{simple_cnn_forward.1} parent=5 // pred_region
      %s244 = ssub.s32 %s13, 1
      %s245 = smul.u32 24, %s18
      %p246 = scmp.lt.s32.totalorder %s245, 47
      %s247 = scalar_select %p246, %s245, 47
      %s248 = smul.addr %s247, 2
      %s249 = smul.addr %s248, 4
      %s250 = scalar_lea.vmem %s0, %s249
      %p251 = pneg %p39
      %p252 = pneg %p36
      %p253 = pneg %p60
      %p254 = pneg %p57
      %p255 = pneg %p81
      %p256 = pneg %p78
      %p257 = pneg %p102
      %p258 = pneg %p99
      %p259 = pneg %p123
      %p260 = pneg %p120
      %p261 = pneg %p144
      %p262 = pneg %p141
      %p263 = pneg %p165
      %p264 = pneg %p162
      %p265 = pneg %p191
      %p266 = pneg %p188
      %p267 = scmp.lt.s32.totalorder %s18, 1
      %s268 = scalar_select %p267, %s18, 1
      %s269 = smul.addr %s268, 8
      %s270 = scalar_lea.vmem %s7, %s269
      %s271 = smul.u32 24, %s18
      %p272 = scmp.lt.s32.totalorder %s271, 47
      %s273 = scalar_select %p272, %s271, 47
      %s274 = smul.addr %s273, 2
      %s275 = smul.addr %s274, 4
      %s276 = scalar_lea.vmem %s0, %s275
      %s277 = smul.u32 24, %s18
      %p278 = scmp.lt.s32.totalorder %s18, 1
      %s279 = scalar_select %p278, %s18, 1
      %s280 = smul.addr %s279, 8
      %s281 = scalar_lea.vmem %s7, %s280
      %v283 = vld [vmem:[%s276] sm:$0xff]
      %v284 = vld [vmem:[%s276 + $0x8] sm:$0xff]
      %v285 = vld [vmem:[%s276 + $0x10] sm:$0xff]
      %v286 = vld [vmem:[%s276 + $0x18] sm:$0xff]
      %v287 = vld [vmem:[%s276 + $0x20] sm:$0xff]
      %v288 = vld [vmem:[%s276 + $0x28] sm:$0xff]
      %v289 = vld [vmem:[%s276 + $0x30] sm:$0xff]
      %v290 = vld [vmem:[%s276 + $0x38] sm:$0xff]
      %v291 = vld [vmem:[%s276 + $0x40] sm:$0xff]
      %v292 = vld [vmem:[%s276 + $0x48] sm:$0xff]
      %v293 = vld [vmem:[%s276 + $0x50] sm:$0xff]
      %v294 = vld [vmem:[%s276 + $0x58] sm:$0xff]
      %v295 = vld [vmem:[%s276 + $0x60] sm:$0xff]
      %v296 = vld [vmem:[%s276 + $0x68] sm:$0xff]
      %v297 = vld [vmem:[%s276 + $0x70] sm:$0xff]
      %v298 = vld [vmem:[%s276 + $0x78] sm:$0xff]
      %v299 = vld [vmem:[%s276 + $0x80] sm:$0xff]
      %v300 = vld [vmem:[%s276 + $0x88] sm:$0xff]
      %v301 = vld [vmem:[%s276 + $0x90] sm:$0xff]
      %v302 = vld [vmem:[%s276 + $0x98] sm:$0xff]
      %v303 = vld [vmem:[%s276 + $0xa0] sm:$0xff]
      %v304 = vld [vmem:[%s276 + $0xa8] sm:$0xff]
      %v305 = vld [vmem:[%s276 + $0xb0] sm:$0xff]
      %v306 = vld [vmem:[%s276 + $0xb8] sm:$0xff]
      %v307 = vld [vmem:[%s1] sm:$0xff]
      %v308 = vld [vmem:[%s1 + $0x8] sm:$0xff]
      %v309 = vld [vmem:[%s1 + $0x10] sm:$0xff]
      %v310 = vld [vmem:[%s1 + $0x18] sm:$0xff]
      %v311 = vld [vmem:[%s1 + $0x20] sm:$0xff]
      %v312 = vld [vmem:[%s1 + $0x28] sm:$0xff]
      %v313 = vld [vmem:[%s1 + $0x30] sm:$0xff]
      %v314 = vld [vmem:[%s1 + $0x38] sm:$0xff]
      %v315 = vld [vmem:[%s1 + $0x40] sm:$0xff]
      %v316 = vld [vmem:[%s1 + $0x48] sm:$0xff]
      %v317 = vld [vmem:[%s1 + $0x50] sm:$0xff]
      %v318 = vld [vmem:[%s1 + $0x58] sm:$0xff]
      %v319 = vld [vmem:[%s1 + $0x60] sm:$0xff]
      %v320 = vld [vmem:[%s1 + $0x68] sm:$0xff]
      %v321 = vld [vmem:[%s1 + $0x70] sm:$0xff]
      %v322 = vld [vmem:[%s1 + $0x78] sm:$0xff]
      %v323 = vld [vmem:[%s1 + $0x80] sm:$0xff]
      %v324 = vld [vmem:[%s1 + $0x88] sm:$0xff]
      %v325 = vld [vmem:[%s1 + $0x90] sm:$0xff]
      %v326 = vld [vmem:[%s1 + $0x98] sm:$0xff]
      %v327 = vld [vmem:[%s1 + $0xa0] sm:$0xff]
      %v328 = vld [vmem:[%s1 + $0xa8] sm:$0xff]
      %v329 = vld [vmem:[%s1 + $0xb0] sm:$0xff]
      %v330 = vld [vmem:[%s1 + $0xb8] sm:$0xff]
      %v331 = vld [vmem:[%s1 + $0xc0] sm:$0xff]
      %v332 = vld [vmem:[%s1 + $0xc8] sm:$0xff]
      %v333 = vld [vmem:[%s1 + $0xd0] sm:$0xff]
      %v334 = vld [vmem:[%s1 + $0xd8] sm:$0xff]
      %v335 = vld [vmem:[%s1 + $0xe0] sm:$0xff]
      %v336 = vld [vmem:[%s1 + $0xe8] sm:$0xff]
      %v337 = vld [vmem:[%s1 + $0xf0] sm:$0xff]
      %v338 = vld [vmem:[%s1 + $0xf8] sm:$0xff]
      %v339 = vld [vmem:[%s1 + $0x100] sm:$0xff]
      %v340 = vld [vmem:[%s1 + $0x108] sm:$0xff]
      %v341 = vld [vmem:[%s1 + $0x110] sm:$0x33]
      %v342 = vld [vmem:[%s1 + $0x118] sm:$0x33]
      %v343 = vld [vmem:[%s2] sm:$0xf]
      %v345 = vlaneseq
      %v346 = vshrl.u32 %v345, 7
      %v347 = vsub.s32 0, %v346
      %v348 = vrot.slane %v343, %v347
      %v349 = vlaneseq
      %v350 = vshrl.u32 %v349, 7
      %v351 = vsub.s32 1, %v350
      %v352 = vrot.slane %v343, %v351
      %v353 = vlaneseq
      %v354 = vshrl.u32 %v353, 7
      %v355 = vsub.s32 2, %v354
      %v356 = vrot.slane %v343, %v355
      %v357 = vlaneseq
      %v358 = vshrl.u32 %v357, 7
      %v359 = vsub.s32 3, %v358
      %v360 = vrot.slane %v343, %v359
      %v389 = vunpack.c.l.b16 %v283
      %v390 = vunpack.c.h.b16 %v283
      %v391 = vunpack.c.l.b16 %v284
      %v392 = vunpack.c.h.b16 %v284
      %v393 = vunpack.c.l.b16 %v285
      %v394 = vunpack.c.h.b16 %v285
      %v395 = vunpack.c.l.b16 %v286
      %v396 = vunpack.c.h.b16 %v286
      %v397 = vunpack.c.l.b16 %v287
      %v398 = vunpack.c.h.b16 %v287
      %v399 = vunpack.c.l.b16 %v288
      %v400 = vunpack.c.h.b16 %v288
      %v401 = vunpack.c.l.b16 %v289
      %v402 = vunpack.c.h.b16 %v289
      %v403 = vunpack.c.l.b16 %v290
      %v404 = vunpack.c.h.b16 %v290
      %v405 = vunpack.c.l.b16 %v291
      %v406 = vunpack.c.h.b16 %v291
      %v407 = vunpack.c.l.b16 %v292
      %v408 = vunpack.c.h.b16 %v292
      %v409 = vunpack.c.l.b16 %v293
      %v410 = vunpack.c.h.b16 %v293
      %v411 = vunpack.c.l.b16 %v294
      %v412 = vunpack.c.h.b16 %v294
      %v413 = vunpack.c.l.b16 %v295
      %v414 = vunpack.c.h.b16 %v295
      %v415 = vunpack.c.l.b16 %v296
      %v416 = vunpack.c.h.b16 %v296
      %v417 = vunpack.c.l.b16 %v297
      %v418 = vunpack.c.h.b16 %v297
      %v419 = vunpack.c.l.b16 %v298
      %v420 = vunpack.c.h.b16 %v298
      %v421 = vunpack.c.l.b16 %v299
      %v422 = vunpack.c.h.b16 %v299
      %v423 = vunpack.c.l.b16 %v300
      %v424 = vunpack.c.h.b16 %v300
      %v425 = vunpack.c.l.b16 %v301
      %v426 = vunpack.c.h.b16 %v301
      %v427 = vunpack.c.l.b16 %v302
      %v428 = vunpack.c.h.b16 %v302
      %v429 = vunpack.c.l.b16 %v303
      %v430 = vunpack.c.h.b16 %v303
      %v431 = vunpack.c.l.b16 %v304
      %v432 = vunpack.c.h.b16 %v304
      %v433 = vunpack.c.l.b16 %v305
      %v434 = vunpack.c.h.b16 %v305
      %v435 = vunpack.c.l.b16 %v306
      %v436 = vunpack.c.h.b16 %v306
      %v437 = vpack.c.b16 %v391, %v389
      %v438 = vpack.c.b16 %v392, %v390
      %v439 = vpack.c.b16 %v395, %v393
      %v440 = vpack.c.b16 %v396, %v394
      %v441 = vpack.c.b16 %v399, %v397
      %v442 = vpack.c.b16 %v400, %v398
      %v443 = vpack.c.b16 %v403, %v401
      %v444 = vpack.c.b16 %v404, %v402
      %v445 = vpack.c.b16 %v407, %v405
      %v446 = vpack.c.b16 %v408, %v406
      %v447 = vpack.c.b16 %v411, %v409
      %v448 = vpack.c.b16 %v412, %v410
      %v449 = vpack.c.b16 %v415, %v413
      %v450 = vpack.c.b16 %v416, %v414
      %v451 = vpack.c.b16 %v419, %v417
      %v452 = vpack.c.b16 %v420, %v418
      %v453 = vpack.c.b16 %v423, %v421
      %v454 = vpack.c.b16 %v424, %v422
      %v455 = vpack.c.b16 %v427, %v425
      %v456 = vpack.c.b16 %v428, %v426
      %v457 = vpack.c.b16 %v431, %v429
      %v458 = vpack.c.b16 %v432, %v430
      %v459 = vpack.c.b16 %v435, %v433
      %v460 = vpack.c.b16 %v436, %v434
      %v509 = vunpack.c.l.b16 %v307
      %v510 = vunpack.c.h.b16 %v307
      %v511 = vunpack.c.l.b16 %v308
      %v512 = vunpack.c.h.b16 %v308
      %v513 = vunpack.c.l.b16 %v309
      %v514 = vunpack.c.h.b16 %v309
      %v515 = vunpack.c.l.b16 %v310
      %v516 = vunpack.c.h.b16 %v310
      %v517 = vunpack.c.l.b16 %v311
      %v518 = vunpack.c.h.b16 %v311
      %v519 = vunpack.c.l.b16 %v312
      %v520 = vunpack.c.h.b16 %v312
      %v521 = vunpack.c.l.b16 %v313
      %v522 = vunpack.c.h.b16 %v313
      %v523 = vunpack.c.l.b16 %v314
      %v524 = vunpack.c.h.b16 %v314
      %v525 = vunpack.c.l.b16 %v315
      %v526 = vunpack.c.h.b16 %v315
      %v527 = vunpack.c.l.b16 %v316
      %v528 = vunpack.c.h.b16 %v316
      %v529 = vunpack.c.l.b16 %v317
      %v530 = vunpack.c.h.b16 %v317
      %v531 = vunpack.c.l.b16 %v318
      %v532 = vunpack.c.h.b16 %v318
      %v533 = vunpack.c.l.b16 %v319
      %v534 = vunpack.c.h.b16 %v319
      %v535 = vunpack.c.l.b16 %v320
      %v536 = vunpack.c.h.b16 %v320
      %v537 = vunpack.c.l.b16 %v321
      %v538 = vunpack.c.h.b16 %v321
      %v539 = vunpack.c.l.b16 %v322
      %v540 = vunpack.c.h.b16 %v322
      %v541 = vunpack.c.l.b16 %v323
      %v542 = vunpack.c.h.b16 %v323
      %v543 = vunpack.c.l.b16 %v324
      %v544 = vunpack.c.h.b16 %v324
      %v545 = vunpack.c.l.b16 %v325
      %v546 = vunpack.c.h.b16 %v325
      %v547 = vunpack.c.l.b16 %v326
      %v548 = vunpack.c.h.b16 %v326
      %v549 = vunpack.c.l.b16 %v327
      %v550 = vunpack.c.h.b16 %v327
      %v551 = vunpack.c.l.b16 %v328
      %v552 = vunpack.c.h.b16 %v328
      %v553 = vunpack.c.l.b16 %v329
      %v554 = vunpack.c.h.b16 %v329
      %v555 = vunpack.c.l.b16 %v330
      %v556 = vunpack.c.h.b16 %v330
      %v557 = vunpack.c.l.b16 %v331
      %v558 = vunpack.c.h.b16 %v331
      %v559 = vunpack.c.l.b16 %v332
      %v560 = vunpack.c.h.b16 %v332
      %v561 = vunpack.c.l.b16 %v333
      %v562 = vunpack.c.h.b16 %v333
      %v563 = vunpack.c.l.b16 %v334
      %v564 = vunpack.c.h.b16 %v334
      %v565 = vunpack.c.l.b16 %v335
      %v566 = vunpack.c.h.b16 %v335
      %v567 = vunpack.c.l.b16 %v336
      %v568 = vunpack.c.h.b16 %v336
      %v569 = vunpack.c.l.b16 %v337
      %v570 = vunpack.c.h.b16 %v337
      %v571 = vunpack.c.l.b16 %v338
      %v572 = vunpack.c.h.b16 %v338
      %v573 = vunpack.c.l.b16 %v339
      %v574 = vunpack.c.h.b16 %v339
      %v575 = vunpack.c.l.b16 %v340
      %v576 = vunpack.c.h.b16 %v340
      %v577 = vunpack.c.l.b16 %v341
      %v578 = vunpack.c.h.b16 %v341
      %v579 = vunpack.c.l.b16 %v342
      %v580 = vunpack.c.h.b16 %v342
      %v581 = vpack.c.b16 %v513, %v509
      %v582 = vpack.c.b16 %v514, %v510
      %v583 = vpack.c.b16 %v515, %v511
      %v584 = vpack.c.b16 %v516, %v512
      %v585 = vpack.c.b16 %v521, %v517
      %v586 = vpack.c.b16 %v522, %v518
      %v587 = vpack.c.b16 %v523, %v519
      %v588 = vpack.c.b16 %v524, %v520
      %v589 = vpack.c.b16 %v529, %v525
      %v590 = vpack.c.b16 %v530, %v526
      %v591 = vpack.c.b16 %v531, %v527
      %v592 = vpack.c.b16 %v532, %v528
      %v593 = vpack.c.b16 %v537, %v533
      %v594 = vpack.c.b16 %v538, %v534
      %v595 = vpack.c.b16 %v539, %v535
      %v596 = vpack.c.b16 %v540, %v536
      %v597 = vpack.c.b16 %v545, %v541
      %v598 = vpack.c.b16 %v546, %v542
      %v599 = vpack.c.b16 %v547, %v543
      %v600 = vpack.c.b16 %v548, %v544
      %v601 = vpack.c.b16 %v553, %v549
      %v602 = vpack.c.b16 %v554, %v550
      %v603 = vpack.c.b16 %v555, %v551
      %v604 = vpack.c.b16 %v556, %v552
      %v605 = vpack.c.b16 %v561, %v557
      %v606 = vpack.c.b16 %v562, %v558
      %v607 = vpack.c.b16 %v563, %v559
      %v608 = vpack.c.b16 %v564, %v560
      %v609 = vpack.c.b16 %v569, %v565
      %v610 = vpack.c.b16 %v570, %v566
      %v611 = vpack.c.b16 %v571, %v567
      %v612 = vpack.c.b16 %v572, %v568
      %v613 = vpack.c.b16 %v577, %v573
      %v614 = vpack.c.b16 %v578, %v574
      %v615 = vpack.c.b16 %v579, %v575
      %v616 = vpack.c.b16 %v580, %v576
      %vm649 = vcmask 97280
      %v651 = vsel %vm649, %v438, 0
      %v654 = vsel %vm649, %v440, 0
      %v657 = vsel %vm649, %v442, 0
      %v660 = vsel %vm649, %v444, 0
      %v663 = vsel %vm649, %v446, 0
      %v666 = vsel %vm649, %v448, 0
      %v669 = vsel %vm649, %v450, 0
      %v672 = vsel %vm649, %v452, 0
      %v675 = vsel %vm649, %v454, 0
      %v678 = vsel %vm649, %v456, 0
      %v681 = vsel %vm649, %v458, 0
      %v684 = vsel %vm649, %v460, 0
      %vm686 = vcmask 1045504
      %v688 = vsel %vm686, %v613, 0
      %v691 = vsel %vm686, %v614, 0
      %v694 = vsel %vm686, %v615, 0
      %v697 = vsel %vm686, %v616, 0
      %699 = vmatprep.subr.bf16.mxu0 %v610
      %700 = vmatpush1.bf16.msra.mxu0 %v609
      %701 = vmatprep.subr.bf16.mxu0 %v606
      %702 = vmatpush1.bf16.msra.mxu0 %v605
      %703 = vmatprep.subr.bf16.mxu0 %v602
      %704 = vmatpush1.bf16.msra.mxu0 %v601
      %705 = vmatprep.subr.bf16.mxu0 %v598
      %706 = vmatpush1.bf16.msra.mxu0 %v597
      %707 = vmatprep.subr.bf16.mxu0 %v594
      %708 = vmatpush1.bf16.msra.mxu0 %v593
      %709 = vmatprep.subr.bf16.mxu0 %v590
      %710 = vmatpush1.bf16.msra.mxu0 %v589
      %711 = vmatprep.subr.bf16.mxu0 %v586
      %712 = vmatpush1.bf16.msra.mxu0 %v585
      %713 = vmatprep.subr.bf16.mxu0 %v582
      %714 = vmatpush1.bf16.msra.mxu0 %v581
      %715 = vmatprep.subr.bf16.mxu0 0
      %716 = vmatpush2.bf16.msra.mxu0 0
      %717 = vmatprep.subr.bf16.mxu0 0
      %718 = vmatpush2.bf16.msra.mxu0 0
      %719 = vmatprep.subr.bf16.mxu0 0
      %720 = vmatpush2.bf16.msra.mxu0 0
      %721 = vmatprep.subr.bf16.mxu0 0
      %722 = vmatpush2.bf16.msra.mxu0 0
      %723 = vmatprep.subr.bf16.mxu0 0
      %724 = vmatpush2.bf16.msra.mxu0 0
      %725 = vmatprep.subr.bf16.mxu0 0
      %726 = vmatpush2.bf16.msra.mxu0 0
      %727 = vmatprep.subr.bf16.mxu0 0
      %728 = vmatpush2.bf16.msra.mxu0 0
      %729 = vmatprep.subr.bf16.mxu0 %v691
      %730 = vmatpush2.bf16.msra.mxu0 %v688
      %731 = vmatprep.mubr.bf16.mxu0 %v651
      %732 = vmatmul.mubr.bf16.gmra.mxu0 %v437
      %v733 = vpop.f32.mrf.mxu0
      %v734 = vadd.f32 %v348, %v733
      %v735 = vpop.f32.mrf.mxu0
      %v736 = vadd.f32 %v352, %v735
      %v737 = vpop.f32.mrf.mxu0
      %v738 = vadd.f32 %v348, %v737
      %v739 = vpop.f32.mrf.mxu0
      %v740 = vadd.f32 %v352, %v739
      %741 = vmatprep.mubr.bf16.mxu0 %v654
      %742 = vmatmul.mubr.bf16.gmra.mxu0 %v439
      %v743 = vpop.f32.mrf.mxu0
      %v744 = vadd.f32 %v348, %v743
      %v745 = vpop.f32.mrf.mxu0
      %v746 = vadd.f32 %v352, %v745
      %v747 = vpop.f32.mrf.mxu0
      %v748 = vadd.f32 %v348, %v747
      %v749 = vpop.f32.mrf.mxu0
      %v750 = vadd.f32 %v352, %v749
      %751 = vmatprep.mubr.bf16.mxu0 %v657
      %752 = vmatmul.mubr.bf16.gmra.mxu0 %v441
      %v753 = vpop.f32.mrf.mxu0
      %v754 = vadd.f32 %v348, %v753
      %v755 = vpop.f32.mrf.mxu0
      %v756 = vadd.f32 %v352, %v755
      %v757 = vpop.f32.mrf.mxu0
      %v758 = vadd.f32 %v348, %v757
      %v759 = vpop.f32.mrf.mxu0
      %v760 = vadd.f32 %v352, %v759
      %761 = vmatprep.mubr.bf16.mxu0 %v660
      %762 = vmatmul.mubr.bf16.gmra.mxu0 %v443
      %v763 = vpop.f32.mrf.mxu0
      %v764 = vadd.f32 %v348, %v763
      %v765 = vpop.f32.mrf.mxu0
      %v766 = vadd.f32 %v352, %v765
      %v767 = vpop.f32.mrf.mxu0
      %v768 = vadd.f32 %v348, %v767
      %v769 = vpop.f32.mrf.mxu0
      %v770 = vadd.f32 %v352, %v769
      %771 = vmatprep.mubr.bf16.mxu0 %v663
      %772 = vmatmul.mubr.bf16.gmra.mxu0 %v445
      %v773 = vpop.f32.mrf.mxu0
      %v774 = vadd.f32 %v348, %v773
      %v775 = vpop.f32.mrf.mxu0
      %v776 = vadd.f32 %v352, %v775
      %v777 = vpop.f32.mrf.mxu0
      %v778 = vadd.f32 %v348, %v777
      %v779 = vpop.f32.mrf.mxu0
      %v780 = vadd.f32 %v352, %v779
      %781 = vmatprep.mubr.bf16.mxu0 %v666
      %782 = vmatmul.mubr.bf16.gmra.mxu0 %v447
      %v783 = vpop.f32.mrf.mxu0
      %v784 = vadd.f32 %v348, %v783
      %v785 = vpop.f32.mrf.mxu0
      %v786 = vadd.f32 %v352, %v785
      %v787 = vpop.f32.mrf.mxu0
      %v788 = vadd.f32 %v348, %v787
      %v789 = vpop.f32.mrf.mxu0
      %v790 = vadd.f32 %v352, %v789
      %791 = vmatprep.mubr.bf16.mxu0 %v669
      %792 = vmatmul.mubr.bf16.gmra.mxu0 %v449
      %v793 = vpop.f32.mrf.mxu0
      %v794 = vadd.f32 %v348, %v793
      %v795 = vpop.f32.mrf.mxu0
      %v796 = vadd.f32 %v352, %v795
      %v797 = vpop.f32.mrf.mxu0
      %v798 = vadd.f32 %v348, %v797
      %v799 = vpop.f32.mrf.mxu0
      %v800 = vadd.f32 %v352, %v799
      %801 = vmatprep.mubr.bf16.mxu0 %v672
      %802 = vmatmul.mubr.bf16.gmra.mxu0 %v451
      %v803 = vpop.f32.mrf.mxu0
      %v804 = vadd.f32 %v348, %v803
      %v805 = vpop.f32.mrf.mxu0
      %v806 = vadd.f32 %v352, %v805
      %v807 = vpop.f32.mrf.mxu0
      %v808 = vadd.f32 %v348, %v807
      %v809 = vpop.f32.mrf.mxu0
      %v810 = vadd.f32 %v352, %v809
      %811 = vmatprep.mubr.bf16.mxu0 %v675
      %812 = vmatmul.mubr.bf16.gmra.mxu0 %v453
      %v813 = vpop.f32.mrf.mxu0
      %v814 = vadd.f32 %v348, %v813
      %v815 = vpop.f32.mrf.mxu0
      %v816 = vadd.f32 %v352, %v815
      %v817 = vpop.f32.mrf.mxu0
      %v818 = vadd.f32 %v348, %v817
      %v819 = vpop.f32.mrf.mxu0
      %v820 = vadd.f32 %v352, %v819
      %821 = vmatprep.mubr.bf16.mxu0 %v678
      %822 = vmatmul.mubr.bf16.gmra.mxu0 %v455
      %v823 = vpop.f32.mrf.mxu0
      %v824 = vadd.f32 %v348, %v823
      %v825 = vpop.f32.mrf.mxu0
      %v826 = vadd.f32 %v352, %v825
      %v827 = vpop.f32.mrf.mxu0
      %v828 = vadd.f32 %v348, %v827
      %v829 = vpop.f32.mrf.mxu0
      %v830 = vadd.f32 %v352, %v829
      %831 = vmatprep.mubr.bf16.mxu0 %v681
      %832 = vmatmul.mubr.bf16.gmra.mxu0 %v457
      %v833 = vpop.f32.mrf.mxu0
      %v834 = vadd.f32 %v348, %v833
      %v835 = vpop.f32.mrf.mxu0
      %v836 = vadd.f32 %v352, %v835
      %v837 = vpop.f32.mrf.mxu0
      %v838 = vadd.f32 %v348, %v837
      %v839 = vpop.f32.mrf.mxu0
      %v840 = vadd.f32 %v352, %v839
      %841 = vmatprep.mubr.bf16.mxu0 %v684
      %842 = vmatmul.mubr.bf16.gmra.mxu0 %v459
      %v843 = vpop.f32.mrf.mxu0
      %v844 = vadd.f32 %v348, %v843
      %v845 = vpop.f32.mrf.mxu0
      %v846 = vadd.f32 %v352, %v845
      %v847 = vpop.f32.mrf.mxu0
      %v848 = vadd.f32 %v348, %v847
      %v849 = vpop.f32.mrf.mxu0
      %v850 = vadd.f32 %v352, %v849
      %851 = vdwg.mxu0
      %852 = vmatprep.subr.bf16.mxu0 %v612
      %853 = vmatpush1.bf16.msra.mxu0 %v611
      %854 = vmatprep.subr.bf16.mxu0 %v608
      %855 = vmatpush1.bf16.msra.mxu0 %v607
      %856 = vmatprep.subr.bf16.mxu0 %v604
      %857 = vmatpush1.bf16.msra.mxu0 %v603
      %858 = vmatprep.subr.bf16.mxu0 %v600
      %859 = vmatpush1.bf16.msra.mxu0 %v599
      %860 = vmatprep.subr.bf16.mxu0 %v596
      %861 = vmatpush1.bf16.msra.mxu0 %v595
      %862 = vmatprep.subr.bf16.mxu0 %v592
      %863 = vmatpush1.bf16.msra.mxu0 %v591
      %864 = vmatprep.subr.bf16.mxu0 %v588
      %865 = vmatpush1.bf16.msra.mxu0 %v587
      %866 = vmatprep.subr.bf16.mxu0 %v584
      %867 = vmatpush1.bf16.msra.mxu0 %v583
      %868 = vmatprep.subr.bf16.mxu0 0
      %869 = vmatpush2.bf16.msra.mxu0 0
      %870 = vmatprep.subr.bf16.mxu0 0
      %871 = vmatpush2.bf16.msra.mxu0 0
      %872 = vmatprep.subr.bf16.mxu0 0
      %873 = vmatpush2.bf16.msra.mxu0 0
      %874 = vmatprep.subr.bf16.mxu0 0
      %875 = vmatpush2.bf16.msra.mxu0 0
      %876 = vmatprep.subr.bf16.mxu0 0
      %877 = vmatpush2.bf16.msra.mxu0 0
      %878 = vmatprep.subr.bf16.mxu0 0
      %879 = vmatpush2.bf16.msra.mxu0 0
      %880 = vmatprep.subr.bf16.mxu0 0
      %881 = vmatpush2.bf16.msra.mxu0 0
      %882 = vmatprep.subr.bf16.mxu0 %v697
      %883 = vmatpush2.bf16.msra.mxu0 %v694
      %884 = vmatprep.mubr.bf16.mxu0 %v651
      %885 = vmatmul.mubr.bf16.gmra.mxu0 %v437
      %v886 = vpop.f32.mrf.mxu0
      %v887 = vadd.f32 %v356, %v886
      %v888 = vpop.f32.mrf.mxu0
      %v889 = vadd.f32 %v360, %v888
      %v890 = vpop.f32.mrf.mxu0
      %v891 = vadd.f32 %v356, %v890
      %v892 = vpop.f32.mrf.mxu0
      %v893 = vadd.f32 %v360, %v892
      %894 = vmatprep.mubr.bf16.mxu0 %v654
      %895 = vmatmul.mubr.bf16.gmra.mxu0 %v439
      %v896 = vpop.f32.mrf.mxu0
      %v897 = vadd.f32 %v356, %v896
      %v898 = vpop.f32.mrf.mxu0
      %v899 = vadd.f32 %v360, %v898
      %v900 = vpop.f32.mrf.mxu0
      %v901 = vadd.f32 %v356, %v900
      %v902 = vpop.f32.mrf.mxu0
      %v903 = vadd.f32 %v360, %v902
      %904 = vmatprep.mubr.bf16.mxu0 %v657
      %905 = vmatmul.mubr.bf16.gmra.mxu0 %v441
      %v906 = vpop.f32.mrf.mxu0
      %v907 = vadd.f32 %v356, %v906
      %v908 = vpop.f32.mrf.mxu0
      %v909 = vadd.f32 %v360, %v908
      %v910 = vpop.f32.mrf.mxu0
      %v911 = vadd.f32 %v356, %v910
      %v912 = vpop.f32.mrf.mxu0
      %v913 = vadd.f32 %v360, %v912
      %914 = vmatprep.mubr.bf16.mxu0 %v660
      %915 = vmatmul.mubr.bf16.gmra.mxu0 %v443
      %v916 = vpop.f32.mrf.mxu0
      %v917 = vadd.f32 %v356, %v916
      %v918 = vpop.f32.mrf.mxu0
      %v919 = vadd.f32 %v360, %v918
      %v920 = vpop.f32.mrf.mxu0
      %v921 = vadd.f32 %v356, %v920
      %v922 = vpop.f32.mrf.mxu0
      %v923 = vadd.f32 %v360, %v922
      %924 = vmatprep.mubr.bf16.mxu0 %v663
      %925 = vmatmul.mubr.bf16.gmra.mxu0 %v445
      %v926 = vpop.f32.mrf.mxu0
      %v927 = vadd.f32 %v356, %v926
      %v928 = vpop.f32.mrf.mxu0
      %v929 = vadd.f32 %v360, %v928
      %v930 = vpop.f32.mrf.mxu0
      %v931 = vadd.f32 %v356, %v930
      %v932 = vpop.f32.mrf.mxu0
      %v933 = vadd.f32 %v360, %v932
      %934 = vmatprep.mubr.bf16.mxu0 %v666
      %935 = vmatmul.mubr.bf16.gmra.mxu0 %v447
      %v936 = vpop.f32.mrf.mxu0
      %v937 = vadd.f32 %v356, %v936
      %v938 = vpop.f32.mrf.mxu0
      %v939 = vadd.f32 %v360, %v938
      %v940 = vpop.f32.mrf.mxu0
      %v941 = vadd.f32 %v356, %v940
      %v942 = vpop.f32.mrf.mxu0
      %v943 = vadd.f32 %v360, %v942
      %944 = vmatprep.mubr.bf16.mxu0 %v669
      %945 = vmatmul.mubr.bf16.gmra.mxu0 %v449
      %v946 = vpop.f32.mrf.mxu0
      %v947 = vadd.f32 %v356, %v946
      %v948 = vpop.f32.mrf.mxu0
      %v949 = vadd.f32 %v360, %v948
      %v950 = vpop.f32.mrf.mxu0
      %v951 = vadd.f32 %v356, %v950
      %v952 = vpop.f32.mrf.mxu0
      %v953 = vadd.f32 %v360, %v952
      %954 = vmatprep.mubr.bf16.mxu0 %v672
      %955 = vmatmul.mubr.bf16.gmra.mxu0 %v451
      %v956 = vpop.f32.mrf.mxu0
      %v957 = vadd.f32 %v356, %v956
      %v958 = vpop.f32.mrf.mxu0
      %v959 = vadd.f32 %v360, %v958
      %v960 = vpop.f32.mrf.mxu0
      %v961 = vadd.f32 %v356, %v960
      %v962 = vpop.f32.mrf.mxu0
      %v963 = vadd.f32 %v360, %v962
      %964 = vmatprep.mubr.bf16.mxu0 %v675
      %965 = vmatmul.mubr.bf16.gmra.mxu0 %v453
      %v966 = vpop.f32.mrf.mxu0
      %v967 = vadd.f32 %v356, %v966
      %v968 = vpop.f32.mrf.mxu0
      %v969 = vadd.f32 %v360, %v968
      %v970 = vpop.f32.mrf.mxu0
      %v971 = vadd.f32 %v356, %v970
      %v972 = vpop.f32.mrf.mxu0
      %v973 = vadd.f32 %v360, %v972
      %974 = vmatprep.mubr.bf16.mxu0 %v678
      %975 = vmatmul.mubr.bf16.gmra.mxu0 %v455
      %v976 = vpop.f32.mrf.mxu0
      %v977 = vadd.f32 %v356, %v976
      %v978 = vpop.f32.mrf.mxu0
      %v979 = vadd.f32 %v360, %v978
      %v980 = vpop.f32.mrf.mxu0
      %v981 = vadd.f32 %v356, %v980
      %v982 = vpop.f32.mrf.mxu0
      %v983 = vadd.f32 %v360, %v982
      %984 = vmatprep.mubr.bf16.mxu0 %v681
      %985 = vmatmul.mubr.bf16.gmra.mxu0 %v457
      %v986 = vpop.f32.mrf.mxu0
      %v987 = vadd.f32 %v356, %v986
      %v988 = vpop.f32.mrf.mxu0
      %v989 = vadd.f32 %v360, %v988
      %v990 = vpop.f32.mrf.mxu0
      %v991 = vadd.f32 %v356, %v990
      %v992 = vpop.f32.mrf.mxu0
      %v993 = vadd.f32 %v360, %v992
      %994 = vmatprep.mubr.bf16.mxu0 %v684
      %995 = vmatmul.mubr.bf16.gmra.mxu0 %v459
      %v996 = vpop.f32.mrf.mxu0
      %v997 = vadd.f32 %v356, %v996
      %v998 = vpop.f32.mrf.mxu0
      %v999 = vadd.f32 %v360, %v998
      %v1000 = vpop.f32.mrf.mxu0
      %v1001 = vadd.f32 %v356, %v1000
      %v1002 = vpop.f32.mrf.mxu0
      %v1003 = vadd.f32 %v360, %v1002
      %1004 = vdwg.mxu0
      %v1005 = vmax.f32 %v734, 0.0
      %v1006 = vmax.f32 %v736, 0.0
      %v1007 = vmax.f32 %v887, 0.0
      %v1008 = vmax.f32 %v889, 0.0
      %v1009 = vmax.f32 %v738, 0.0
      %v1010 = vmax.f32 %v740, 0.0
      %v1011 = vmax.f32 %v891, 0.0
      %v1012 = vmax.f32 %v893, 0.0
      %v1013 = vmax.f32 %v744, 0.0
      %v1014 = vmax.f32 %v746, 0.0
      %v1015 = vmax.f32 %v897, 0.0
      %v1016 = vmax.f32 %v899, 0.0
      %v1017 = vmax.f32 %v748, 0.0
      %v1018 = vmax.f32 %v750, 0.0
      %v1019 = vmax.f32 %v901, 0.0
      %v1020 = vmax.f32 %v903, 0.0
      %v1021 = vmax.f32 %v754, 0.0
      %v1022 = vmax.f32 %v756, 0.0
      %v1023 = vmax.f32 %v907, 0.0
      %v1024 = vmax.f32 %v909, 0.0
      %v1025 = vmax.f32 %v758, 0.0
      %v1026 = vmax.f32 %v760, 0.0
      %v1027 = vmax.f32 %v911, 0.0
      %v1028 = vmax.f32 %v913, 0.0
      %v1029 = vmax.f32 %v764, 0.0
      %v1030 = vmax.f32 %v766, 0.0
      %v1031 = vmax.f32 %v917, 0.0
      %v1032 = vmax.f32 %v919, 0.0
      %v1033 = vmax.f32 %v768, 0.0
      %v1034 = vmax.f32 %v770, 0.0
      %v1035 = vmax.f32 %v921, 0.0
      %v1036 = vmax.f32 %v923, 0.0
      %v1037 = vmax.f32 %v774, 0.0
      %v1038 = vmax.f32 %v776, 0.0
      %v1039 = vmax.f32 %v927, 0.0
      %v1040 = vmax.f32 %v929, 0.0
      %v1041 = vmax.f32 %v778, 0.0
      %v1042 = vmax.f32 %v780, 0.0
      %v1043 = vmax.f32 %v931, 0.0
      %v1044 = vmax.f32 %v933, 0.0
      %v1045 = vmax.f32 %v784, 0.0
      %v1046 = vmax.f32 %v786, 0.0
      %v1047 = vmax.f32 %v937, 0.0
      %v1048 = vmax.f32 %v939, 0.0
      %v1049 = vmax.f32 %v788, 0.0
      %v1050 = vmax.f32 %v790, 0.0
      %v1051 = vmax.f32 %v941, 0.0
      %v1052 = vmax.f32 %v943, 0.0
      %v1053 = vmax.f32 %v794, 0.0
      %v1054 = vmax.f32 %v796, 0.0
      %v1055 = vmax.f32 %v947, 0.0
      %v1056 = vmax.f32 %v949, 0.0
      %v1057 = vmax.f32 %v798, 0.0
      %v1058 = vmax.f32 %v800, 0.0
      %v1059 = vmax.f32 %v951, 0.0
      %v1060 = vmax.f32 %v953, 0.0
      %v1061 = vmax.f32 %v804, 0.0
      %v1062 = vmax.f32 %v806, 0.0
      %v1063 = vmax.f32 %v957, 0.0
      %v1064 = vmax.f32 %v959, 0.0
      %v1065 = vmax.f32 %v808, 0.0
      %v1066 = vmax.f32 %v810, 0.0
      %v1067 = vmax.f32 %v961, 0.0
      %v1068 = vmax.f32 %v963, 0.0
      %v1069 = vmax.f32 %v814, 0.0
      %v1070 = vmax.f32 %v816, 0.0
      %v1071 = vmax.f32 %v967, 0.0
      %v1072 = vmax.f32 %v969, 0.0
      %v1073 = vmax.f32 %v818, 0.0
      %v1074 = vmax.f32 %v820, 0.0
      %v1075 = vmax.f32 %v971, 0.0
      %v1076 = vmax.f32 %v973, 0.0
      %v1077 = vmax.f32 %v824, 0.0
      %v1078 = vmax.f32 %v826, 0.0
      %v1079 = vmax.f32 %v977, 0.0
      %v1080 = vmax.f32 %v979, 0.0
      %v1081 = vmax.f32 %v828, 0.0
      %v1082 = vmax.f32 %v830, 0.0
      %v1083 = vmax.f32 %v981, 0.0
      %v1084 = vmax.f32 %v983, 0.0
      %v1085 = vmax.f32 %v834, 0.0
      %v1086 = vmax.f32 %v836, 0.0
      %v1087 = vmax.f32 %v987, 0.0
      %v1088 = vmax.f32 %v989, 0.0
      %v1089 = vmax.f32 %v838, 0.0
      %v1090 = vmax.f32 %v840, 0.0
      %v1091 = vmax.f32 %v991, 0.0
      %v1092 = vmax.f32 %v993, 0.0
      %v1093 = vmax.f32 %v844, 0.0
      %v1094 = vmax.f32 %v846, 0.0
      %v1095 = vmax.f32 %v997, 0.0
      %v1096 = vmax.f32 %v999, 0.0
      %v1097 = vmax.f32 %v848, 0.0
      %v1098 = vmax.f32 %v850, 0.0
      %v1099 = vmax.f32 %v1001, 0.0
      %v1100 = vmax.f32 %v1003, 0.0
      %v1101 = vmax.f32 %v1005, %v1007
      %v1102 = vmax.f32 %v1006, %v1008
      %v1103 = vmax.f32 %v1009, %v1011
      %v1104 = vmax.f32 %v1010, %v1012
      %v1105 = vmax.f32 %v1013, %v1015
      %v1106 = vmax.f32 %v1014, %v1016
      %v1107 = vmax.f32 %v1017, %v1019
      %v1108 = vmax.f32 %v1018, %v1020
      %v1109 = vmax.f32 %v1021, %v1023
      %v1110 = vmax.f32 %v1022, %v1024
      %v1111 = vmax.f32 %v1025, %v1027
      %v1112 = vmax.f32 %v1026, %v1028
      %v1113 = vmax.f32 %v1029, %v1031
      %v1114 = vmax.f32 %v1030, %v1032
      %v1115 = vmax.f32 %v1033, %v1035
      %v1116 = vmax.f32 %v1034, %v1036
      %v1117 = vmax.f32 %v1037, %v1039
      %v1118 = vmax.f32 %v1038, %v1040
      %v1119 = vmax.f32 %v1041, %v1043
      %v1120 = vmax.f32 %v1042, %v1044
      %v1121 = vmax.f32 %v1045, %v1047
      %v1122 = vmax.f32 %v1046, %v1048
      %v1123 = vmax.f32 %v1049, %v1051
      %v1124 = vmax.f32 %v1050, %v1052
      %v1125 = vmax.f32 %v1053, %v1055
      %v1126 = vmax.f32 %v1054, %v1056
      %v1127 = vmax.f32 %v1057, %v1059
      %v1128 = vmax.f32 %v1058, %v1060
      %v1129 = vmax.f32 %v1061, %v1063
      %v1130 = vmax.f32 %v1062, %v1064
      %v1131 = vmax.f32 %v1065, %v1067
      %v1132 = vmax.f32 %v1066, %v1068
      %v1133 = vmax.f32 %v1069, %v1071
      %v1134 = vmax.f32 %v1070, %v1072
      %v1135 = vmax.f32 %v1073, %v1075
      %v1136 = vmax.f32 %v1074, %v1076
      %v1137 = vmax.f32 %v1077, %v1079
      %v1138 = vmax.f32 %v1078, %v1080
      %v1139 = vmax.f32 %v1081, %v1083
      %v1140 = vmax.f32 %v1082, %v1084
      %v1141 = vmax.f32 %v1085, %v1087
      %v1142 = vmax.f32 %v1086, %v1088
      %v1143 = vmax.f32 %v1089, %v1091
      %v1144 = vmax.f32 %v1090, %v1092
      %v1145 = vmax.f32 %v1093, %v1095
      %v1146 = vmax.f32 %v1094, %v1096
      %v1147 = vmax.f32 %v1097, %v1099
      %v1148 = vmax.f32 %v1098, %v1100
      %v1149 = vmax.f32 %v1101, %v1103
      %v1150 = vmax.f32 %v1102, %v1104
      %v1151 = vpack.c.bf16 %v1149, %v1149
      %v1152 = vpack.c.bf16 %v1150, %v1150
      %v1153 = vld [vmem:[%s3] sm:$0xff]
      %v1154 = vld [vmem:[%s3 + $0x8] sm:$0xff]
      %v1155 = vld [vmem:[%s3 + $0x10] sm:$0xff]
      %v1156 = vld [vmem:[%s3 + $0x18] sm:$0xff]
      %v1157 = vld [vmem:[%s3 + $0x20] sm:$0xff]
      %v1158 = vld [vmem:[%s3 + $0x28] sm:$0xff]
      %v1159 = vld [vmem:[%s3 + $0x30] sm:$0xff]
      %v1160 = vld [vmem:[%s3 + $0x38] sm:$0xff]
      %v1161 = vld [vmem:[%s3 + $0x40] sm:$0xff]
      %v1162 = vld [vmem:[%s3 + $0x48] sm:$0xff]
      %v1163 = vld [vmem:[%s3 + $0x50] sm:$0xff]
      %v1164 = vld [vmem:[%s3 + $0x58] sm:$0xff]
      %v1165 = vld [vmem:[%s3 + $0x60] sm:$0xff]
      %v1166 = vld [vmem:[%s3 + $0x68] sm:$0xff]
      %v1167 = vld [vmem:[%s3 + $0x70] sm:$0xff]
      %v1168 = vld [vmem:[%s3 + $0x78] sm:$0xff]
      %v1169 = vld [vmem:[%s3 + $0x80] sm:$0xff]
      %v1170 = vld [vmem:[%s3 + $0x88] sm:$0xff]
      %v1171 = vld [vmem:[%s3 + $0x90] sm:$0xff]
      %v1172 = vld [vmem:[%s3 + $0x98] sm:$0xff]
      %v1173 = vld [vmem:[%s3 + $0xa0] sm:$0xff]
      %v1174 = vld [vmem:[%s3 + $0xa8] sm:$0xff]
      %v1175 = vld [vmem:[%s3 + $0xb0] sm:$0xff]
      %v1176 = vld [vmem:[%s3 + $0xb8] sm:$0xff]
      %v1177 = vld [vmem:[%s3 + $0xc0] sm:$0xff]
      %v1178 = vld [vmem:[%s3 + $0xc8] sm:$0xff]
      %v1179 = vld [vmem:[%s3 + $0xd0] sm:$0xff]
      %v1180 = vld [vmem:[%s3 + $0xd8] sm:$0xff]
      %v1181 = vld [vmem:[%s3 + $0xe0] sm:$0xff]
      %v1182 = vld [vmem:[%s3 + $0xe8] sm:$0xff]
      %v1183 = vld [vmem:[%s3 + $0xf0] sm:$0xff]
      %v1184 = vld [vmem:[%s3 + $0xf8] sm:$0xff]
      %v1185 = vld [vmem:[%s3 + $0x100] sm:$0xff]
      %v1186 = vld [vmem:[%s3 + $0x108] sm:$0xff]
      %v1187 = vld [vmem:[%s3 + $0x110] sm:$0xff]
      %v1188 = vld [vmem:[%s3 + $0x118] sm:$0xff]
      %v1189 = vld [vmem:[%s3 + $0x120] sm:$0xff]
      %v1190 = vld [vmem:[%s3 + $0x128] sm:$0xff]
      %v1191 = vld [vmem:[%s3 + $0x130] sm:$0xff]
      %v1192 = vld [vmem:[%s3 + $0x138] sm:$0xff]
      %v1193 = vld [vmem:[%s3 + $0x140] sm:$0xff]
      %v1194 = vld [vmem:[%s3 + $0x148] sm:$0xff]
      %v1195 = vld [vmem:[%s3 + $0x150] sm:$0xff]
      %v1196 = vld [vmem:[%s3 + $0x158] sm:$0xff]
      %v1197 = vld [vmem:[%s3 + $0x160] sm:$0xff]
      %v1198 = vld [vmem:[%s3 + $0x168] sm:$0xff]
      %v1199 = vld [vmem:[%s3 + $0x170] sm:$0xff]
      %v1200 = vld [vmem:[%s3 + $0x178] sm:$0xff]
      %v1201 = vld [vmem:[%s3 + $0x180] sm:$0xff]
      %v1202 = vld [vmem:[%s3 + $0x188] sm:$0xff]
      %v1203 = vld [vmem:[%s3 + $0x190] sm:$0xff]
      %v1204 = vld [vmem:[%s3 + $0x198] sm:$0xff]
      %v1205 = vld [vmem:[%s3 + $0x1a0] sm:$0xff]
      %v1206 = vld [vmem:[%s3 + $0x1a8] sm:$0xff]
      %v1207 = vld [vmem:[%s3 + $0x1b0] sm:$0xff]
      %v1208 = vld [vmem:[%s3 + $0x1b8] sm:$0xff]
      %v1209 = vld [vmem:[%s3 + $0x1c0] sm:$0xff]
      %v1210 = vld [vmem:[%s3 + $0x1c8] sm:$0xff]
      %v1211 = vld [vmem:[%s3 + $0x1d0] sm:$0xff]
      %v1212 = vld [vmem:[%s3 + $0x1d8] sm:$0xff]
      %v1213 = vld [vmem:[%s3 + $0x1e0] sm:$0xff]
      %v1214 = vld [vmem:[%s3 + $0x1e8] sm:$0xff]
      %v1215 = vld [vmem:[%s3 + $0x1f0] sm:$0xff]
      %v1216 = vld [vmem:[%s3 + $0x1f8] sm:$0xff]
      %v1217 = vmax.f32 %v1105, %v1107
      %v1218 = vmax.f32 %v1106, %v1108
      %v1219 = vpack.c.bf16 %v1217, %v1217
      %v1220 = vpack.c.bf16 %v1218, %v1218
      %s1221 = scalar_lea.vmem %s3, 512
      %v1222 = vld [vmem:[%s1221] sm:$0xff]
      %v1223 = vld [vmem:[%s1221 + $0x8] sm:$0xff]
      %v1224 = vld [vmem:[%s1221 + $0x10] sm:$0xff]
      %v1225 = vld [vmem:[%s1221 + $0x18] sm:$0xff]
      %v1226 = vld [vmem:[%s1221 + $0x20] sm:$0xff]
      %v1227 = vld [vmem:[%s1221 + $0x28] sm:$0xff]
      %v1228 = vld [vmem:[%s1221 + $0x30] sm:$0xff]
      %v1229 = vld [vmem:[%s1221 + $0x38] sm:$0xff]
      %v1230 = vld [vmem:[%s1221 + $0x40] sm:$0xff]
      %v1231 = vld [vmem:[%s1221 + $0x48] sm:$0xff]
      %v1232 = vld [vmem:[%s1221 + $0x50] sm:$0xff]
      %v1233 = vld [vmem:[%s1221 + $0x58] sm:$0xff]
      %v1234 = vld [vmem:[%s1221 + $0x60] sm:$0xff]
      %v1235 = vld [vmem:[%s1221 + $0x68] sm:$0xff]
      %v1236 = vld [vmem:[%s1221 + $0x70] sm:$0xff]
      %v1237 = vld [vmem:[%s1221 + $0x78] sm:$0xff]
      %v1238 = vld [vmem:[%s1221 + $0x80] sm:$0xff]
      %v1239 = vld [vmem:[%s1221 + $0x88] sm:$0xff]
      %v1240 = vld [vmem:[%s1221 + $0x90] sm:$0xff]
      %v1241 = vld [vmem:[%s1221 + $0x98] sm:$0xff]
      %v1242 = vld [vmem:[%s1221 + $0xa0] sm:$0xff]
      %v1243 = vld [vmem:[%s1221 + $0xa8] sm:$0xff]
      %v1244 = vld [vmem:[%s1221 + $0xb0] sm:$0xff]
      %v1245 = vld [vmem:[%s1221 + $0xb8] sm:$0xff]
      %v1246 = vld [vmem:[%s1221 + $0xc0] sm:$0xff]
      %v1247 = vld [vmem:[%s1221 + $0xc8] sm:$0xff]
      %v1248 = vld [vmem:[%s1221 + $0xd0] sm:$0xff]
      %v1249 = vld [vmem:[%s1221 + $0xd8] sm:$0xff]
      %v1250 = vld [vmem:[%s1221 + $0xe0] sm:$0xff]
      %v1251 = vld [vmem:[%s1221 + $0xe8] sm:$0xff]
      %v1252 = vld [vmem:[%s1221 + $0xf0] sm:$0xff]
      %v1253 = vld [vmem:[%s1221 + $0xf8] sm:$0xff]
      %v1254 = vld [vmem:[%s1221 + $0x100] sm:$0xff]
      %v1255 = vld [vmem:[%s1221 + $0x108] sm:$0xff]
      %v1256 = vld [vmem:[%s1221 + $0x110] sm:$0xff]
      %v1257 = vld [vmem:[%s1221 + $0x118] sm:$0xff]
      %v1258 = vld [vmem:[%s1221 + $0x120] sm:$0xff]
      %v1259 = vld [vmem:[%s1221 + $0x128] sm:$0xff]
      %v1260 = vld [vmem:[%s1221 + $0x130] sm:$0xff]
      %v1261 = vld [vmem:[%s1221 + $0x138] sm:$0xff]
      %v1262 = vld [vmem:[%s1221 + $0x140] sm:$0xff]
      %v1263 = vld [vmem:[%s1221 + $0x148] sm:$0xff]
      %v1264 = vld [vmem:[%s1221 + $0x150] sm:$0xff]
      %v1265 = vld [vmem:[%s1221 + $0x158] sm:$0xff]
      %v1266 = vld [vmem:[%s1221 + $0x160] sm:$0xff]
      %v1267 = vld [vmem:[%s1221 + $0x168] sm:$0xff]
      %v1268 = vld [vmem:[%s1221 + $0x170] sm:$0xff]
      %v1269 = vld [vmem:[%s1221 + $0x178] sm:$0xff]
      %v1270 = vld [vmem:[%s1221 + $0x180] sm:$0xff]
      %v1271 = vld [vmem:[%s1221 + $0x188] sm:$0xff]
      %v1272 = vld [vmem:[%s1221 + $0x190] sm:$0xff]
      %v1273 = vld [vmem:[%s1221 + $0x198] sm:$0xff]
      %v1274 = vld [vmem:[%s1221 + $0x1a0] sm:$0xff]
      %v1275 = vld [vmem:[%s1221 + $0x1a8] sm:$0xff]
      %v1276 = vld [vmem:[%s1221 + $0x1b0] sm:$0xff]
      %v1277 = vld [vmem:[%s1221 + $0x1b8] sm:$0xff]
      %v1278 = vld [vmem:[%s1221 + $0x1c0] sm:$0xff]
      %v1279 = vld [vmem:[%s1221 + $0x1c8] sm:$0xff]
      %v1280 = vld [vmem:[%s1221 + $0x1d0] sm:$0xff]
      %v1281 = vld [vmem:[%s1221 + $0x1d8] sm:$0xff]
      %v1282 = vld [vmem:[%s1221 + $0x1e0] sm:$0xff]
      %v1283 = vld [vmem:[%s1221 + $0x1e8] sm:$0xff]
      %v1284 = vld [vmem:[%s1221 + $0x1f0] sm:$0xff]
      %v1285 = vld [vmem:[%s1221 + $0x1f8] sm:$0xff]
      %v1350 = vunpack.c.l.b16 %v1222
      %v1351 = vunpack.c.h.b16 %v1222
      %v1352 = vunpack.c.l.b16 %v1223
      %v1353 = vunpack.c.h.b16 %v1223
      %v1354 = vunpack.c.l.b16 %v1224
      %v1355 = vunpack.c.h.b16 %v1224
      %v1356 = vunpack.c.l.b16 %v1225
      %v1357 = vunpack.c.h.b16 %v1225
      %v1358 = vunpack.c.l.b16 %v1226
      %v1359 = vunpack.c.h.b16 %v1226
      %v1360 = vunpack.c.l.b16 %v1227
      %v1361 = vunpack.c.h.b16 %v1227
      %v1362 = vunpack.c.l.b16 %v1228
      %v1363 = vunpack.c.h.b16 %v1228
      %v1364 = vunpack.c.l.b16 %v1229
      %v1365 = vunpack.c.h.b16 %v1229
      %v1366 = vunpack.c.l.b16 %v1230
      %v1367 = vunpack.c.h.b16 %v1230
      %v1368 = vunpack.c.l.b16 %v1231
      %v1369 = vunpack.c.h.b16 %v1231
      %v1370 = vunpack.c.l.b16 %v1232
      %v1371 = vunpack.c.h.b16 %v1232
      %v1372 = vunpack.c.l.b16 %v1233
      %v1373 = vunpack.c.h.b16 %v1233
      %v1374 = vunpack.c.l.b16 %v1234
      %v1375 = vunpack.c.h.b16 %v1234
      %v1376 = vunpack.c.l.b16 %v1235
      %v1377 = vunpack.c.h.b16 %v1235
      %v1378 = vunpack.c.l.b16 %v1236
      %v1379 = vunpack.c.h.b16 %v1236
      %v1380 = vunpack.c.l.b16 %v1237
      %v1381 = vunpack.c.h.b16 %v1237
      %v1382 = vunpack.c.l.b16 %v1238
      %v1383 = vunpack.c.h.b16 %v1238
      %v1384 = vunpack.c.l.b16 %v1239
      %v1385 = vunpack.c.h.b16 %v1239
      %v1386 = vunpack.c.l.b16 %v1240
      %v1387 = vunpack.c.h.b16 %v1240
      %v1388 = vunpack.c.l.b16 %v1241
      %v1389 = vunpack.c.h.b16 %v1241
      %v1390 = vunpack.c.l.b16 %v1242
      %v1391 = vunpack.c.h.b16 %v1242
      %v1392 = vunpack.c.l.b16 %v1243
      %v1393 = vunpack.c.h.b16 %v1243
      %v1394 = vunpack.c.l.b16 %v1244
      %v1395 = vunpack.c.h.b16 %v1244
      %v1396 = vunpack.c.l.b16 %v1245
      %v1397 = vunpack.c.h.b16 %v1245
      %v1398 = vunpack.c.l.b16 %v1246
      %v1399 = vunpack.c.h.b16 %v1246
      %v1400 = vunpack.c.l.b16 %v1247
      %v1401 = vunpack.c.h.b16 %v1247
      %v1402 = vunpack.c.l.b16 %v1248
      %v1403 = vunpack.c.h.b16 %v1248
      %v1404 = vunpack.c.l.b16 %v1249
      %v1405 = vunpack.c.h.b16 %v1249
      %v1406 = vunpack.c.l.b16 %v1250
      %v1407 = vunpack.c.h.b16 %v1250
      %v1408 = vunpack.c.l.b16 %v1251
      %v1409 = vunpack.c.h.b16 %v1251
      %v1410 = vunpack.c.l.b16 %v1252
      %v1411 = vunpack.c.h.b16 %v1252
      %v1412 = vunpack.c.l.b16 %v1253
      %v1413 = vunpack.c.h.b16 %v1253
      %v1414 = vunpack.c.l.b16 %v1254
      %v1415 = vunpack.c.h.b16 %v1254
      %v1416 = vunpack.c.l.b16 %v1255
      %v1417 = vunpack.c.h.b16 %v1255
      %v1418 = vunpack.c.l.b16 %v1256
      %v1419 = vunpack.c.h.b16 %v1256
      %v1420 = vunpack.c.l.b16 %v1257
      %v1421 = vunpack.c.h.b16 %v1257
      %v1422 = vunpack.c.l.b16 %v1258
      %v1423 = vunpack.c.h.b16 %v1258
      %v1424 = vunpack.c.l.b16 %v1259
      %v1425 = vunpack.c.h.b16 %v1259
      %v1426 = vunpack.c.l.b16 %v1260
      %v1427 = vunpack.c.h.b16 %v1260
      %v1428 = vunpack.c.l.b16 %v1261
      %v1429 = vunpack.c.h.b16 %v1261
      %v1430 = vunpack.c.l.b16 %v1262
      %v1431 = vunpack.c.h.b16 %v1262
      %v1432 = vunpack.c.l.b16 %v1263
      %v1433 = vunpack.c.h.b16 %v1263
      %v1434 = vunpack.c.l.b16 %v1264
      %v1435 = vunpack.c.h.b16 %v1264
      %v1436 = vunpack.c.l.b16 %v1265
      %v1437 = vunpack.c.h.b16 %v1265
      %v1438 = vunpack.c.l.b16 %v1266
      %v1439 = vunpack.c.h.b16 %v1266
      %v1440 = vunpack.c.l.b16 %v1267
      %v1441 = vunpack.c.h.b16 %v1267
      %v1442 = vunpack.c.l.b16 %v1268
      %v1443 = vunpack.c.h.b16 %v1268
      %v1444 = vunpack.c.l.b16 %v1269
      %v1445 = vunpack.c.h.b16 %v1269
      %v1446 = vunpack.c.l.b16 %v1270
      %v1447 = vunpack.c.h.b16 %v1270
      %v1448 = vunpack.c.l.b16 %v1271
      %v1449 = vunpack.c.h.b16 %v1271
      %v1450 = vunpack.c.l.b16 %v1272
      %v1451 = vunpack.c.h.b16 %v1272
      %v1452 = vunpack.c.l.b16 %v1273
      %v1453 = vunpack.c.h.b16 %v1273
      %v1454 = vunpack.c.l.b16 %v1274
      %v1455 = vunpack.c.h.b16 %v1274
      %v1456 = vunpack.c.l.b16 %v1275
      %v1457 = vunpack.c.h.b16 %v1275
      %v1458 = vunpack.c.l.b16 %v1276
      %v1459 = vunpack.c.h.b16 %v1276
      %v1460 = vunpack.c.l.b16 %v1277
      %v1461 = vunpack.c.h.b16 %v1277
      %v1462 = vunpack.c.l.b16 %v1278
      %v1463 = vunpack.c.h.b16 %v1278
      %v1464 = vunpack.c.l.b16 %v1279
      %v1465 = vunpack.c.h.b16 %v1279
      %v1466 = vunpack.c.l.b16 %v1280
      %v1467 = vunpack.c.h.b16 %v1280
      %v1468 = vunpack.c.l.b16 %v1281
      %v1469 = vunpack.c.h.b16 %v1281
      %v1470 = vunpack.c.l.b16 %v1282
      %v1471 = vunpack.c.h.b16 %v1282
      %v1472 = vunpack.c.l.b16 %v1283
      %v1473 = vunpack.c.h.b16 %v1283
      %v1474 = vunpack.c.l.b16 %v1284
      %v1475 = vunpack.c.h.b16 %v1284
      %v1476 = vunpack.c.l.b16 %v1285
      %v1477 = vunpack.c.h.b16 %v1285
      %v1478 = vpack.c.b16 %v1354, %v1350
      %v1479 = vpack.c.b16 %v1355, %v1351
      %v1480 = vpack.c.b16 %v1356, %v1352
      %v1481 = vpack.c.b16 %v1357, %v1353
      %v1482 = vpack.c.b16 %v1362, %v1358
      %v1483 = vpack.c.b16 %v1363, %v1359
      %v1484 = vpack.c.b16 %v1364, %v1360
      %v1485 = vpack.c.b16 %v1365, %v1361
      %v1486 = vpack.c.b16 %v1370, %v1366
      %v1487 = vpack.c.b16 %v1371, %v1367
      %v1488 = vpack.c.b16 %v1372, %v1368
      %v1489 = vpack.c.b16 %v1373, %v1369
      %v1490 = vpack.c.b16 %v1378, %v1374
      %v1491 = vpack.c.b16 %v1379, %v1375
      %v1492 = vpack.c.b16 %v1380, %v1376
      %v1493 = vpack.c.b16 %v1381, %v1377
      %v1494 = vpack.c.b16 %v1386, %v1382
      %v1495 = vpack.c.b16 %v1387, %v1383
      %v1496 = vpack.c.b16 %v1388, %v1384
      %v1497 = vpack.c.b16 %v1389, %v1385
      %v1498 = vpack.c.b16 %v1394, %v1390
      %v1499 = vpack.c.b16 %v1395, %v1391
      %v1500 = vpack.c.b16 %v1396, %v1392
      %v1501 = vpack.c.b16 %v1397, %v1393
      %v1502 = vpack.c.b16 %v1402, %v1398
      %v1503 = vpack.c.b16 %v1403, %v1399
      %v1504 = vpack.c.b16 %v1404, %v1400
      %v1505 = vpack.c.b16 %v1405, %v1401
      %v1506 = vpack.c.b16 %v1410, %v1406
      %v1507 = vpack.c.b16 %v1411, %v1407
      %v1508 = vpack.c.b16 %v1412, %v1408
      %v1509 = vpack.c.b16 %v1413, %v1409
      %v1510 = vpack.c.b16 %v1418, %v1414
      %v1511 = vpack.c.b16 %v1419, %v1415
      %v1512 = vpack.c.b16 %v1420, %v1416
      %v1513 = vpack.c.b16 %v1421, %v1417
      %v1514 = vpack.c.b16 %v1426, %v1422
      %v1515 = vpack.c.b16 %v1427, %v1423
      %v1516 = vpack.c.b16 %v1428, %v1424
      %v1517 = vpack.c.b16 %v1429, %v1425
      %v1518 = vpack.c.b16 %v1434, %v1430
      %v1519 = vpack.c.b16 %v1435, %v1431
      %v1520 = vpack.c.b16 %v1436, %v1432
      %v1521 = vpack.c.b16 %v1437, %v1433
      %v1522 = vpack.c.b16 %v1442, %v1438
      %v1523 = vpack.c.b16 %v1443, %v1439
      %v1524 = vpack.c.b16 %v1444, %v1440
      %v1525 = vpack.c.b16 %v1445, %v1441
      %v1526 = vpack.c.b16 %v1450, %v1446
      %v1527 = vpack.c.b16 %v1451, %v1447
      %v1528 = vpack.c.b16 %v1452, %v1448
      %v1529 = vpack.c.b16 %v1453, %v1449
      %v1530 = vpack.c.b16 %v1458, %v1454
      %v1531 = vpack.c.b16 %v1459, %v1455
      %v1532 = vpack.c.b16 %v1460, %v1456
      %v1533 = vpack.c.b16 %v1461, %v1457
      %v1534 = vpack.c.b16 %v1466, %v1462
      %v1535 = vpack.c.b16 %v1467, %v1463
      %v1536 = vpack.c.b16 %v1468, %v1464
      %v1537 = vpack.c.b16 %v1469, %v1465
      %v1538 = vpack.c.b16 %v1474, %v1470
      %v1539 = vpack.c.b16 %v1475, %v1471
      %v1540 = vpack.c.b16 %v1476, %v1472
      %v1541 = vpack.c.b16 %v1477, %v1473
      %1606 = vmatprep.subr.bf16.mxu0 %v1507
      %1607 = vmatpush1.bf16.msra.mxu0 %v1506
      %1608 = vmatprep.subr.bf16.mxu0 %v1503
      %1609 = vmatpush1.bf16.msra.mxu0 %v1502
      %1610 = vmatprep.subr.bf16.mxu0 %v1499
      %1611 = vmatpush1.bf16.msra.mxu0 %v1498
      %1612 = vmatprep.subr.bf16.mxu0 %v1495
      %1613 = vmatpush1.bf16.msra.mxu0 %v1494
      %1614 = vmatprep.subr.bf16.mxu0 %v1491
      %1615 = vmatpush1.bf16.msra.mxu0 %v1490
      %1616 = vmatprep.subr.bf16.mxu0 %v1487
      %1617 = vmatpush1.bf16.msra.mxu0 %v1486
      %1618 = vmatprep.subr.bf16.mxu0 %v1483
      %1619 = vmatpush1.bf16.msra.mxu0 %v1482
      %1620 = vmatprep.subr.bf16.mxu0 %v1479
      %1621 = vmatpush1.bf16.msra.mxu0 %v1478
      %1622 = vmatprep.subr.bf16.mxu0 %v1539
      %1623 = vmatpush2.bf16.msra.mxu0 %v1538
      %1624 = vmatprep.subr.bf16.mxu0 %v1535
      %1625 = vmatpush2.bf16.msra.mxu0 %v1534
      %1626 = vmatprep.subr.bf16.mxu0 %v1531
      %1627 = vmatpush2.bf16.msra.mxu0 %v1530
      %1628 = vmatprep.subr.bf16.mxu0 %v1527
      %1629 = vmatpush2.bf16.msra.mxu0 %v1526
      %1630 = vmatprep.subr.bf16.mxu0 %v1523
      %1631 = vmatpush2.bf16.msra.mxu0 %v1522
      %1632 = vmatprep.subr.bf16.mxu0 %v1519
      %1633 = vmatpush2.bf16.msra.mxu0 %v1518
      %1634 = vmatprep.subr.bf16.mxu0 %v1515
      %1635 = vmatpush2.bf16.msra.mxu0 %v1514
      %1636 = vmatprep.subr.bf16.mxu0 %v1511
      %1637 = vmatpush2.bf16.msra.mxu0 %v1510
      %1638 = vmatprep.mubr.bf16.mxu0 %v1220
      %1639 = vmatmul.mubr.bf16.gmra.mxu0 %v1219
      %v1640 = vpop.f32.mrf.mxu0
      %v1641 = vadd.f32 0.0, %v1640
      %v1642 = vpop.f32.mrf.mxu0
      %v1643 = vadd.f32 0.0, %v1642
      %v1644 = vpop.f32.mrf.mxu0
      %v1645 = vpop.f32.mrf.mxu0
      %1646 = vdwg.mxu0
      %1647 = vmatprep.subr.bf16.mxu0 %v1509
      %1648 = vmatpush1.bf16.msra.mxu0 %v1508
      %1649 = vmatprep.subr.bf16.mxu0 %v1505
      %1650 = vmatpush1.bf16.msra.mxu0 %v1504
      %1651 = vmatprep.subr.bf16.mxu0 %v1501
      %1652 = vmatpush1.bf16.msra.mxu0 %v1500
      %1653 = vmatprep.subr.bf16.mxu0 %v1497
      %1654 = vmatpush1.bf16.msra.mxu0 %v1496
      %1655 = vmatprep.subr.bf16.mxu0 %v1493
      %1656 = vmatpush1.bf16.msra.mxu0 %v1492
      %1657 = vmatprep.subr.bf16.mxu0 %v1489
      %1658 = vmatpush1.bf16.msra.mxu0 %v1488
      %1659 = vmatprep.subr.bf16.mxu0 %v1485
      %1660 = vmatpush1.bf16.msra.mxu0 %v1484
      %1661 = vmatprep.subr.bf16.mxu0 %v1481
      %1662 = vmatpush1.bf16.msra.mxu0 %v1480
      %1663 = vmatprep.subr.bf16.mxu0 %v1541
      %1664 = vmatpush2.bf16.msra.mxu0 %v1540
      %1665 = vmatprep.subr.bf16.mxu0 %v1537
      %1666 = vmatpush2.bf16.msra.mxu0 %v1536
      %1667 = vmatprep.subr.bf16.mxu0 %v1533
      %1668 = vmatpush2.bf16.msra.mxu0 %v1532
      %1669 = vmatprep.subr.bf16.mxu0 %v1529
      %1670 = vmatpush2.bf16.msra.mxu0 %v1528
      %1671 = vmatprep.subr.bf16.mxu0 %v1525
      %1672 = vmatpush2.bf16.msra.mxu0 %v1524
      %1673 = vmatprep.subr.bf16.mxu0 %v1521
      %1674 = vmatpush2.bf16.msra.mxu0 %v1520
      %1675 = vmatprep.subr.bf16.mxu0 %v1517
      %1676 = vmatpush2.bf16.msra.mxu0 %v1516
      %1677 = vmatprep.subr.bf16.mxu0 %v1513
      %1678 = vmatpush2.bf16.msra.mxu0 %v1512
      %1679 = vmatprep.mubr.bf16.mxu0 %v1220
      %1680 = vmatmul.mubr.bf16.gmra.mxu0 %v1219
      %v1681 = vpop.f32.mrf.mxu0
      %v1682 = vadd.f32 0.0, %v1681
      %v1683 = vpop.f32.mrf.mxu0
      %v1684 = vadd.f32 0.0, %v1683
      %v1685 = vpop.f32.mrf.mxu0
      %v1686 = vpop.f32.mrf.mxu0
      %1687 = vdwg.mxu0
      %v1752 = vunpack.c.l.b16 %v1153
      %v1753 = vunpack.c.h.b16 %v1153
      %v1754 = vunpack.c.l.b16 %v1154
      %v1755 = vunpack.c.h.b16 %v1154
      %v1756 = vunpack.c.l.b16 %v1155
      %v1757 = vunpack.c.h.b16 %v1155
      %v1758 = vunpack.c.l.b16 %v1156
      %v1759 = vunpack.c.h.b16 %v1156
      %v1760 = vunpack.c.l.b16 %v1157
      %v1761 = vunpack.c.h.b16 %v1157
      %v1762 = vunpack.c.l.b16 %v1158
      %v1763 = vunpack.c.h.b16 %v1158
      %v1764 = vunpack.c.l.b16 %v1159
      %v1765 = vunpack.c.h.b16 %v1159
      %v1766 = vunpack.c.l.b16 %v1160
      %v1767 = vunpack.c.h.b16 %v1160
      %v1768 = vunpack.c.l.b16 %v1161
      %v1769 = vunpack.c.h.b16 %v1161
      %v1770 = vunpack.c.l.b16 %v1162
      %v1771 = vunpack.c.h.b16 %v1162
      %v1772 = vunpack.c.l.b16 %v1163
      %v1773 = vunpack.c.h.b16 %v1163
      %v1774 = vunpack.c.l.b16 %v1164
      %v1775 = vunpack.c.h.b16 %v1164
      %v1776 = vunpack.c.l.b16 %v1165
      %v1777 = vunpack.c.h.b16 %v1165
      %v1778 = vunpack.c.l.b16 %v1166
      %v1779 = vunpack.c.h.b16 %v1166
      %v1780 = vunpack.c.l.b16 %v1167
      %v1781 = vunpack.c.h.b16 %v1167
      %v1782 = vunpack.c.l.b16 %v1168
      %v1783 = vunpack.c.h.b16 %v1168
      %v1784 = vunpack.c.l.b16 %v1169
      %v1785 = vunpack.c.h.b16 %v1169
      %v1786 = vunpack.c.l.b16 %v1170
      %v1787 = vunpack.c.h.b16 %v1170
      %v1788 = vunpack.c.l.b16 %v1171
      %v1789 = vunpack.c.h.b16 %v1171
      %v1790 = vunpack.c.l.b16 %v1172
      %v1791 = vunpack.c.h.b16 %v1172
      %v1792 = vunpack.c.l.b16 %v1173
      %v1793 = vunpack.c.h.b16 %v1173
      %v1794 = vunpack.c.l.b16 %v1174
      %v1795 = vunpack.c.h.b16 %v1174
      %v1796 = vunpack.c.l.b16 %v1175
      %v1797 = vunpack.c.h.b16 %v1175
      %v1798 = vunpack.c.l.b16 %v1176
      %v1799 = vunpack.c.h.b16 %v1176
      %v1800 = vunpack.c.l.b16 %v1177
      %v1801 = vunpack.c.h.b16 %v1177
      %v1802 = vunpack.c.l.b16 %v1178
      %v1803 = vunpack.c.h.b16 %v1178
      %v1804 = vunpack.c.l.b16 %v1179
      %v1805 = vunpack.c.h.b16 %v1179
      %v1806 = vunpack.c.l.b16 %v1180
      %v1807 = vunpack.c.h.b16 %v1180
      %v1808 = vunpack.c.l.b16 %v1181
      %v1809 = vunpack.c.h.b16 %v1181
      %v1810 = vunpack.c.l.b16 %v1182
      %v1811 = vunpack.c.h.b16 %v1182
      %v1812 = vunpack.c.l.b16 %v1183
      %v1813 = vunpack.c.h.b16 %v1183
      %v1814 = vunpack.c.l.b16 %v1184
      %v1815 = vunpack.c.h.b16 %v1184
      %v1816 = vunpack.c.l.b16 %v1185
      %v1817 = vunpack.c.h.b16 %v1185
      %v1818 = vunpack.c.l.b16 %v1186
      %v1819 = vunpack.c.h.b16 %v1186
      %v1820 = vunpack.c.l.b16 %v1187
      %v1821 = vunpack.c.h.b16 %v1187
      %v1822 = vunpack.c.l.b16 %v1188
      %v1823 = vunpack.c.h.b16 %v1188
      %v1824 = vunpack.c.l.b16 %v1189
      %v1825 = vunpack.c.h.b16 %v1189
      %v1826 = vunpack.c.l.b16 %v1190
      %v1827 = vunpack.c.h.b16 %v1190
      %v1828 = vunpack.c.l.b16 %v1191
      %v1829 = vunpack.c.h.b16 %v1191
      %v1830 = vunpack.c.l.b16 %v1192
      %v1831 = vunpack.c.h.b16 %v1192
      %v1832 = vunpack.c.l.b16 %v1193
      %v1833 = vunpack.c.h.b16 %v1193
      %v1834 = vunpack.c.l.b16 %v1194
      %v1835 = vunpack.c.h.b16 %v1194
      %v1836 = vunpack.c.l.b16 %v1195
      %v1837 = vunpack.c.h.b16 %v1195
      %v1838 = vunpack.c.l.b16 %v1196
      %v1839 = vunpack.c.h.b16 %v1196
      %v1840 = vunpack.c.l.b16 %v1197
      %v1841 = vunpack.c.h.b16 %v1197
      %v1842 = vunpack.c.l.b16 %v1198
      %v1843 = vunpack.c.h.b16 %v1198
      %v1844 = vunpack.c.l.b16 %v1199
      %v1845 = vunpack.c.h.b16 %v1199
      %v1846 = vunpack.c.l.b16 %v1200
      %v1847 = vunpack.c.h.b16 %v1200
      %v1848 = vunpack.c.l.b16 %v1201
      %v1849 = vunpack.c.h.b16 %v1201
      %v1850 = vunpack.c.l.b16 %v1202
      %v1851 = vunpack.c.h.b16 %v1202
      %v1852 = vunpack.c.l.b16 %v1203
      %v1853 = vunpack.c.h.b16 %v1203
      %v1854 = vunpack.c.l.b16 %v1204
      %v1855 = vunpack.c.h.b16 %v1204
      %v1856 = vunpack.c.l.b16 %v1205
      %v1857 = vunpack.c.h.b16 %v1205
      %v1858 = vunpack.c.l.b16 %v1206
      %v1859 = vunpack.c.h.b16 %v1206
      %v1860 = vunpack.c.l.b16 %v1207
      %v1861 = vunpack.c.h.b16 %v1207
      %v1862 = vunpack.c.l.b16 %v1208
      %v1863 = vunpack.c.h.b16 %v1208
      %v1864 = vunpack.c.l.b16 %v1209
      %v1865 = vunpack.c.h.b16 %v1209
      %v1866 = vunpack.c.l.b16 %v1210
      %v1867 = vunpack.c.h.b16 %v1210
      %v1868 = vunpack.c.l.b16 %v1211
      %v1869 = vunpack.c.h.b16 %v1211
      %v1870 = vunpack.c.l.b16 %v1212
      %v1871 = vunpack.c.h.b16 %v1212
      %v1872 = vunpack.c.l.b16 %v1213
      %v1873 = vunpack.c.h.b16 %v1213
      %v1874 = vunpack.c.l.b16 %v1214
      %v1875 = vunpack.c.h.b16 %v1214
      %v1876 = vunpack.c.l.b16 %v1215
      %v1877 = vunpack.c.h.b16 %v1215
      %v1878 = vunpack.c.l.b16 %v1216
      %v1879 = vunpack.c.h.b16 %v1216
      %v1880 = vpack.c.b16 %v1756, %v1752
      %v1881 = vpack.c.b16 %v1757, %v1753
      %v1882 = vpack.c.b16 %v1758, %v1754
      %v1883 = vpack.c.b16 %v1759, %v1755
      %v1884 = vpack.c.b16 %v1764, %v1760
      %v1885 = vpack.c.b16 %v1765, %v1761
      %v1886 = vpack.c.b16 %v1766, %v1762
      %v1887 = vpack.c.b16 %v1767, %v1763
      %v1888 = vpack.c.b16 %v1772, %v1768
      %v1889 = vpack.c.b16 %v1773, %v1769
      %v1890 = vpack.c.b16 %v1774, %v1770
      %v1891 = vpack.c.b16 %v1775, %v1771
      %v1892 = vpack.c.b16 %v1780, %v1776
      %v1893 = vpack.c.b16 %v1781, %v1777
      %v1894 = vpack.c.b16 %v1782, %v1778
      %v1895 = vpack.c.b16 %v1783, %v1779
      %v1896 = vpack.c.b16 %v1788, %v1784
      %v1897 = vpack.c.b16 %v1789, %v1785
      %v1898 = vpack.c.b16 %v1790, %v1786
      %v1899 = vpack.c.b16 %v1791, %v1787
      %v1900 = vpack.c.b16 %v1796, %v1792
      %v1901 = vpack.c.b16 %v1797, %v1793
      %v1902 = vpack.c.b16 %v1798, %v1794
      %v1903 = vpack.c.b16 %v1799, %v1795
      %v1904 = vpack.c.b16 %v1804, %v1800
      %v1905 = vpack.c.b16 %v1805, %v1801
      %v1906 = vpack.c.b16 %v1806, %v1802
      %v1907 = vpack.c.b16 %v1807, %v1803
      %v1908 = vpack.c.b16 %v1812, %v1808
      %v1909 = vpack.c.b16 %v1813, %v1809
      %v1910 = vpack.c.b16 %v1814, %v1810
      %v1911 = vpack.c.b16 %v1815, %v1811
      %v1912 = vpack.c.b16 %v1820, %v1816
      %v1913 = vpack.c.b16 %v1821, %v1817
      %v1914 = vpack.c.b16 %v1822, %v1818
      %v1915 = vpack.c.b16 %v1823, %v1819
      %v1916 = vpack.c.b16 %v1828, %v1824
      %v1917 = vpack.c.b16 %v1829, %v1825
      %v1918 = vpack.c.b16 %v1830, %v1826
      %v1919 = vpack.c.b16 %v1831, %v1827
      %v1920 = vpack.c.b16 %v1836, %v1832
      %v1921 = vpack.c.b16 %v1837, %v1833
      %v1922 = vpack.c.b16 %v1838, %v1834
      %v1923 = vpack.c.b16 %v1839, %v1835
      %v1924 = vpack.c.b16 %v1844, %v1840
      %v1925 = vpack.c.b16 %v1845, %v1841
      %v1926 = vpack.c.b16 %v1846, %v1842
      %v1927 = vpack.c.b16 %v1847, %v1843
      %v1928 = vpack.c.b16 %v1852, %v1848
      %v1929 = vpack.c.b16 %v1853, %v1849
      %v1930 = vpack.c.b16 %v1854, %v1850
      %v1931 = vpack.c.b16 %v1855, %v1851
      %v1932 = vpack.c.b16 %v1860, %v1856
      %v1933 = vpack.c.b16 %v1861, %v1857
      %v1934 = vpack.c.b16 %v1862, %v1858
      %v1935 = vpack.c.b16 %v1863, %v1859
      %v1936 = vpack.c.b16 %v1868, %v1864
      %v1937 = vpack.c.b16 %v1869, %v1865
      %v1938 = vpack.c.b16 %v1870, %v1866
      %v1939 = vpack.c.b16 %v1871, %v1867
      %v1940 = vpack.c.b16 %v1876, %v1872
      %v1941 = vpack.c.b16 %v1877, %v1873
      %v1942 = vpack.c.b16 %v1878, %v1874
      %v1943 = vpack.c.b16 %v1879, %v1875
      %2008 = vmatprep.subr.bf16.mxu0 %v1909
      %2009 = vmatpush1.bf16.msra.mxu0 %v1908
      %2010 = vmatprep.subr.bf16.mxu0 %v1905
      %2011 = vmatpush1.bf16.msra.mxu0 %v1904
      %2012 = vmatprep.subr.bf16.mxu0 %v1901
      %2013 = vmatpush1.bf16.msra.mxu0 %v1900
      %2014 = vmatprep.subr.bf16.mxu0 %v1897
      %2015 = vmatpush1.bf16.msra.mxu0 %v1896
      %2016 = vmatprep.subr.bf16.mxu0 %v1893
      %2017 = vmatpush1.bf16.msra.mxu0 %v1892
      %2018 = vmatprep.subr.bf16.mxu0 %v1889
      %2019 = vmatpush1.bf16.msra.mxu0 %v1888
      %2020 = vmatprep.subr.bf16.mxu0 %v1885
      %2021 = vmatpush1.bf16.msra.mxu0 %v1884
      %2022 = vmatprep.subr.bf16.mxu0 %v1881
      %2023 = vmatpush1.bf16.msra.mxu0 %v1880
      %2024 = vmatprep.subr.bf16.mxu0 %v1941
      %2025 = vmatpush2.bf16.msra.mxu0 %v1940
      %2026 = vmatprep.subr.bf16.mxu0 %v1937
      %2027 = vmatpush2.bf16.msra.mxu0 %v1936
      %2028 = vmatprep.subr.bf16.mxu0 %v1933
      %2029 = vmatpush2.bf16.msra.mxu0 %v1932
      %2030 = vmatprep.subr.bf16.mxu0 %v1929
      %2031 = vmatpush2.bf16.msra.mxu0 %v1928
      %2032 = vmatprep.subr.bf16.mxu0 %v1925
      %2033 = vmatpush2.bf16.msra.mxu0 %v1924
      %2034 = vmatprep.subr.bf16.mxu0 %v1921
      %2035 = vmatpush2.bf16.msra.mxu0 %v1920
      %2036 = vmatprep.subr.bf16.mxu0 %v1917
      %2037 = vmatpush2.bf16.msra.mxu0 %v1916
      %2038 = vmatprep.subr.bf16.mxu0 %v1913
      %2039 = vmatpush2.bf16.msra.mxu0 %v1912
      %2040 = vmatprep.mubr.bf16.mxu0 %v1152
      %2041 = vmatmul.mubr.bf16.gmra.mxu0 %v1151
      %v2042 = vpop.f32.mrf.mxu0
      %v2043 = vadd.f32 %v1641, %v2042
      %v2044 = vpop.f32.mrf.mxu0
      %v2045 = vadd.f32 %v1643, %v2044
      %v2046 = vpop.f32.mrf.mxu0
      %v2047 = vpop.f32.mrf.mxu0
      %2048 = vdwg.mxu0
      %2049 = vmatprep.subr.bf16.mxu0 %v1911
      %2050 = vmatpush1.bf16.msra.mxu0 %v1910
      %2051 = vmatprep.subr.bf16.mxu0 %v1907
      %2052 = vmatpush1.bf16.msra.mxu0 %v1906
      %2053 = vmatprep.subr.bf16.mxu0 %v1903
      %2054 = vmatpush1.bf16.msra.mxu0 %v1902
      %2055 = vmatprep.subr.bf16.mxu0 %v1899
      %2056 = vmatpush1.bf16.msra.mxu0 %v1898
      %2057 = vmatprep.subr.bf16.mxu0 %v1895
      %2058 = vmatpush1.bf16.msra.mxu0 %v1894
      %2059 = vmatprep.subr.bf16.mxu0 %v1891
      %2060 = vmatpush1.bf16.msra.mxu0 %v1890
      %2061 = vmatprep.subr.bf16.mxu0 %v1887
      %2062 = vmatpush1.bf16.msra.mxu0 %v1886
      %2063 = vmatprep.subr.bf16.mxu0 %v1883
      %2064 = vmatpush1.bf16.msra.mxu0 %v1882
      %2065 = vmatprep.subr.bf16.mxu0 %v1943
      %2066 = vmatpush2.bf16.msra.mxu0 %v1942
      %2067 = vmatprep.subr.bf16.mxu0 %v1939
      %2068 = vmatpush2.bf16.msra.mxu0 %v1938
      %2069 = vmatprep.subr.bf16.mxu0 %v1935
      %2070 = vmatpush2.bf16.msra.mxu0 %v1934
      %2071 = vmatprep.subr.bf16.mxu0 %v1931
      %2072 = vmatpush2.bf16.msra.mxu0 %v1930
      %2073 = vmatprep.subr.bf16.mxu0 %v1927
      %2074 = vmatpush2.bf16.msra.mxu0 %v1926
      %2075 = vmatprep.subr.bf16.mxu0 %v1923
      %2076 = vmatpush2.bf16.msra.mxu0 %v1922
      %2077 = vmatprep.subr.bf16.mxu0 %v1919
      %2078 = vmatpush2.bf16.msra.mxu0 %v1918
      %2079 = vmatprep.subr.bf16.mxu0 %v1915
      %2080 = vmatpush2.bf16.msra.mxu0 %v1914
      %2081 = vmatprep.mubr.bf16.mxu0 %v1152
      %2082 = vmatmul.mubr.bf16.gmra.mxu0 %v1151
      %v2083 = vpop.f32.mrf.mxu0
      %v2084 = vadd.f32 %v1682, %v2083
      %v2085 = vpop.f32.mrf.mxu0
      %v2086 = vadd.f32 %v1684, %v2085
      %v2087 = vpop.f32.mrf.mxu0
      %v2088 = vpop.f32.mrf.mxu0
      %2089 = vdwg.mxu0
      %v2090 = vmax.f32 %v1109, %v1111
      %v2091 = vmax.f32 %v1110, %v1112
      %v2092 = vpack.c.bf16 %v2090, %v2090
      %v2093 = vpack.c.bf16 %v2091, %v2091
      %s2094 = scalar_lea.vmem %s3, 1024
      %v2095 = vld [vmem:[%s2094] sm:$0xff]
      %v2096 = vld [vmem:[%s2094 + $0x8] sm:$0xff]
      %v2097 = vld [vmem:[%s2094 + $0x10] sm:$0xff]
      %v2098 = vld [vmem:[%s2094 + $0x18] sm:$0xff]
      %v2099 = vld [vmem:[%s2094 + $0x20] sm:$0xff]
      %v2100 = vld [vmem:[%s2094 + $0x28] sm:$0xff]
      %v2101 = vld [vmem:[%s2094 + $0x30] sm:$0xff]
      %v2102 = vld [vmem:[%s2094 + $0x38] sm:$0xff]
      %v2103 = vld [vmem:[%s2094 + $0x40] sm:$0xff]
      %v2104 = vld [vmem:[%s2094 + $0x48] sm:$0xff]
      %v2105 = vld [vmem:[%s2094 + $0x50] sm:$0xff]
      %v2106 = vld [vmem:[%s2094 + $0x58] sm:$0xff]
      %v2107 = vld [vmem:[%s2094 + $0x60] sm:$0xff]
      %v2108 = vld [vmem:[%s2094 + $0x68] sm:$0xff]
      %v2109 = vld [vmem:[%s2094 + $0x70] sm:$0xff]
      %v2110 = vld [vmem:[%s2094 + $0x78] sm:$0xff]
      %v2111 = vld [vmem:[%s2094 + $0x80] sm:$0xff]
      %v2112 = vld [vmem:[%s2094 + $0x88] sm:$0xff]
      %v2113 = vld [vmem:[%s2094 + $0x90] sm:$0xff]
      %v2114 = vld [vmem:[%s2094 + $0x98] sm:$0xff]
      %v2115 = vld [vmem:[%s2094 + $0xa0] sm:$0xff]
      %v2116 = vld [vmem:[%s2094 + $0xa8] sm:$0xff]
      %v2117 = vld [vmem:[%s2094 + $0xb0] sm:$0xff]
      %v2118 = vld [vmem:[%s2094 + $0xb8] sm:$0xff]
      %v2119 = vld [vmem:[%s2094 + $0xc0] sm:$0xff]
      %v2120 = vld [vmem:[%s2094 + $0xc8] sm:$0xff]
      %v2121 = vld [vmem:[%s2094 + $0xd0] sm:$0xff]
      %v2122 = vld [vmem:[%s2094 + $0xd8] sm:$0xff]
      %v2123 = vld [vmem:[%s2094 + $0xe0] sm:$0xff]
      %v2124 = vld [vmem:[%s2094 + $0xe8] sm:$0xff]
      %v2125 = vld [vmem:[%s2094 + $0xf0] sm:$0xff]
      %v2126 = vld [vmem:[%s2094 + $0xf8] sm:$0xff]
      %v2127 = vld [vmem:[%s2094 + $0x100] sm:$0xff]
      %v2128 = vld [vmem:[%s2094 + $0x108] sm:$0xff]
      %v2129 = vld [vmem:[%s2094 + $0x110] sm:$0xff]
      %v2130 = vld [vmem:[%s2094 + $0x118] sm:$0xff]
      %v2131 = vld [vmem:[%s2094 + $0x120] sm:$0xff]
      %v2132 = vld [vmem:[%s2094 + $0x128] sm:$0xff]
      %v2133 = vld [vmem:[%s2094 + $0x130] sm:$0xff]
      %v2134 = vld [vmem:[%s2094 + $0x138] sm:$0xff]
      %v2135 = vld [vmem:[%s2094 + $0x140] sm:$0xff]
      %v2136 = vld [vmem:[%s2094 + $0x148] sm:$0xff]
      %v2137 = vld [vmem:[%s2094 + $0x150] sm:$0xff]
      %v2138 = vld [vmem:[%s2094 + $0x158] sm:$0xff]
      %v2139 = vld [vmem:[%s2094 + $0x160] sm:$0xff]
      %v2140 = vld [vmem:[%s2094 + $0x168] sm:$0xff]
      %v2141 = vld [vmem:[%s2094 + $0x170] sm:$0xff]
      %v2142 = vld [vmem:[%s2094 + $0x178] sm:$0xff]
      %v2143 = vld [vmem:[%s2094 + $0x180] sm:$0xff]
      %v2144 = vld [vmem:[%s2094 + $0x188] sm:$0xff]
      %v2145 = vld [vmem:[%s2094 + $0x190] sm:$0xff]
      %v2146 = vld [vmem:[%s2094 + $0x198] sm:$0xff]
      %v2147 = vld [vmem:[%s2094 + $0x1a0] sm:$0xff]
      %v2148 = vld [vmem:[%s2094 + $0x1a8] sm:$0xff]
      %v2149 = vld [vmem:[%s2094 + $0x1b0] sm:$0xff]
      %v2150 = vld [vmem:[%s2094 + $0x1b8] sm:$0xff]
      %v2151 = vld [vmem:[%s2094 + $0x1c0] sm:$0xff]
      %v2152 = vld [vmem:[%s2094 + $0x1c8] sm:$0xff]
      %v2153 = vld [vmem:[%s2094 + $0x1d0] sm:$0xff]
      %v2154 = vld [vmem:[%s2094 + $0x1d8] sm:$0xff]
      %v2155 = vld [vmem:[%s2094 + $0x1e0] sm:$0xff]
      %v2156 = vld [vmem:[%s2094 + $0x1e8] sm:$0xff]
      %v2157 = vld [vmem:[%s2094 + $0x1f0] sm:$0xff]
      %v2158 = vld [vmem:[%s2094 + $0x1f8] sm:$0xff]
      %v2223 = vunpack.c.l.b16 %v2095
      %v2224 = vunpack.c.h.b16 %v2095
      %v2225 = vunpack.c.l.b16 %v2096
      %v2226 = vunpack.c.h.b16 %v2096
      %v2227 = vunpack.c.l.b16 %v2097
      %v2228 = vunpack.c.h.b16 %v2097
      %v2229 = vunpack.c.l.b16 %v2098
      %v2230 = vunpack.c.h.b16 %v2098
      %v2231 = vunpack.c.l.b16 %v2099
      %v2232 = vunpack.c.h.b16 %v2099
      %v2233 = vunpack.c.l.b16 %v2100
      %v2234 = vunpack.c.h.b16 %v2100
      %v2235 = vunpack.c.l.b16 %v2101
      %v2236 = vunpack.c.h.b16 %v2101
      %v2237 = vunpack.c.l.b16 %v2102
      %v2238 = vunpack.c.h.b16 %v2102
      %v2239 = vunpack.c.l.b16 %v2103
      %v2240 = vunpack.c.h.b16 %v2103
      %v2241 = vunpack.c.l.b16 %v2104
      %v2242 = vunpack.c.h.b16 %v2104
      %v2243 = vunpack.c.l.b16 %v2105
      %v2244 = vunpack.c.h.b16 %v2105
      %v2245 = vunpack.c.l.b16 %v2106
      %v2246 = vunpack.c.h.b16 %v2106
      %v2247 = vunpack.c.l.b16 %v2107
      %v2248 = vunpack.c.h.b16 %v2107
      %v2249 = vunpack.c.l.b16 %v2108
      %v2250 = vunpack.c.h.b16 %v2108
      %v2251 = vunpack.c.l.b16 %v2109
      %v2252 = vunpack.c.h.b16 %v2109
      %v2253 = vunpack.c.l.b16 %v2110
      %v2254 = vunpack.c.h.b16 %v2110
      %v2255 = vunpack.c.l.b16 %v2111
      %v2256 = vunpack.c.h.b16 %v2111
      %v2257 = vunpack.c.l.b16 %v2112
      %v2258 = vunpack.c.h.b16 %v2112
      %v2259 = vunpack.c.l.b16 %v2113
      %v2260 = vunpack.c.h.b16 %v2113
      %v2261 = vunpack.c.l.b16 %v2114
      %v2262 = vunpack.c.h.b16 %v2114
      %v2263 = vunpack.c.l.b16 %v2115
      %v2264 = vunpack.c.h.b16 %v2115
      %v2265 = vunpack.c.l.b16 %v2116
      %v2266 = vunpack.c.h.b16 %v2116
      %v2267 = vunpack.c.l.b16 %v2117
      %v2268 = vunpack.c.h.b16 %v2117
      %v2269 = vunpack.c.l.b16 %v2118
      %v2270 = vunpack.c.h.b16 %v2118
      %v2271 = vunpack.c.l.b16 %v2119
      %v2272 = vunpack.c.h.b16 %v2119
      %v2273 = vunpack.c.l.b16 %v2120
      %v2274 = vunpack.c.h.b16 %v2120
      %v2275 = vunpack.c.l.b16 %v2121
      %v2276 = vunpack.c.h.b16 %v2121
      %v2277 = vunpack.c.l.b16 %v2122
      %v2278 = vunpack.c.h.b16 %v2122
      %v2279 = vunpack.c.l.b16 %v2123
      %v2280 = vunpack.c.h.b16 %v2123
      %v2281 = vunpack.c.l.b16 %v2124
      %v2282 = vunpack.c.h.b16 %v2124
      %v2283 = vunpack.c.l.b16 %v2125
      %v2284 = vunpack.c.h.b16 %v2125
      %v2285 = vunpack.c.l.b16 %v2126
      %v2286 = vunpack.c.h.b16 %v2126
      %v2287 = vunpack.c.l.b16 %v2127
      %v2288 = vunpack.c.h.b16 %v2127
      %v2289 = vunpack.c.l.b16 %v2128
      %v2290 = vunpack.c.h.b16 %v2128
      %v2291 = vunpack.c.l.b16 %v2129
      %v2292 = vunpack.c.h.b16 %v2129
      %v2293 = vunpack.c.l.b16 %v2130
      %v2294 = vunpack.c.h.b16 %v2130
      %v2295 = vunpack.c.l.b16 %v2131
      %v2296 = vunpack.c.h.b16 %v2131
      %v2297 = vunpack.c.l.b16 %v2132
      %v2298 = vunpack.c.h.b16 %v2132
      %v2299 = vunpack.c.l.b16 %v2133
      %v2300 = vunpack.c.h.b16 %v2133
      %v2301 = vunpack.c.l.b16 %v2134
      %v2302 = vunpack.c.h.b16 %v2134
      %v2303 = vunpack.c.l.b16 %v2135
      %v2304 = vunpack.c.h.b16 %v2135
      %v2305 = vunpack.c.l.b16 %v2136
      %v2306 = vunpack.c.h.b16 %v2136
      %v2307 = vunpack.c.l.b16 %v2137
      %v2308 = vunpack.c.h.b16 %v2137
      %v2309 = vunpack.c.l.b16 %v2138
      %v2310 = vunpack.c.h.b16 %v2138
      %v2311 = vunpack.c.l.b16 %v2139
      %v2312 = vunpack.c.h.b16 %v2139
      %v2313 = vunpack.c.l.b16 %v2140
      %v2314 = vunpack.c.h.b16 %v2140
      %v2315 = vunpack.c.l.b16 %v2141
      %v2316 = vunpack.c.h.b16 %v2141
      %v2317 = vunpack.c.l.b16 %v2142
      %v2318 = vunpack.c.h.b16 %v2142
      %v2319 = vunpack.c.l.b16 %v2143
      %v2320 = vunpack.c.h.b16 %v2143
      %v2321 = vunpack.c.l.b16 %v2144
      %v2322 = vunpack.c.h.b16 %v2144
      %v2323 = vunpack.c.l.b16 %v2145
      %v2324 = vunpack.c.h.b16 %v2145
      %v2325 = vunpack.c.l.b16 %v2146
      %v2326 = vunpack.c.h.b16 %v2146
      %v2327 = vunpack.c.l.b16 %v2147
      %v2328 = vunpack.c.h.b16 %v2147
      %v2329 = vunpack.c.l.b16 %v2148
      %v2330 = vunpack.c.h.b16 %v2148
      %v2331 = vunpack.c.l.b16 %v2149
      %v2332 = vunpack.c.h.b16 %v2149
      %v2333 = vunpack.c.l.b16 %v2150
      %v2334 = vunpack.c.h.b16 %v2150
      %v2335 = vunpack.c.l.b16 %v2151
      %v2336 = vunpack.c.h.b16 %v2151
      %v2337 = vunpack.c.l.b16 %v2152
      %v2338 = vunpack.c.h.b16 %v2152
      %v2339 = vunpack.c.l.b16 %v2153
      %v2340 = vunpack.c.h.b16 %v2153
      %v2341 = vunpack.c.l.b16 %v2154
      %v2342 = vunpack.c.h.b16 %v2154
      %v2343 = vunpack.c.l.b16 %v2155
      %v2344 = vunpack.c.h.b16 %v2155
      %v2345 = vunpack.c.l.b16 %v2156
      %v2346 = vunpack.c.h.b16 %v2156
      %v2347 = vunpack.c.l.b16 %v2157
      %v2348 = vunpack.c.h.b16 %v2157
      %v2349 = vunpack.c.l.b16 %v2158
      %v2350 = vunpack.c.h.b16 %v2158
      %v2351 = vpack.c.b16 %v2227, %v2223
      %v2352 = vpack.c.b16 %v2228, %v2224
      %v2353 = vpack.c.b16 %v2229, %v2225
      %v2354 = vpack.c.b16 %v2230, %v2226
      %v2355 = vpack.c.b16 %v2235, %v2231
      %v2356 = vpack.c.b16 %v2236, %v2232
      %v2357 = vpack.c.b16 %v2237, %v2233
      %v2358 = vpack.c.b16 %v2238, %v2234
      %v2359 = vpack.c.b16 %v2243, %v2239
      %v2360 = vpack.c.b16 %v2244, %v2240
      %v2361 = vpack.c.b16 %v2245, %v2241
      %v2362 = vpack.c.b16 %v2246, %v2242
      %v2363 = vpack.c.b16 %v2251, %v2247
      %v2364 = vpack.c.b16 %v2252, %v2248
      %v2365 = vpack.c.b16 %v2253, %v2249
      %v2366 = vpack.c.b16 %v2254, %v2250
      %v2367 = vpack.c.b16 %v2259, %v2255
      %v2368 = vpack.c.b16 %v2260, %v2256
      %v2369 = vpack.c.b16 %v2261, %v2257
      %v2370 = vpack.c.b16 %v2262, %v2258
      %v2371 = vpack.c.b16 %v2267, %v2263
      %v2372 = vpack.c.b16 %v2268, %v2264
      %v2373 = vpack.c.b16 %v2269, %v2265
      %v2374 = vpack.c.b16 %v2270, %v2266
      %v2375 = vpack.c.b16 %v2275, %v2271
      %v2376 = vpack.c.b16 %v2276, %v2272
      %v2377 = vpack.c.b16 %v2277, %v2273
      %v2378 = vpack.c.b16 %v2278, %v2274
      %v2379 = vpack.c.b16 %v2283, %v2279
      %v2380 = vpack.c.b16 %v2284, %v2280
      %v2381 = vpack.c.b16 %v2285, %v2281
      %v2382 = vpack.c.b16 %v2286, %v2282
      %v2383 = vpack.c.b16 %v2291, %v2287
      %v2384 = vpack.c.b16 %v2292, %v2288
      %v2385 = vpack.c.b16 %v2293, %v2289
      %v2386 = vpack.c.b16 %v2294, %v2290
      %v2387 = vpack.c.b16 %v2299, %v2295
      %v2388 = vpack.c.b16 %v2300, %v2296
      %v2389 = vpack.c.b16 %v2301, %v2297
      %v2390 = vpack.c.b16 %v2302, %v2298
      %v2391 = vpack.c.b16 %v2307, %v2303
      %v2392 = vpack.c.b16 %v2308, %v2304
      %v2393 = vpack.c.b16 %v2309, %v2305
      %v2394 = vpack.c.b16 %v2310, %v2306
      %v2395 = vpack.c.b16 %v2315, %v2311
      %v2396 = vpack.c.b16 %v2316, %v2312
      %v2397 = vpack.c.b16 %v2317, %v2313
      %v2398 = vpack.c.b16 %v2318, %v2314
      %v2399 = vpack.c.b16 %v2323, %v2319
      %v2400 = vpack.c.b16 %v2324, %v2320
      %v2401 = vpack.c.b16 %v2325, %v2321
      %v2402 = vpack.c.b16 %v2326, %v2322
      %v2403 = vpack.c.b16 %v2331, %v2327
      %v2404 = vpack.c.b16 %v2332, %v2328
      %v2405 = vpack.c.b16 %v2333, %v2329
      %v2406 = vpack.c.b16 %v2334, %v2330
      %v2407 = vpack.c.b16 %v2339, %v2335
      %v2408 = vpack.c.b16 %v2340, %v2336
      %v2409 = vpack.c.b16 %v2341, %v2337
      %v2410 = vpack.c.b16 %v2342, %v2338
      %v2411 = vpack.c.b16 %v2347, %v2343
      %v2412 = vpack.c.b16 %v2348, %v2344
      %v2413 = vpack.c.b16 %v2349, %v2345
      %v2414 = vpack.c.b16 %v2350, %v2346
      %2479 = vmatprep.subr.bf16.mxu0 %v2380
      %2480 = vmatpush1.bf16.msra.mxu0 %v2379
      %2481 = vmatprep.subr.bf16.mxu0 %v2376
      %2482 = vmatpush1.bf16.msra.mxu0 %v2375
      %2483 = vmatprep.subr.bf16.mxu0 %v2372
      %2484 = vmatpush1.bf16.msra.mxu0 %v2371
      %2485 = vmatprep.subr.bf16.mxu0 %v2368
      %2486 = vmatpush1.bf16.msra.mxu0 %v2367
      %2487 = vmatprep.subr.bf16.mxu0 %v2364
      %2488 = vmatpush1.bf16.msra.mxu0 %v2363
      %2489 = vmatprep.subr.bf16.mxu0 %v2360
      %2490 = vmatpush1.bf16.msra.mxu0 %v2359
      %2491 = vmatprep.subr.bf16.mxu0 %v2356
      %2492 = vmatpush1.bf16.msra.mxu0 %v2355
      %2493 = vmatprep.subr.bf16.mxu0 %v2352
      %2494 = vmatpush1.bf16.msra.mxu0 %v2351
      %2495 = vmatprep.subr.bf16.mxu0 %v2412
      %2496 = vmatpush2.bf16.msra.mxu0 %v2411
      %2497 = vmatprep.subr.bf16.mxu0 %v2408
      %2498 = vmatpush2.bf16.msra.mxu0 %v2407
      %2499 = vmatprep.subr.bf16.mxu0 %v2404
      %2500 = vmatpush2.bf16.msra.mxu0 %v2403
      %2501 = vmatprep.subr.bf16.mxu0 %v2400
      %2502 = vmatpush2.bf16.msra.mxu0 %v2399
      %2503 = vmatprep.subr.bf16.mxu0 %v2396
      %2504 = vmatpush2.bf16.msra.mxu0 %v2395
      %2505 = vmatprep.subr.bf16.mxu0 %v2392
      %2506 = vmatpush2.bf16.msra.mxu0 %v2391
      %2507 = vmatprep.subr.bf16.mxu0 %v2388
      %2508 = vmatpush2.bf16.msra.mxu0 %v2387
      %2509 = vmatprep.subr.bf16.mxu0 %v2384
      %2510 = vmatpush2.bf16.msra.mxu0 %v2383
      %2511 = vmatprep.mubr.bf16.mxu0 %v2093
      %2512 = vmatmul.mubr.bf16.gmra.mxu0 %v2092
      %v2513 = vpop.f32.mrf.mxu0
      %v2514 = vadd.f32 0.0, %v2513
      %v2515 = vpop.f32.mrf.mxu0
      %v2516 = vadd.f32 0.0, %v2515
      %v2517 = vpop.f32.mrf.mxu0
      %v2518 = vpop.f32.mrf.mxu0
      %2519 = vdwg.mxu0
      %2520 = vmatprep.subr.bf16.mxu0 %v2382
      %2521 = vmatpush1.bf16.msra.mxu0 %v2381
      %2522 = vmatprep.subr.bf16.mxu0 %v2378
      %2523 = vmatpush1.bf16.msra.mxu0 %v2377
      %2524 = vmatprep.subr.bf16.mxu0 %v2374
      %2525 = vmatpush1.bf16.msra.mxu0 %v2373
      %2526 = vmatprep.subr.bf16.mxu0 %v2370
      %2527 = vmatpush1.bf16.msra.mxu0 %v2369
      %2528 = vmatprep.subr.bf16.mxu0 %v2366
      %2529 = vmatpush1.bf16.msra.mxu0 %v2365
      %2530 = vmatprep.subr.bf16.mxu0 %v2362
      %2531 = vmatpush1.bf16.msra.mxu0 %v2361
      %2532 = vmatprep.subr.bf16.mxu0 %v2358
      %2533 = vmatpush1.bf16.msra.mxu0 %v2357
      %2534 = vmatprep.subr.bf16.mxu0 %v2354
      %2535 = vmatpush1.bf16.msra.mxu0 %v2353
      %2536 = vmatprep.subr.bf16.mxu0 %v2414
      %2537 = vmatpush2.bf16.msra.mxu0 %v2413
      %2538 = vmatprep.subr.bf16.mxu0 %v2410
      %2539 = vmatpush2.bf16.msra.mxu0 %v2409
      %2540 = vmatprep.subr.bf16.mxu0 %v2406
      %2541 = vmatpush2.bf16.msra.mxu0 %v2405
      %2542 = vmatprep.subr.bf16.mxu0 %v2402
      %2543 = vmatpush2.bf16.msra.mxu0 %v2401
      %2544 = vmatprep.subr.bf16.mxu0 %v2398
      %2545 = vmatpush2.bf16.msra.mxu0 %v2397
      %2546 = vmatprep.subr.bf16.mxu0 %v2394
      %2547 = vmatpush2.bf16.msra.mxu0 %v2393
      %2548 = vmatprep.subr.bf16.mxu0 %v2390
      %2549 = vmatpush2.bf16.msra.mxu0 %v2389
      %2550 = vmatprep.subr.bf16.mxu0 %v2386
      %2551 = vmatpush2.bf16.msra.mxu0 %v2385
      %2552 = vmatprep.mubr.bf16.mxu0 %v2093
      %2553 = vmatmul.mubr.bf16.gmra.mxu0 %v2092
      %v2554 = vpop.f32.mrf.mxu0
      %v2555 = vadd.f32 0.0, %v2554
      %v2556 = vpop.f32.mrf.mxu0
      %v2557 = vadd.f32 0.0, %v2556
      %v2558 = vpop.f32.mrf.mxu0
      %v2559 = vpop.f32.mrf.mxu0
      %2560 = vdwg.mxu0
      %v2561 = vadd.f32 %v2043, %v2514
      %v2562 = vadd.f32 %v2045, %v2516
      %v2563 = vadd.f32 %v2084, %v2555
      %v2564 = vadd.f32 %v2086, %v2557
      %v2565 = vmax.f32 %v1113, %v1115
      %v2566 = vmax.f32 %v1114, %v1116
      %v2567 = vpack.c.bf16 %v2565, %v2565
      %v2568 = vpack.c.bf16 %v2566, %v2566
      %s2569 = scalar_lea.vmem %s3, 1536
      %v2570 = vld [vmem:[%s2569] sm:$0xff]
      %v2571 = vld [vmem:[%s2569 + $0x8] sm:$0xff]
      %v2572 = vld [vmem:[%s2569 + $0x10] sm:$0xff]
      %v2573 = vld [vmem:[%s2569 + $0x18] sm:$0xff]
      %v2574 = vld [vmem:[%s2569 + $0x20] sm:$0xff]
      %v2575 = vld [vmem:[%s2569 + $0x28] sm:$0xff]
      %v2576 = vld [vmem:[%s2569 + $0x30] sm:$0xff]
      %v2577 = vld [vmem:[%s2569 + $0x38] sm:$0xff]
      %v2578 = vld [vmem:[%s2569 + $0x40] sm:$0xff]
      %v2579 = vld [vmem:[%s2569 + $0x48] sm:$0xff]
      %v2580 = vld [vmem:[%s2569 + $0x50] sm:$0xff]
      %v2581 = vld [vmem:[%s2569 + $0x58] sm:$0xff]
      %v2582 = vld [vmem:[%s2569 + $0x60] sm:$0xff]
      %v2583 = vld [vmem:[%s2569 + $0x68] sm:$0xff]
      %v2584 = vld [vmem:[%s2569 + $0x70] sm:$0xff]
      %v2585 = vld [vmem:[%s2569 + $0x78] sm:$0xff]
      %v2586 = vld [vmem:[%s2569 + $0x80] sm:$0xff]
      %v2587 = vld [vmem:[%s2569 + $0x88] sm:$0xff]
      %v2588 = vld [vmem:[%s2569 + $0x90] sm:$0xff]
      %v2589 = vld [vmem:[%s2569 + $0x98] sm:$0xff]
      %v2590 = vld [vmem:[%s2569 + $0xa0] sm:$0xff]
      %v2591 = vld [vmem:[%s2569 + $0xa8] sm:$0xff]
      %v2592 = vld [vmem:[%s2569 + $0xb0] sm:$0xff]
      %v2593 = vld [vmem:[%s2569 + $0xb8] sm:$0xff]
      %v2594 = vld [vmem:[%s2569 + $0xc0] sm:$0xff]
      %v2595 = vld [vmem:[%s2569 + $0xc8] sm:$0xff]
      %v2596 = vld [vmem:[%s2569 + $0xd0] sm:$0xff]
      %v2597 = vld [vmem:[%s2569 + $0xd8] sm:$0xff]
      %v2598 = vld [vmem:[%s2569 + $0xe0] sm:$0xff]
      %v2599 = vld [vmem:[%s2569 + $0xe8] sm:$0xff]
      %v2600 = vld [vmem:[%s2569 + $0xf0] sm:$0xff]
      %v2601 = vld [vmem:[%s2569 + $0xf8] sm:$0xff]
      %v2602 = vld [vmem:[%s2569 + $0x100] sm:$0xff]
      %v2603 = vld [vmem:[%s2569 + $0x108] sm:$0xff]
      %v2604 = vld [vmem:[%s2569 + $0x110] sm:$0xff]
      %v2605 = vld [vmem:[%s2569 + $0x118] sm:$0xff]
      %v2606 = vld [vmem:[%s2569 + $0x120] sm:$0xff]
      %v2607 = vld [vmem:[%s2569 + $0x128] sm:$0xff]
      %v2608 = vld [vmem:[%s2569 + $0x130] sm:$0xff]
      %v2609 = vld [vmem:[%s2569 + $0x138] sm:$0xff]
      %v2610 = vld [vmem:[%s2569 + $0x140] sm:$0xff]
      %v2611 = vld [vmem:[%s2569 + $0x148] sm:$0xff]
      %v2612 = vld [vmem:[%s2569 + $0x150] sm:$0xff]
      %v2613 = vld [vmem:[%s2569 + $0x158] sm:$0xff]
      %v2614 = vld [vmem:[%s2569 + $0x160] sm:$0xff]
      %v2615 = vld [vmem:[%s2569 + $0x168] sm:$0xff]
      %v2616 = vld [vmem:[%s2569 + $0x170] sm:$0xff]
      %v2617 = vld [vmem:[%s2569 + $0x178] sm:$0xff]
      %v2618 = vld [vmem:[%s2569 + $0x180] sm:$0xff]
      %v2619 = vld [vmem:[%s2569 + $0x188] sm:$0xff]
      %v2620 = vld [vmem:[%s2569 + $0x190] sm:$0xff]
      %v2621 = vld [vmem:[%s2569 + $0x198] sm:$0xff]
      %v2622 = vld [vmem:[%s2569 + $0x1a0] sm:$0xff]
      %v2623 = vld [vmem:[%s2569 + $0x1a8] sm:$0xff]
      %v2624 = vld [vmem:[%s2569 + $0x1b0] sm:$0xff]
      %v2625 = vld [vmem:[%s2569 + $0x1b8] sm:$0xff]
      %v2626 = vld [vmem:[%s2569 + $0x1c0] sm:$0xff]
      %v2627 = vld [vmem:[%s2569 + $0x1c8] sm:$0xff]
      %v2628 = vld [vmem:[%s2569 + $0x1d0] sm:$0xff]
      %v2629 = vld [vmem:[%s2569 + $0x1d8] sm:$0xff]
      %v2630 = vld [vmem:[%s2569 + $0x1e0] sm:$0xff]
      %v2631 = vld [vmem:[%s2569 + $0x1e8] sm:$0xff]
      %v2632 = vld [vmem:[%s2569 + $0x1f0] sm:$0xff]
      %v2633 = vld [vmem:[%s2569 + $0x1f8] sm:$0xff]
      %v2698 = vunpack.c.l.b16 %v2570
      %v2699 = vunpack.c.h.b16 %v2570
      %v2700 = vunpack.c.l.b16 %v2571
      %v2701 = vunpack.c.h.b16 %v2571
      %v2702 = vunpack.c.l.b16 %v2572
      %v2703 = vunpack.c.h.b16 %v2572
      %v2704 = vunpack.c.l.b16 %v2573
      %v2705 = vunpack.c.h.b16 %v2573
      %v2706 = vunpack.c.l.b16 %v2574
      %v2707 = vunpack.c.h.b16 %v2574
      %v2708 = vunpack.c.l.b16 %v2575
      %v2709 = vunpack.c.h.b16 %v2575
      %v2710 = vunpack.c.l.b16 %v2576
      %v2711 = vunpack.c.h.b16 %v2576
      %v2712 = vunpack.c.l.b16 %v2577
      %v2713 = vunpack.c.h.b16 %v2577
      %v2714 = vunpack.c.l.b16 %v2578
      %v2715 = vunpack.c.h.b16 %v2578
      %v2716 = vunpack.c.l.b16 %v2579
      %v2717 = vunpack.c.h.b16 %v2579
      %v2718 = vunpack.c.l.b16 %v2580
      %v2719 = vunpack.c.h.b16 %v2580
      %v2720 = vunpack.c.l.b16 %v2581
      %v2721 = vunpack.c.h.b16 %v2581
      %v2722 = vunpack.c.l.b16 %v2582
      %v2723 = vunpack.c.h.b16 %v2582
      %v2724 = vunpack.c.l.b16 %v2583
      %v2725 = vunpack.c.h.b16 %v2583
      %v2726 = vunpack.c.l.b16 %v2584
      %v2727 = vunpack.c.h.b16 %v2584
      %v2728 = vunpack.c.l.b16 %v2585
      %v2729 = vunpack.c.h.b16 %v2585
      %v2730 = vunpack.c.l.b16 %v2586
      %v2731 = vunpack.c.h.b16 %v2586
      %v2732 = vunpack.c.l.b16 %v2587
      %v2733 = vunpack.c.h.b16 %v2587
      %v2734 = vunpack.c.l.b16 %v2588
      %v2735 = vunpack.c.h.b16 %v2588
      %v2736 = vunpack.c.l.b16 %v2589
      %v2737 = vunpack.c.h.b16 %v2589
      %v2738 = vunpack.c.l.b16 %v2590
      %v2739 = vunpack.c.h.b16 %v2590
      %v2740 = vunpack.c.l.b16 %v2591
      %v2741 = vunpack.c.h.b16 %v2591
      %v2742 = vunpack.c.l.b16 %v2592
      %v2743 = vunpack.c.h.b16 %v2592
      %v2744 = vunpack.c.l.b16 %v2593
      %v2745 = vunpack.c.h.b16 %v2593
      %v2746 = vunpack.c.l.b16 %v2594
      %v2747 = vunpack.c.h.b16 %v2594
      %v2748 = vunpack.c.l.b16 %v2595
      %v2749 = vunpack.c.h.b16 %v2595
      %v2750 = vunpack.c.l.b16 %v2596
      %v2751 = vunpack.c.h.b16 %v2596
      %v2752 = vunpack.c.l.b16 %v2597
      %v2753 = vunpack.c.h.b16 %v2597
      %v2754 = vunpack.c.l.b16 %v2598
      %v2755 = vunpack.c.h.b16 %v2598
      %v2756 = vunpack.c.l.b16 %v2599
      %v2757 = vunpack.c.h.b16 %v2599
      %v2758 = vunpack.c.l.b16 %v2600
      %v2759 = vunpack.c.h.b16 %v2600
      %v2760 = vunpack.c.l.b16 %v2601
      %v2761 = vunpack.c.h.b16 %v2601
      %v2762 = vunpack.c.l.b16 %v2602
      %v2763 = vunpack.c.h.b16 %v2602
      %v2764 = vunpack.c.l.b16 %v2603
      %v2765 = vunpack.c.h.b16 %v2603
      %v2766 = vunpack.c.l.b16 %v2604
      %v2767 = vunpack.c.h.b16 %v2604
      %v2768 = vunpack.c.l.b16 %v2605
      %v2769 = vunpack.c.h.b16 %v2605
      %v2770 = vunpack.c.l.b16 %v2606
      %v2771 = vunpack.c.h.b16 %v2606
      %v2772 = vunpack.c.l.b16 %v2607
      %v2773 = vunpack.c.h.b16 %v2607
      %v2774 = vunpack.c.l.b16 %v2608
      %v2775 = vunpack.c.h.b16 %v2608
      %v2776 = vunpack.c.l.b16 %v2609
      %v2777 = vunpack.c.h.b16 %v2609
      %v2778 = vunpack.c.l.b16 %v2610
      %v2779 = vunpack.c.h.b16 %v2610
      %v2780 = vunpack.c.l.b16 %v2611
      %v2781 = vunpack.c.h.b16 %v2611
      %v2782 = vunpack.c.l.b16 %v2612
      %v2783 = vunpack.c.h.b16 %v2612
      %v2784 = vunpack.c.l.b16 %v2613
      %v2785 = vunpack.c.h.b16 %v2613
      %v2786 = vunpack.c.l.b16 %v2614
      %v2787 = vunpack.c.h.b16 %v2614
      %v2788 = vunpack.c.l.b16 %v2615
      %v2789 = vunpack.c.h.b16 %v2615
      %v2790 = vunpack.c.l.b16 %v2616
      %v2791 = vunpack.c.h.b16 %v2616
      %v2792 = vunpack.c.l.b16 %v2617
      %v2793 = vunpack.c.h.b16 %v2617
      %v2794 = vunpack.c.l.b16 %v2618
      %v2795 = vunpack.c.h.b16 %v2618
      %v2796 = vunpack.c.l.b16 %v2619
      %v2797 = vunpack.c.h.b16 %v2619
      %v2798 = vunpack.c.l.b16 %v2620
      %v2799 = vunpack.c.h.b16 %v2620
      %v2800 = vunpack.c.l.b16 %v2621
      %v2801 = vunpack.c.h.b16 %v2621
      %v2802 = vunpack.c.l.b16 %v2622
      %v2803 = vunpack.c.h.b16 %v2622
      %v2804 = vunpack.c.l.b16 %v2623
      %v2805 = vunpack.c.h.b16 %v2623
      %v2806 = vunpack.c.l.b16 %v2624
      %v2807 = vunpack.c.h.b16 %v2624
      %v2808 = vunpack.c.l.b16 %v2625
      %v2809 = vunpack.c.h.b16 %v2625
      %v2810 = vunpack.c.l.b16 %v2626
      %v2811 = vunpack.c.h.b16 %v2626
      %v2812 = vunpack.c.l.b16 %v2627
      %v2813 = vunpack.c.h.b16 %v2627
      %v2814 = vunpack.c.l.b16 %v2628
      %v2815 = vunpack.c.h.b16 %v2628
      %v2816 = vunpack.c.l.b16 %v2629
      %v2817 = vunpack.c.h.b16 %v2629
      %v2818 = vunpack.c.l.b16 %v2630
      %v2819 = vunpack.c.h.b16 %v2630
      %v2820 = vunpack.c.l.b16 %v2631
      %v2821 = vunpack.c.h.b16 %v2631
      %v2822 = vunpack.c.l.b16 %v2632
      %v2823 = vunpack.c.h.b16 %v2632
      %v2824 = vunpack.c.l.b16 %v2633
      %v2825 = vunpack.c.h.b16 %v2633
      %v2826 = vpack.c.b16 %v2702, %v2698
      %v2827 = vpack.c.b16 %v2703, %v2699
      %v2828 = vpack.c.b16 %v2704, %v2700
      %v2829 = vpack.c.b16 %v2705, %v2701
      %v2830 = vpack.c.b16 %v2710, %v2706
      %v2831 = vpack.c.b16 %v2711, %v2707
      %v2832 = vpack.c.b16 %v2712, %v2708
      %v2833 = vpack.c.b16 %v2713, %v2709
      %v2834 = vpack.c.b16 %v2718, %v2714
      %v2835 = vpack.c.b16 %v2719, %v2715
      %v2836 = vpack.c.b16 %v2720, %v2716
      %v2837 = vpack.c.b16 %v2721, %v2717
      %v2838 = vpack.c.b16 %v2726, %v2722
      %v2839 = vpack.c.b16 %v2727, %v2723
      %v2840 = vpack.c.b16 %v2728, %v2724
      %v2841 = vpack.c.b16 %v2729, %v2725
      %v2842 = vpack.c.b16 %v2734, %v2730
      %v2843 = vpack.c.b16 %v2735, %v2731
      %v2844 = vpack.c.b16 %v2736, %v2732
      %v2845 = vpack.c.b16 %v2737, %v2733
      %v2846 = vpack.c.b16 %v2742, %v2738
      %v2847 = vpack.c.b16 %v2743, %v2739
      %v2848 = vpack.c.b16 %v2744, %v2740
      %v2849 = vpack.c.b16 %v2745, %v2741
      %v2850 = vpack.c.b16 %v2750, %v2746
      %v2851 = vpack.c.b16 %v2751, %v2747
      %v2852 = vpack.c.b16 %v2752, %v2748
      %v2853 = vpack.c.b16 %v2753, %v2749
      %v2854 = vpack.c.b16 %v2758, %v2754
      %v2855 = vpack.c.b16 %v2759, %v2755
      %v2856 = vpack.c.b16 %v2760, %v2756
      %v2857 = vpack.c.b16 %v2761, %v2757
      %v2858 = vpack.c.b16 %v2766, %v2762
      %v2859 = vpack.c.b16 %v2767, %v2763
      %v2860 = vpack.c.b16 %v2768, %v2764
      %v2861 = vpack.c.b16 %v2769, %v2765
      %v2862 = vpack.c.b16 %v2774, %v2770
      %v2863 = vpack.c.b16 %v2775, %v2771
      %v2864 = vpack.c.b16 %v2776, %v2772
      %v2865 = vpack.c.b16 %v2777, %v2773
      %v2866 = vpack.c.b16 %v2782, %v2778
      %v2867 = vpack.c.b16 %v2783, %v2779
      %v2868 = vpack.c.b16 %v2784, %v2780
      %v2869 = vpack.c.b16 %v2785, %v2781
      %v2870 = vpack.c.b16 %v2790, %v2786
      %v2871 = vpack.c.b16 %v2791, %v2787
      %v2872 = vpack.c.b16 %v2792, %v2788
      %v2873 = vpack.c.b16 %v2793, %v2789
      %v2874 = vpack.c.b16 %v2798, %v2794
      %v2875 = vpack.c.b16 %v2799, %v2795
      %v2876 = vpack.c.b16 %v2800, %v2796
      %v2877 = vpack.c.b16 %v2801, %v2797
      %v2878 = vpack.c.b16 %v2806, %v2802
      %v2879 = vpack.c.b16 %v2807, %v2803
      %v2880 = vpack.c.b16 %v2808, %v2804
      %v2881 = vpack.c.b16 %v2809, %v2805
      %v2882 = vpack.c.b16 %v2814, %v2810
      %v2883 = vpack.c.b16 %v2815, %v2811
      %v2884 = vpack.c.b16 %v2816, %v2812
      %v2885 = vpack.c.b16 %v2817, %v2813
      %v2886 = vpack.c.b16 %v2822, %v2818
      %v2887 = vpack.c.b16 %v2823, %v2819
      %v2888 = vpack.c.b16 %v2824, %v2820
      %v2889 = vpack.c.b16 %v2825, %v2821
      %2954 = vmatprep.subr.bf16.mxu0 %v2855
      %2955 = vmatpush1.bf16.msra.mxu0 %v2854
      %2956 = vmatprep.subr.bf16.mxu0 %v2851
      %2957 = vmatpush1.bf16.msra.mxu0 %v2850
      %2958 = vmatprep.subr.bf16.mxu0 %v2847
      %2959 = vmatpush1.bf16.msra.mxu0 %v2846
      %2960 = vmatprep.subr.bf16.mxu0 %v2843
      %2961 = vmatpush1.bf16.msra.mxu0 %v2842
      %2962 = vmatprep.subr.bf16.mxu0 %v2839
      %2963 = vmatpush1.bf16.msra.mxu0 %v2838
      %2964 = vmatprep.subr.bf16.mxu0 %v2835
      %2965 = vmatpush1.bf16.msra.mxu0 %v2834
      %2966 = vmatprep.subr.bf16.mxu0 %v2831
      %2967 = vmatpush1.bf16.msra.mxu0 %v2830
      %2968 = vmatprep.subr.bf16.mxu0 %v2827
      %2969 = vmatpush1.bf16.msra.mxu0 %v2826
      %2970 = vmatprep.subr.bf16.mxu0 %v2887
      %2971 = vmatpush2.bf16.msra.mxu0 %v2886
      %2972 = vmatprep.subr.bf16.mxu0 %v2883
      %2973 = vmatpush2.bf16.msra.mxu0 %v2882
      %2974 = vmatprep.subr.bf16.mxu0 %v2879
      %2975 = vmatpush2.bf16.msra.mxu0 %v2878
      %2976 = vmatprep.subr.bf16.mxu0 %v2875
      %2977 = vmatpush2.bf16.msra.mxu0 %v2874
      %2978 = vmatprep.subr.bf16.mxu0 %v2871
      %2979 = vmatpush2.bf16.msra.mxu0 %v2870
      %2980 = vmatprep.subr.bf16.mxu0 %v2867
      %2981 = vmatpush2.bf16.msra.mxu0 %v2866
      %2982 = vmatprep.subr.bf16.mxu0 %v2863
      %2983 = vmatpush2.bf16.msra.mxu0 %v2862
      %2984 = vmatprep.subr.bf16.mxu0 %v2859
      %2985 = vmatpush2.bf16.msra.mxu0 %v2858
      %2986 = vmatprep.mubr.bf16.mxu0 %v2568
      %2987 = vmatmul.mubr.bf16.gmra.mxu0 %v2567
      %v2988 = vpop.f32.mrf.mxu0
      %v2989 = vadd.f32 0.0, %v2988
      %v2990 = vpop.f32.mrf.mxu0
      %v2991 = vadd.f32 0.0, %v2990
      %v2992 = vpop.f32.mrf.mxu0
      %v2993 = vpop.f32.mrf.mxu0
      %2994 = vdwg.mxu0
      %2995 = vmatprep.subr.bf16.mxu0 %v2857
      %2996 = vmatpush1.bf16.msra.mxu0 %v2856
      %2997 = vmatprep.subr.bf16.mxu0 %v2853
      %2998 = vmatpush1.bf16.msra.mxu0 %v2852
      %2999 = vmatprep.subr.bf16.mxu0 %v2849
      %3000 = vmatpush1.bf16.msra.mxu0 %v2848
      %3001 = vmatprep.subr.bf16.mxu0 %v2845
      %3002 = vmatpush1.bf16.msra.mxu0 %v2844
      %3003 = vmatprep.subr.bf16.mxu0 %v2841
      %3004 = vmatpush1.bf16.msra.mxu0 %v2840
      %3005 = vmatprep.subr.bf16.mxu0 %v2837
      %3006 = vmatpush1.bf16.msra.mxu0 %v2836
      %3007 = vmatprep.subr.bf16.mxu0 %v2833
      %3008 = vmatpush1.bf16.msra.mxu0 %v2832
      %3009 = vmatprep.subr.bf16.mxu0 %v2829
      %3010 = vmatpush1.bf16.msra.mxu0 %v2828
      %3011 = vmatprep.subr.bf16.mxu0 %v2889
      %3012 = vmatpush2.bf16.msra.mxu0 %v2888
      %3013 = vmatprep.subr.bf16.mxu0 %v2885
      %3014 = vmatpush2.bf16.msra.mxu0 %v2884
      %3015 = vmatprep.subr.bf16.mxu0 %v2881
      %3016 = vmatpush2.bf16.msra.mxu0 %v2880
      %3017 = vmatprep.subr.bf16.mxu0 %v2877
      %3018 = vmatpush2.bf16.msra.mxu0 %v2876
      %3019 = vmatprep.subr.bf16.mxu0 %v2873
      %3020 = vmatpush2.bf16.msra.mxu0 %v2872
      %3021 = vmatprep.subr.bf16.mxu0 %v2869
      %3022 = vmatpush2.bf16.msra.mxu0 %v2868
      %3023 = vmatprep.subr.bf16.mxu0 %v2865
      %3024 = vmatpush2.bf16.msra.mxu0 %v2864
      %3025 = vmatprep.subr.bf16.mxu0 %v2861
      %3026 = vmatpush2.bf16.msra.mxu0 %v2860
      %3027 = vmatprep.mubr.bf16.mxu0 %v2568
      %3028 = vmatmul.mubr.bf16.gmra.mxu0 %v2567
      %v3029 = vpop.f32.mrf.mxu0
      %v3030 = vadd.f32 0.0, %v3029
      %v3031 = vpop.f32.mrf.mxu0
      %v3032 = vadd.f32 0.0, %v3031
      %v3033 = vpop.f32.mrf.mxu0
      %v3034 = vpop.f32.mrf.mxu0
      %3035 = vdwg.mxu0
      %v3036 = vadd.f32 %v2561, %v2989
      %v3037 = vadd.f32 %v2562, %v2991
      %v3038 = vadd.f32 %v2563, %v3030
      %v3039 = vadd.f32 %v2564, %v3032
      %v3040 = vmax.f32 %v1117, %v1119
      %v3041 = vmax.f32 %v1118, %v1120
      %v3042 = vpack.c.bf16 %v3040, %v3040
      %v3043 = vpack.c.bf16 %v3041, %v3041
      %s3044 = scalar_lea.vmem %s3, 2048
      %v3045 = vld [vmem:[%s3044] sm:$0xff]
      %v3046 = vld [vmem:[%s3044 + $0x8] sm:$0xff]
      %v3047 = vld [vmem:[%s3044 + $0x10] sm:$0xff]
      %v3048 = vld [vmem:[%s3044 + $0x18] sm:$0xff]
      %v3049 = vld [vmem:[%s3044 + $0x20] sm:$0xff]
      %v3050 = vld [vmem:[%s3044 + $0x28] sm:$0xff]
      %v3051 = vld [vmem:[%s3044 + $0x30] sm:$0xff]
      %v3052 = vld [vmem:[%s3044 + $0x38] sm:$0xff]
      %v3053 = vld [vmem:[%s3044 + $0x40] sm:$0xff]
      %v3054 = vld [vmem:[%s3044 + $0x48] sm:$0xff]
      %v3055 = vld [vmem:[%s3044 + $0x50] sm:$0xff]
      %v3056 = vld [vmem:[%s3044 + $0x58] sm:$0xff]
      %v3057 = vld [vmem:[%s3044 + $0x60] sm:$0xff]
      %v3058 = vld [vmem:[%s3044 + $0x68] sm:$0xff]
      %v3059 = vld [vmem:[%s3044 + $0x70] sm:$0xff]
      %v3060 = vld [vmem:[%s3044 + $0x78] sm:$0xff]
      %v3061 = vld [vmem:[%s3044 + $0x80] sm:$0xff]
      %v3062 = vld [vmem:[%s3044 + $0x88] sm:$0xff]
      %v3063 = vld [vmem:[%s3044 + $0x90] sm:$0xff]
      %v3064 = vld [vmem:[%s3044 + $0x98] sm:$0xff]
      %v3065 = vld [vmem:[%s3044 + $0xa0] sm:$0xff]
      %v3066 = vld [vmem:[%s3044 + $0xa8] sm:$0xff]
      %v3067 = vld [vmem:[%s3044 + $0xb0] sm:$0xff]
      %v3068 = vld [vmem:[%s3044 + $0xb8] sm:$0xff]
      %v3069 = vld [vmem:[%s3044 + $0xc0] sm:$0xff]
      %v3070 = vld [vmem:[%s3044 + $0xc8] sm:$0xff]
      %v3071 = vld [vmem:[%s3044 + $0xd0] sm:$0xff]
      %v3072 = vld [vmem:[%s3044 + $0xd8] sm:$0xff]
      %v3073 = vld [vmem:[%s3044 + $0xe0] sm:$0xff]
      %v3074 = vld [vmem:[%s3044 + $0xe8] sm:$0xff]
      %v3075 = vld [vmem:[%s3044 + $0xf0] sm:$0xff]
      %v3076 = vld [vmem:[%s3044 + $0xf8] sm:$0xff]
      %v3077 = vld [vmem:[%s3044 + $0x100] sm:$0xff]
      %v3078 = vld [vmem:[%s3044 + $0x108] sm:$0xff]
      %v3079 = vld [vmem:[%s3044 + $0x110] sm:$0xff]
      %v3080 = vld [vmem:[%s3044 + $0x118] sm:$0xff]
      %v3081 = vld [vmem:[%s3044 + $0x120] sm:$0xff]
      %v3082 = vld [vmem:[%s3044 + $0x128] sm:$0xff]
      %v3083 = vld [vmem:[%s3044 + $0x130] sm:$0xff]
      %v3084 = vld [vmem:[%s3044 + $0x138] sm:$0xff]
      %v3085 = vld [vmem:[%s3044 + $0x140] sm:$0xff]
      %v3086 = vld [vmem:[%s3044 + $0x148] sm:$0xff]
      %v3087 = vld [vmem:[%s3044 + $0x150] sm:$0xff]
      %v3088 = vld [vmem:[%s3044 + $0x158] sm:$0xff]
      %v3089 = vld [vmem:[%s3044 + $0x160] sm:$0xff]
      %v3090 = vld [vmem:[%s3044 + $0x168] sm:$0xff]
      %v3091 = vld [vmem:[%s3044 + $0x170] sm:$0xff]
      %v3092 = vld [vmem:[%s3044 + $0x178] sm:$0xff]
      %v3093 = vld [vmem:[%s3044 + $0x180] sm:$0xff]
      %v3094 = vld [vmem:[%s3044 + $0x188] sm:$0xff]
      %v3095 = vld [vmem:[%s3044 + $0x190] sm:$0xff]
      %v3096 = vld [vmem:[%s3044 + $0x198] sm:$0xff]
      %v3097 = vld [vmem:[%s3044 + $0x1a0] sm:$0xff]
      %v3098 = vld [vmem:[%s3044 + $0x1a8] sm:$0xff]
      %v3099 = vld [vmem:[%s3044 + $0x1b0] sm:$0xff]
      %v3100 = vld [vmem:[%s3044 + $0x1b8] sm:$0xff]
      %v3101 = vld [vmem:[%s3044 + $0x1c0] sm:$0xff]
      %v3102 = vld [vmem:[%s3044 + $0x1c8] sm:$0xff]
      %v3103 = vld [vmem:[%s3044 + $0x1d0] sm:$0xff]
      %v3104 = vld [vmem:[%s3044 + $0x1d8] sm:$0xff]
      %v3105 = vld [vmem:[%s3044 + $0x1e0] sm:$0xff]
      %v3106 = vld [vmem:[%s3044 + $0x1e8] sm:$0xff]
      %v3107 = vld [vmem:[%s3044 + $0x1f0] sm:$0xff]
      %v3108 = vld [vmem:[%s3044 + $0x1f8] sm:$0xff]
      %v3173 = vunpack.c.l.b16 %v3045
      %v3174 = vunpack.c.h.b16 %v3045
      %v3175 = vunpack.c.l.b16 %v3046
      %v3176 = vunpack.c.h.b16 %v3046
      %v3177 = vunpack.c.l.b16 %v3047
      %v3178 = vunpack.c.h.b16 %v3047
      %v3179 = vunpack.c.l.b16 %v3048
      %v3180 = vunpack.c.h.b16 %v3048
      %v3181 = vunpack.c.l.b16 %v3049
      %v3182 = vunpack.c.h.b16 %v3049
      %v3183 = vunpack.c.l.b16 %v3050
      %v3184 = vunpack.c.h.b16 %v3050
      %v3185 = vunpack.c.l.b16 %v3051
      %v3186 = vunpack.c.h.b16 %v3051
      %v3187 = vunpack.c.l.b16 %v3052
      %v3188 = vunpack.c.h.b16 %v3052
      %v3189 = vunpack.c.l.b16 %v3053
      %v3190 = vunpack.c.h.b16 %v3053
      %v3191 = vunpack.c.l.b16 %v3054
      %v3192 = vunpack.c.h.b16 %v3054
      %v3193 = vunpack.c.l.b16 %v3055
      %v3194 = vunpack.c.h.b16 %v3055
      %v3195 = vunpack.c.l.b16 %v3056
      %v3196 = vunpack.c.h.b16 %v3056
      %v3197 = vunpack.c.l.b16 %v3057
      %v3198 = vunpack.c.h.b16 %v3057
      %v3199 = vunpack.c.l.b16 %v3058
      %v3200 = vunpack.c.h.b16 %v3058
      %v3201 = vunpack.c.l.b16 %v3059
      %v3202 = vunpack.c.h.b16 %v3059
      %v3203 = vunpack.c.l.b16 %v3060
      %v3204 = vunpack.c.h.b16 %v3060
      %v3205 = vunpack.c.l.b16 %v3061
      %v3206 = vunpack.c.h.b16 %v3061
      %v3207 = vunpack.c.l.b16 %v3062
      %v3208 = vunpack.c.h.b16 %v3062
      %v3209 = vunpack.c.l.b16 %v3063
      %v3210 = vunpack.c.h.b16 %v3063
      %v3211 = vunpack.c.l.b16 %v3064
      %v3212 = vunpack.c.h.b16 %v3064
      %v3213 = vunpack.c.l.b16 %v3065
      %v3214 = vunpack.c.h.b16 %v3065
      %v3215 = vunpack.c.l.b16 %v3066
      %v3216 = vunpack.c.h.b16 %v3066
      %v3217 = vunpack.c.l.b16 %v3067
      %v3218 = vunpack.c.h.b16 %v3067
      %v3219 = vunpack.c.l.b16 %v3068
      %v3220 = vunpack.c.h.b16 %v3068
      %v3221 = vunpack.c.l.b16 %v3069
      %v3222 = vunpack.c.h.b16 %v3069
      %v3223 = vunpack.c.l.b16 %v3070
      %v3224 = vunpack.c.h.b16 %v3070
      %v3225 = vunpack.c.l.b16 %v3071
      %v3226 = vunpack.c.h.b16 %v3071
      %v3227 = vunpack.c.l.b16 %v3072
      %v3228 = vunpack.c.h.b16 %v3072
      %v3229 = vunpack.c.l.b16 %v3073
      %v3230 = vunpack.c.h.b16 %v3073
      %v3231 = vunpack.c.l.b16 %v3074
      %v3232 = vunpack.c.h.b16 %v3074
      %v3233 = vunpack.c.l.b16 %v3075
      %v3234 = vunpack.c.h.b16 %v3075
      %v3235 = vunpack.c.l.b16 %v3076
      %v3236 = vunpack.c.h.b16 %v3076
      %v3237 = vunpack.c.l.b16 %v3077
      %v3238 = vunpack.c.h.b16 %v3077
      %v3239 = vunpack.c.l.b16 %v3078
      %v3240 = vunpack.c.h.b16 %v3078
      %v3241 = vunpack.c.l.b16 %v3079
      %v3242 = vunpack.c.h.b16 %v3079
      %v3243 = vunpack.c.l.b16 %v3080
      %v3244 = vunpack.c.h.b16 %v3080
      %v3245 = vunpack.c.l.b16 %v3081
      %v3246 = vunpack.c.h.b16 %v3081
      %v3247 = vunpack.c.l.b16 %v3082
      %v3248 = vunpack.c.h.b16 %v3082
      %v3249 = vunpack.c.l.b16 %v3083
      %v3250 = vunpack.c.h.b16 %v3083
      %v3251 = vunpack.c.l.b16 %v3084
      %v3252 = vunpack.c.h.b16 %v3084
      %v3253 = vunpack.c.l.b16 %v3085
      %v3254 = vunpack.c.h.b16 %v3085
      %v3255 = vunpack.c.l.b16 %v3086
      %v3256 = vunpack.c.h.b16 %v3086
      %v3257 = vunpack.c.l.b16 %v3087
      %v3258 = vunpack.c.h.b16 %v3087
      %v3259 = vunpack.c.l.b16 %v3088
      %v3260 = vunpack.c.h.b16 %v3088
      %v3261 = vunpack.c.l.b16 %v3089
      %v3262 = vunpack.c.h.b16 %v3089
      %v3263 = vunpack.c.l.b16 %v3090
      %v3264 = vunpack.c.h.b16 %v3090
      %v3265 = vunpack.c.l.b16 %v3091
      %v3266 = vunpack.c.h.b16 %v3091
      %v3267 = vunpack.c.l.b16 %v3092
      %v3268 = vunpack.c.h.b16 %v3092
      %v3269 = vunpack.c.l.b16 %v3093
      %v3270 = vunpack.c.h.b16 %v3093
      %v3271 = vunpack.c.l.b16 %v3094
      %v3272 = vunpack.c.h.b16 %v3094
      %v3273 = vunpack.c.l.b16 %v3095
      %v3274 = vunpack.c.h.b16 %v3095
      %v3275 = vunpack.c.l.b16 %v3096
      %v3276 = vunpack.c.h.b16 %v3096
      %v3277 = vunpack.c.l.b16 %v3097
      %v3278 = vunpack.c.h.b16 %v3097
      %v3279 = vunpack.c.l.b16 %v3098
      %v3280 = vunpack.c.h.b16 %v3098
      %v3281 = vunpack.c.l.b16 %v3099
      %v3282 = vunpack.c.h.b16 %v3099
      %v3283 = vunpack.c.l.b16 %v3100
      %v3284 = vunpack.c.h.b16 %v3100
      %v3285 = vunpack.c.l.b16 %v3101
      %v3286 = vunpack.c.h.b16 %v3101
      %v3287 = vunpack.c.l.b16 %v3102
      %v3288 = vunpack.c.h.b16 %v3102
      %v3289 = vunpack.c.l.b16 %v3103
      %v3290 = vunpack.c.h.b16 %v3103
      %v3291 = vunpack.c.l.b16 %v3104
      %v3292 = vunpack.c.h.b16 %v3104
      %v3293 = vunpack.c.l.b16 %v3105
      %v3294 = vunpack.c.h.b16 %v3105
      %v3295 = vunpack.c.l.b16 %v3106
      %v3296 = vunpack.c.h.b16 %v3106
      %v3297 = vunpack.c.l.b16 %v3107
      %v3298 = vunpack.c.h.b16 %v3107
      %v3299 = vunpack.c.l.b16 %v3108
      %v3300 = vunpack.c.h.b16 %v3108
      %v3301 = vpack.c.b16 %v3177, %v3173
      %v3302 = vpack.c.b16 %v3178, %v3174
      %v3303 = vpack.c.b16 %v3179, %v3175
      %v3304 = vpack.c.b16 %v3180, %v3176
      %v3305 = vpack.c.b16 %v3185, %v3181
      %v3306 = vpack.c.b16 %v3186, %v3182
      %v3307 = vpack.c.b16 %v3187, %v3183
      %v3308 = vpack.c.b16 %v3188, %v3184
      %v3309 = vpack.c.b16 %v3193, %v3189
      %v3310 = vpack.c.b16 %v3194, %v3190
      %v3311 = vpack.c.b16 %v3195, %v3191
      %v3312 = vpack.c.b16 %v3196, %v3192
      %v3313 = vpack.c.b16 %v3201, %v3197
      %v3314 = vpack.c.b16 %v3202, %v3198
      %v3315 = vpack.c.b16 %v3203, %v3199
      %v3316 = vpack.c.b16 %v3204, %v3200
      %v3317 = vpack.c.b16 %v3209, %v3205
      %v3318 = vpack.c.b16 %v3210, %v3206
      %v3319 = vpack.c.b16 %v3211, %v3207
      %v3320 = vpack.c.b16 %v3212, %v3208
      %v3321 = vpack.c.b16 %v3217, %v3213
      %v3322 = vpack.c.b16 %v3218, %v3214
      %v3323 = vpack.c.b16 %v3219, %v3215
      %v3324 = vpack.c.b16 %v3220, %v3216
      %v3325 = vpack.c.b16 %v3225, %v3221
      %v3326 = vpack.c.b16 %v3226, %v3222
      %v3327 = vpack.c.b16 %v3227, %v3223
      %v3328 = vpack.c.b16 %v3228, %v3224
      %v3329 = vpack.c.b16 %v3233, %v3229
      %v3330 = vpack.c.b16 %v3234, %v3230
      %v3331 = vpack.c.b16 %v3235, %v3231
      %v3332 = vpack.c.b16 %v3236, %v3232
      %v3333 = vpack.c.b16 %v3241, %v3237
      %v3334 = vpack.c.b16 %v3242, %v3238
      %v3335 = vpack.c.b16 %v3243, %v3239
      %v3336 = vpack.c.b16 %v3244, %v3240
      %v3337 = vpack.c.b16 %v3249, %v3245
      %v3338 = vpack.c.b16 %v3250, %v3246
      %v3339 = vpack.c.b16 %v3251, %v3247
      %v3340 = vpack.c.b16 %v3252, %v3248
      %v3341 = vpack.c.b16 %v3257, %v3253
      %v3342 = vpack.c.b16 %v3258, %v3254
      %v3343 = vpack.c.b16 %v3259, %v3255
      %v3344 = vpack.c.b16 %v3260, %v3256
      %v3345 = vpack.c.b16 %v3265, %v3261
      %v3346 = vpack.c.b16 %v3266, %v3262
      %v3347 = vpack.c.b16 %v3267, %v3263
      %v3348 = vpack.c.b16 %v3268, %v3264
      %v3349 = vpack.c.b16 %v3273, %v3269
      %v3350 = vpack.c.b16 %v3274, %v3270
      %v3351 = vpack.c.b16 %v3275, %v3271
      %v3352 = vpack.c.b16 %v3276, %v3272
      %v3353 = vpack.c.b16 %v3281, %v3277
      %v3354 = vpack.c.b16 %v3282, %v3278
      %v3355 = vpack.c.b16 %v3283, %v3279
      %v3356 = vpack.c.b16 %v3284, %v3280
      %v3357 = vpack.c.b16 %v3289, %v3285
      %v3358 = vpack.c.b16 %v3290, %v3286
      %v3359 = vpack.c.b16 %v3291, %v3287
      %v3360 = vpack.c.b16 %v3292, %v3288
      %v3361 = vpack.c.b16 %v3297, %v3293
      %v3362 = vpack.c.b16 %v3298, %v3294
      %v3363 = vpack.c.b16 %v3299, %v3295
      %v3364 = vpack.c.b16 %v3300, %v3296
      %3429 = vmatprep.subr.bf16.mxu0 %v3330
      %3430 = vmatpush1.bf16.msra.mxu0 %v3329
      %3431 = vmatprep.subr.bf16.mxu0 %v3326
      %3432 = vmatpush1.bf16.msra.mxu0 %v3325
      %3433 = vmatprep.subr.bf16.mxu0 %v3322
      %3434 = vmatpush1.bf16.msra.mxu0 %v3321
      %3435 = vmatprep.subr.bf16.mxu0 %v3318
      %3436 = vmatpush1.bf16.msra.mxu0 %v3317
      %3437 = vmatprep.subr.bf16.mxu0 %v3314
      %3438 = vmatpush1.bf16.msra.mxu0 %v3313
      %3439 = vmatprep.subr.bf16.mxu0 %v3310
      %3440 = vmatpush1.bf16.msra.mxu0 %v3309
      %3441 = vmatprep.subr.bf16.mxu0 %v3306
      %3442 = vmatpush1.bf16.msra.mxu0 %v3305
      %3443 = vmatprep.subr.bf16.mxu0 %v3302
      %3444 = vmatpush1.bf16.msra.mxu0 %v3301
      %3445 = vmatprep.subr.bf16.mxu0 %v3362
      %3446 = vmatpush2.bf16.msra.mxu0 %v3361
      %3447 = vmatprep.subr.bf16.mxu0 %v3358
      %3448 = vmatpush2.bf16.msra.mxu0 %v3357
      %3449 = vmatprep.subr.bf16.mxu0 %v3354
      %3450 = vmatpush2.bf16.msra.mxu0 %v3353
      %3451 = vmatprep.subr.bf16.mxu0 %v3350
      %3452 = vmatpush2.bf16.msra.mxu0 %v3349
      %3453 = vmatprep.subr.bf16.mxu0 %v3346
      %3454 = vmatpush2.bf16.msra.mxu0 %v3345
      %3455 = vmatprep.subr.bf16.mxu0 %v3342
      %3456 = vmatpush2.bf16.msra.mxu0 %v3341
      %3457 = vmatprep.subr.bf16.mxu0 %v3338
      %3458 = vmatpush2.bf16.msra.mxu0 %v3337
      %3459 = vmatprep.subr.bf16.mxu0 %v3334
      %3460 = vmatpush2.bf16.msra.mxu0 %v3333
      %3461 = vmatprep.mubr.bf16.mxu0 %v3043
      %3462 = vmatmul.mubr.bf16.gmra.mxu0 %v3042
      %v3463 = vpop.f32.mrf.mxu0
      %v3464 = vadd.f32 0.0, %v3463
      %v3465 = vpop.f32.mrf.mxu0
      %v3466 = vadd.f32 0.0, %v3465
      %v3467 = vpop.f32.mrf.mxu0
      %v3468 = vpop.f32.mrf.mxu0
      %3469 = vdwg.mxu0
      %3470 = vmatprep.subr.bf16.mxu0 %v3332
      %3471 = vmatpush1.bf16.msra.mxu0 %v3331
      %3472 = vmatprep.subr.bf16.mxu0 %v3328
      %3473 = vmatpush1.bf16.msra.mxu0 %v3327
      %3474 = vmatprep.subr.bf16.mxu0 %v3324
      %3475 = vmatpush1.bf16.msra.mxu0 %v3323
      %3476 = vmatprep.subr.bf16.mxu0 %v3320
      %3477 = vmatpush1.bf16.msra.mxu0 %v3319
      %3478 = vmatprep.subr.bf16.mxu0 %v3316
      %3479 = vmatpush1.bf16.msra.mxu0 %v3315
      %3480 = vmatprep.subr.bf16.mxu0 %v3312
      %3481 = vmatpush1.bf16.msra.mxu0 %v3311
      %3482 = vmatprep.subr.bf16.mxu0 %v3308
      %3483 = vmatpush1.bf16.msra.mxu0 %v3307
      %3484 = vmatprep.subr.bf16.mxu0 %v3304
      %3485 = vmatpush1.bf16.msra.mxu0 %v3303
      %3486 = vmatprep.subr.bf16.mxu0 %v3364
      %3487 = vmatpush2.bf16.msra.mxu0 %v3363
      %3488 = vmatprep.subr.bf16.mxu0 %v3360
      %3489 = vmatpush2.bf16.msra.mxu0 %v3359
      %3490 = vmatprep.subr.bf16.mxu0 %v3356
      %3491 = vmatpush2.bf16.msra.mxu0 %v3355
      %3492 = vmatprep.subr.bf16.mxu0 %v3352
      %3493 = vmatpush2.bf16.msra.mxu0 %v3351
      %3494 = vmatprep.subr.bf16.mxu0 %v3348
      %3495 = vmatpush2.bf16.msra.mxu0 %v3347
      %3496 = vmatprep.subr.bf16.mxu0 %v3344
      %3497 = vmatpush2.bf16.msra.mxu0 %v3343
      %3498 = vmatprep.subr.bf16.mxu0 %v3340
      %3499 = vmatpush2.bf16.msra.mxu0 %v3339
      %3500 = vmatprep.subr.bf16.mxu0 %v3336
      %3501 = vmatpush2.bf16.msra.mxu0 %v3335
      %3502 = vmatprep.mubr.bf16.mxu0 %v3043
      %3503 = vmatmul.mubr.bf16.gmra.mxu0 %v3042
      %v3504 = vpop.f32.mrf.mxu0
      %v3505 = vadd.f32 0.0, %v3504
      %v3506 = vpop.f32.mrf.mxu0
      %v3507 = vadd.f32 0.0, %v3506
      %v3508 = vpop.f32.mrf.mxu0
      %v3509 = vpop.f32.mrf.mxu0
      %3510 = vdwg.mxu0
      %v3511 = vadd.f32 %v3036, %v3464
      %v3512 = vadd.f32 %v3037, %v3466
      %v3513 = vadd.f32 %v3038, %v3505
      %v3514 = vadd.f32 %v3039, %v3507
      %v3515 = vmax.f32 %v1121, %v1123
      %v3516 = vmax.f32 %v1122, %v1124
      %v3517 = vpack.c.bf16 %v3515, %v3515
      %v3518 = vpack.c.bf16 %v3516, %v3516
      %s3519 = scalar_lea.vmem %s3, 2560
      %v3520 = vld [vmem:[%s3519] sm:$0xff]
      %v3521 = vld [vmem:[%s3519 + $0x8] sm:$0xff]
      %v3522 = vld [vmem:[%s3519 + $0x10] sm:$0xff]
      %v3523 = vld [vmem:[%s3519 + $0x18] sm:$0xff]
      %v3524 = vld [vmem:[%s3519 + $0x20] sm:$0xff]
      %v3525 = vld [vmem:[%s3519 + $0x28] sm:$0xff]
      %v3526 = vld [vmem:[%s3519 + $0x30] sm:$0xff]
      %v3527 = vld [vmem:[%s3519 + $0x38] sm:$0xff]
      %v3528 = vld [vmem:[%s3519 + $0x40] sm:$0xff]
      %v3529 = vld [vmem:[%s3519 + $0x48] sm:$0xff]
      %v3530 = vld [vmem:[%s3519 + $0x50] sm:$0xff]
      %v3531 = vld [vmem:[%s3519 + $0x58] sm:$0xff]
      %v3532 = vld [vmem:[%s3519 + $0x60] sm:$0xff]
      %v3533 = vld [vmem:[%s3519 + $0x68] sm:$0xff]
      %v3534 = vld [vmem:[%s3519 + $0x70] sm:$0xff]
      %v3535 = vld [vmem:[%s3519 + $0x78] sm:$0xff]
      %v3536 = vld [vmem:[%s3519 + $0x80] sm:$0xff]
      %v3537 = vld [vmem:[%s3519 + $0x88] sm:$0xff]
      %v3538 = vld [vmem:[%s3519 + $0x90] sm:$0xff]
      %v3539 = vld [vmem:[%s3519 + $0x98] sm:$0xff]
      %v3540 = vld [vmem:[%s3519 + $0xa0] sm:$0xff]
      %v3541 = vld [vmem:[%s3519 + $0xa8] sm:$0xff]
      %v3542 = vld [vmem:[%s3519 + $0xb0] sm:$0xff]
      %v3543 = vld [vmem:[%s3519 + $0xb8] sm:$0xff]
      %v3544 = vld [vmem:[%s3519 + $0xc0] sm:$0xff]
      %v3545 = vld [vmem:[%s3519 + $0xc8] sm:$0xff]
      %v3546 = vld [vmem:[%s3519 + $0xd0] sm:$0xff]
      %v3547 = vld [vmem:[%s3519 + $0xd8] sm:$0xff]
      %v3548 = vld [vmem:[%s3519 + $0xe0] sm:$0xff]
      %v3549 = vld [vmem:[%s3519 + $0xe8] sm:$0xff]
      %v3550 = vld [vmem:[%s3519 + $0xf0] sm:$0xff]
      %v3551 = vld [vmem:[%s3519 + $0xf8] sm:$0xff]
      %v3552 = vld [vmem:[%s3519 + $0x100] sm:$0xff]
      %v3553 = vld [vmem:[%s3519 + $0x108] sm:$0xff]
      %v3554 = vld [vmem:[%s3519 + $0x110] sm:$0xff]
      %v3555 = vld [vmem:[%s3519 + $0x118] sm:$0xff]
      %v3556 = vld [vmem:[%s3519 + $0x120] sm:$0xff]
      %v3557 = vld [vmem:[%s3519 + $0x128] sm:$0xff]
      %v3558 = vld [vmem:[%s3519 + $0x130] sm:$0xff]
      %v3559 = vld [vmem:[%s3519 + $0x138] sm:$0xff]
      %v3560 = vld [vmem:[%s3519 + $0x140] sm:$0xff]
      %v3561 = vld [vmem:[%s3519 + $0x148] sm:$0xff]
      %v3562 = vld [vmem:[%s3519 + $0x150] sm:$0xff]
      %v3563 = vld [vmem:[%s3519 + $0x158] sm:$0xff]
      %v3564 = vld [vmem:[%s3519 + $0x160] sm:$0xff]
      %v3565 = vld [vmem:[%s3519 + $0x168] sm:$0xff]
      %v3566 = vld [vmem:[%s3519 + $0x170] sm:$0xff]
      %v3567 = vld [vmem:[%s3519 + $0x178] sm:$0xff]
      %v3568 = vld [vmem:[%s3519 + $0x180] sm:$0xff]
      %v3569 = vld [vmem:[%s3519 + $0x188] sm:$0xff]
      %v3570 = vld [vmem:[%s3519 + $0x190] sm:$0xff]
      %v3571 = vld [vmem:[%s3519 + $0x198] sm:$0xff]
      %v3572 = vld [vmem:[%s3519 + $0x1a0] sm:$0xff]
      %v3573 = vld [vmem:[%s3519 + $0x1a8] sm:$0xff]
      %v3574 = vld [vmem:[%s3519 + $0x1b0] sm:$0xff]
      %v3575 = vld [vmem:[%s3519 + $0x1b8] sm:$0xff]
      %v3576 = vld [vmem:[%s3519 + $0x1c0] sm:$0xff]
      %v3577 = vld [vmem:[%s3519 + $0x1c8] sm:$0xff]
      %v3578 = vld [vmem:[%s3519 + $0x1d0] sm:$0xff]
      %v3579 = vld [vmem:[%s3519 + $0x1d8] sm:$0xff]
      %v3580 = vld [vmem:[%s3519 + $0x1e0] sm:$0xff]
      %v3581 = vld [vmem:[%s3519 + $0x1e8] sm:$0xff]
      %v3582 = vld [vmem:[%s3519 + $0x1f0] sm:$0xff]
      %v3583 = vld [vmem:[%s3519 + $0x1f8] sm:$0xff]
      %v3648 = vunpack.c.l.b16 %v3520
      %v3649 = vunpack.c.h.b16 %v3520
      %v3650 = vunpack.c.l.b16 %v3521
      %v3651 = vunpack.c.h.b16 %v3521
      %v3652 = vunpack.c.l.b16 %v3522
      %v3653 = vunpack.c.h.b16 %v3522
      %v3654 = vunpack.c.l.b16 %v3523
      %v3655 = vunpack.c.h.b16 %v3523
      %v3656 = vunpack.c.l.b16 %v3524
      %v3657 = vunpack.c.h.b16 %v3524
      %v3658 = vunpack.c.l.b16 %v3525
      %v3659 = vunpack.c.h.b16 %v3525
      %v3660 = vunpack.c.l.b16 %v3526
      %v3661 = vunpack.c.h.b16 %v3526
      %v3662 = vunpack.c.l.b16 %v3527
      %v3663 = vunpack.c.h.b16 %v3527
      %v3664 = vunpack.c.l.b16 %v3528
      %v3665 = vunpack.c.h.b16 %v3528
      %v3666 = vunpack.c.l.b16 %v3529
      %v3667 = vunpack.c.h.b16 %v3529
      %v3668 = vunpack.c.l.b16 %v3530
      %v3669 = vunpack.c.h.b16 %v3530
      %v3670 = vunpack.c.l.b16 %v3531
      %v3671 = vunpack.c.h.b16 %v3531
      %v3672 = vunpack.c.l.b16 %v3532
      %v3673 = vunpack.c.h.b16 %v3532
      %v3674 = vunpack.c.l.b16 %v3533
      %v3675 = vunpack.c.h.b16 %v3533
      %v3676 = vunpack.c.l.b16 %v3534
      %v3677 = vunpack.c.h.b16 %v3534
      %v3678 = vunpack.c.l.b16 %v3535
      %v3679 = vunpack.c.h.b16 %v3535
      %v3680 = vunpack.c.l.b16 %v3536
      %v3681 = vunpack.c.h.b16 %v3536
      %v3682 = vunpack.c.l.b16 %v3537
      %v3683 = vunpack.c.h.b16 %v3537
      %v3684 = vunpack.c.l.b16 %v3538
      %v3685 = vunpack.c.h.b16 %v3538
      %v3686 = vunpack.c.l.b16 %v3539
      %v3687 = vunpack.c.h.b16 %v3539
      %v3688 = vunpack.c.l.b16 %v3540
      %v3689 = vunpack.c.h.b16 %v3540
      %v3690 = vunpack.c.l.b16 %v3541
      %v3691 = vunpack.c.h.b16 %v3541
      %v3692 = vunpack.c.l.b16 %v3542
      %v3693 = vunpack.c.h.b16 %v3542
      %v3694 = vunpack.c.l.b16 %v3543
      %v3695 = vunpack.c.h.b16 %v3543
      %v3696 = vunpack.c.l.b16 %v3544
      %v3697 = vunpack.c.h.b16 %v3544
      %v3698 = vunpack.c.l.b16 %v3545
      %v3699 = vunpack.c.h.b16 %v3545
      %v3700 = vunpack.c.l.b16 %v3546
      %v3701 = vunpack.c.h.b16 %v3546
      %v3702 = vunpack.c.l.b16 %v3547
      %v3703 = vunpack.c.h.b16 %v3547
      %v3704 = vunpack.c.l.b16 %v3548
      %v3705 = vunpack.c.h.b16 %v3548
      %v3706 = vunpack.c.l.b16 %v3549
      %v3707 = vunpack.c.h.b16 %v3549
      %v3708 = vunpack.c.l.b16 %v3550
      %v3709 = vunpack.c.h.b16 %v3550
      %v3710 = vunpack.c.l.b16 %v3551
      %v3711 = vunpack.c.h.b16 %v3551
      %v3712 = vunpack.c.l.b16 %v3552
      %v3713 = vunpack.c.h.b16 %v3552
      %v3714 = vunpack.c.l.b16 %v3553
      %v3715 = vunpack.c.h.b16 %v3553
      %v3716 = vunpack.c.l.b16 %v3554
      %v3717 = vunpack.c.h.b16 %v3554
      %v3718 = vunpack.c.l.b16 %v3555
      %v3719 = vunpack.c.h.b16 %v3555
      %v3720 = vunpack.c.l.b16 %v3556
      %v3721 = vunpack.c.h.b16 %v3556
      %v3722 = vunpack.c.l.b16 %v3557
      %v3723 = vunpack.c.h.b16 %v3557
      %v3724 = vunpack.c.l.b16 %v3558
      %v3725 = vunpack.c.h.b16 %v3558
      %v3726 = vunpack.c.l.b16 %v3559
      %v3727 = vunpack.c.h.b16 %v3559
      %v3728 = vunpack.c.l.b16 %v3560
      %v3729 = vunpack.c.h.b16 %v3560
      %v3730 = vunpack.c.l.b16 %v3561
      %v3731 = vunpack.c.h.b16 %v3561
      %v3732 = vunpack.c.l.b16 %v3562
      %v3733 = vunpack.c.h.b16 %v3562
      %v3734 = vunpack.c.l.b16 %v3563
      %v3735 = vunpack.c.h.b16 %v3563
      %v3736 = vunpack.c.l.b16 %v3564
      %v3737 = vunpack.c.h.b16 %v3564
      %v3738 = vunpack.c.l.b16 %v3565
      %v3739 = vunpack.c.h.b16 %v3565
      %v3740 = vunpack.c.l.b16 %v3566
      %v3741 = vunpack.c.h.b16 %v3566
      %v3742 = vunpack.c.l.b16 %v3567
      %v3743 = vunpack.c.h.b16 %v3567
      %v3744 = vunpack.c.l.b16 %v3568
      %v3745 = vunpack.c.h.b16 %v3568
      %v3746 = vunpack.c.l.b16 %v3569
      %v3747 = vunpack.c.h.b16 %v3569
      %v3748 = vunpack.c.l.b16 %v3570
      %v3749 = vunpack.c.h.b16 %v3570
      %v3750 = vunpack.c.l.b16 %v3571
      %v3751 = vunpack.c.h.b16 %v3571
      %v3752 = vunpack.c.l.b16 %v3572
      %v3753 = vunpack.c.h.b16 %v3572
      %v3754 = vunpack.c.l.b16 %v3573
      %v3755 = vunpack.c.h.b16 %v3573
      %v3756 = vunpack.c.l.b16 %v3574
      %v3757 = vunpack.c.h.b16 %v3574
      %v3758 = vunpack.c.l.b16 %v3575
      %v3759 = vunpack.c.h.b16 %v3575
      %v3760 = vunpack.c.l.b16 %v3576
      %v3761 = vunpack.c.h.b16 %v3576
      %v3762 = vunpack.c.l.b16 %v3577
      %v3763 = vunpack.c.h.b16 %v3577
      %v3764 = vunpack.c.l.b16 %v3578
      %v3765 = vunpack.c.h.b16 %v3578
      %v3766 = vunpack.c.l.b16 %v3579
      %v3767 = vunpack.c.h.b16 %v3579
      %v3768 = vunpack.c.l.b16 %v3580
      %v3769 = vunpack.c.h.b16 %v3580
      %v3770 = vunpack.c.l.b16 %v3581
      %v3771 = vunpack.c.h.b16 %v3581
      %v3772 = vunpack.c.l.b16 %v3582
      %v3773 = vunpack.c.h.b16 %v3582
      %v3774 = vunpack.c.l.b16 %v3583
      %v3775 = vunpack.c.h.b16 %v3583
      %v3776 = vpack.c.b16 %v3652, %v3648
      %v3777 = vpack.c.b16 %v3653, %v3649
      %v3778 = vpack.c.b16 %v3654, %v3650
      %v3779 = vpack.c.b16 %v3655, %v3651
      %v3780 = vpack.c.b16 %v3660, %v3656
      %v3781 = vpack.c.b16 %v3661, %v3657
      %v3782 = vpack.c.b16 %v3662, %v3658
      %v3783 = vpack.c.b16 %v3663, %v3659
      %v3784 = vpack.c.b16 %v3668, %v3664
      %v3785 = vpack.c.b16 %v3669, %v3665
      %v3786 = vpack.c.b16 %v3670, %v3666
      %v3787 = vpack.c.b16 %v3671, %v3667
      %v3788 = vpack.c.b16 %v3676, %v3672
      %v3789 = vpack.c.b16 %v3677, %v3673
      %v3790 = vpack.c.b16 %v3678, %v3674
      %v3791 = vpack.c.b16 %v3679, %v3675
      %v3792 = vpack.c.b16 %v3684, %v3680
      %v3793 = vpack.c.b16 %v3685, %v3681
      %v3794 = vpack.c.b16 %v3686, %v3682
      %v3795 = vpack.c.b16 %v3687, %v3683
      %v3796 = vpack.c.b16 %v3692, %v3688
      %v3797 = vpack.c.b16 %v3693, %v3689
      %v3798 = vpack.c.b16 %v3694, %v3690
      %v3799 = vpack.c.b16 %v3695, %v3691
      %v3800 = vpack.c.b16 %v3700, %v3696
      %v3801 = vpack.c.b16 %v3701, %v3697
      %v3802 = vpack.c.b16 %v3702, %v3698
      %v3803 = vpack.c.b16 %v3703, %v3699
      %v3804 = vpack.c.b16 %v3708, %v3704
      %v3805 = vpack.c.b16 %v3709, %v3705
      %v3806 = vpack.c.b16 %v3710, %v3706
      %v3807 = vpack.c.b16 %v3711, %v3707
      %v3808 = vpack.c.b16 %v3716, %v3712
      %v3809 = vpack.c.b16 %v3717, %v3713
      %v3810 = vpack.c.b16 %v3718, %v3714
      %v3811 = vpack.c.b16 %v3719, %v3715
      %v3812 = vpack.c.b16 %v3724, %v3720
      %v3813 = vpack.c.b16 %v3725, %v3721
      %v3814 = vpack.c.b16 %v3726, %v3722
      %v3815 = vpack.c.b16 %v3727, %v3723
      %v3816 = vpack.c.b16 %v3732, %v3728
      %v3817 = vpack.c.b16 %v3733, %v3729
      %v3818 = vpack.c.b16 %v3734, %v3730
      %v3819 = vpack.c.b16 %v3735, %v3731
      %v3820 = vpack.c.b16 %v3740, %v3736
      %v3821 = vpack.c.b16 %v3741, %v3737
      %v3822 = vpack.c.b16 %v3742, %v3738
      %v3823 = vpack.c.b16 %v3743, %v3739
      %v3824 = vpack.c.b16 %v3748, %v3744
      %v3825 = vpack.c.b16 %v3749, %v3745
      %v3826 = vpack.c.b16 %v3750, %v3746
      %v3827 = vpack.c.b16 %v3751, %v3747
      %v3828 = vpack.c.b16 %v3756, %v3752
      %v3829 = vpack.c.b16 %v3757, %v3753
      %v3830 = vpack.c.b16 %v3758, %v3754
      %v3831 = vpack.c.b16 %v3759, %v3755
      %v3832 = vpack.c.b16 %v3764, %v3760
      %v3833 = vpack.c.b16 %v3765, %v3761
      %v3834 = vpack.c.b16 %v3766, %v3762
      %v3835 = vpack.c.b16 %v3767, %v3763
      %v3836 = vpack.c.b16 %v3772, %v3768
      %v3837 = vpack.c.b16 %v3773, %v3769
      %v3838 = vpack.c.b16 %v3774, %v3770
      %v3839 = vpack.c.b16 %v3775, %v3771
      %3904 = vmatprep.subr.bf16.mxu0 %v3805
      %3905 = vmatpush1.bf16.msra.mxu0 %v3804
      %3906 = vmatprep.subr.bf16.mxu0 %v3801
      %3907 = vmatpush1.bf16.msra.mxu0 %v3800
      %3908 = vmatprep.subr.bf16.mxu0 %v3797
      %3909 = vmatpush1.bf16.msra.mxu0 %v3796
      %3910 = vmatprep.subr.bf16.mxu0 %v3793
      %3911 = vmatpush1.bf16.msra.mxu0 %v3792
      %3912 = vmatprep.subr.bf16.mxu0 %v3789
      %3913 = vmatpush1.bf16.msra.mxu0 %v3788
      %3914 = vmatprep.subr.bf16.mxu0 %v3785
      %3915 = vmatpush1.bf16.msra.mxu0 %v3784
      %3916 = vmatprep.subr.bf16.mxu0 %v3781
      %3917 = vmatpush1.bf16.msra.mxu0 %v3780
      %3918 = vmatprep.subr.bf16.mxu0 %v3777
      %3919 = vmatpush1.bf16.msra.mxu0 %v3776
      %3920 = vmatprep.subr.bf16.mxu0 %v3837
      %3921 = vmatpush2.bf16.msra.mxu0 %v3836
      %3922 = vmatprep.subr.bf16.mxu0 %v3833
      %3923 = vmatpush2.bf16.msra.mxu0 %v3832
      %3924 = vmatprep.subr.bf16.mxu0 %v3829
      %3925 = vmatpush2.bf16.msra.mxu0 %v3828
      %3926 = vmatprep.subr.bf16.mxu0 %v3825
      %3927 = vmatpush2.bf16.msra.mxu0 %v3824
      %3928 = vmatprep.subr.bf16.mxu0 %v3821
      %3929 = vmatpush2.bf16.msra.mxu0 %v3820
      %3930 = vmatprep.subr.bf16.mxu0 %v3817
      %3931 = vmatpush2.bf16.msra.mxu0 %v3816
      %3932 = vmatprep.subr.bf16.mxu0 %v3813
      %3933 = vmatpush2.bf16.msra.mxu0 %v3812
      %3934 = vmatprep.subr.bf16.mxu0 %v3809
      %3935 = vmatpush2.bf16.msra.mxu0 %v3808
      %3936 = vmatprep.mubr.bf16.mxu0 %v3518
      %3937 = vmatmul.mubr.bf16.gmra.mxu0 %v3517
      %v3938 = vpop.f32.mrf.mxu0
      %v3939 = vadd.f32 0.0, %v3938
      %v3940 = vpop.f32.mrf.mxu0
      %v3941 = vadd.f32 0.0, %v3940
      %v3942 = vpop.f32.mrf.mxu0
      %v3943 = vpop.f32.mrf.mxu0
      %3944 = vdwg.mxu0
      %3945 = vmatprep.subr.bf16.mxu0 %v3807
      %3946 = vmatpush1.bf16.msra.mxu0 %v3806
      %3947 = vmatprep.subr.bf16.mxu0 %v3803
      %3948 = vmatpush1.bf16.msra.mxu0 %v3802
      %3949 = vmatprep.subr.bf16.mxu0 %v3799
      %3950 = vmatpush1.bf16.msra.mxu0 %v3798
      %3951 = vmatprep.subr.bf16.mxu0 %v3795
      %3952 = vmatpush1.bf16.msra.mxu0 %v3794
      %3953 = vmatprep.subr.bf16.mxu0 %v3791
      %3954 = vmatpush1.bf16.msra.mxu0 %v3790
      %3955 = vmatprep.subr.bf16.mxu0 %v3787
      %3956 = vmatpush1.bf16.msra.mxu0 %v3786
      %3957 = vmatprep.subr.bf16.mxu0 %v3783
      %3958 = vmatpush1.bf16.msra.mxu0 %v3782
      %3959 = vmatprep.subr.bf16.mxu0 %v3779
      %3960 = vmatpush1.bf16.msra.mxu0 %v3778
      %3961 = vmatprep.subr.bf16.mxu0 %v3839
      %3962 = vmatpush2.bf16.msra.mxu0 %v3838
      %3963 = vmatprep.subr.bf16.mxu0 %v3835
      %3964 = vmatpush2.bf16.msra.mxu0 %v3834
      %3965 = vmatprep.subr.bf16.mxu0 %v3831
      %3966 = vmatpush2.bf16.msra.mxu0 %v3830
      %3967 = vmatprep.subr.bf16.mxu0 %v3827
      %3968 = vmatpush2.bf16.msra.mxu0 %v3826
      %3969 = vmatprep.subr.bf16.mxu0 %v3823
      %3970 = vmatpush2.bf16.msra.mxu0 %v3822
      %3971 = vmatprep.subr.bf16.mxu0 %v3819
      %3972 = vmatpush2.bf16.msra.mxu0 %v3818
      %3973 = vmatprep.subr.bf16.mxu0 %v3815
      %3974 = vmatpush2.bf16.msra.mxu0 %v3814
      %3975 = vmatprep.subr.bf16.mxu0 %v3811
      %3976 = vmatpush2.bf16.msra.mxu0 %v3810
      %3977 = vmatprep.mubr.bf16.mxu0 %v3518
      %3978 = vmatmul.mubr.bf16.gmra.mxu0 %v3517
      %v3979 = vpop.f32.mrf.mxu0
      %v3980 = vadd.f32 0.0, %v3979
      %v3981 = vpop.f32.mrf.mxu0
      %v3982 = vadd.f32 0.0, %v3981
      %v3983 = vpop.f32.mrf.mxu0
      %v3984 = vpop.f32.mrf.mxu0
      %3985 = vdwg.mxu0
      %v3986 = vadd.f32 %v3511, %v3939
      %v3987 = vadd.f32 %v3512, %v3941
      %v3988 = vadd.f32 %v3513, %v3980
      %v3989 = vadd.f32 %v3514, %v3982
      %v3990 = vmax.f32 %v1125, %v1127
      %v3991 = vmax.f32 %v1126, %v1128
      %v3992 = vpack.c.bf16 %v3990, %v3990
      %v3993 = vpack.c.bf16 %v3991, %v3991
      %s3994 = scalar_lea.vmem %s3, 3072
      %v3995 = vld [vmem:[%s3994] sm:$0xff]
      %v3996 = vld [vmem:[%s3994 + $0x8] sm:$0xff]
      %v3997 = vld [vmem:[%s3994 + $0x10] sm:$0xff]
      %v3998 = vld [vmem:[%s3994 + $0x18] sm:$0xff]
      %v3999 = vld [vmem:[%s3994 + $0x20] sm:$0xff]
      %v4000 = vld [vmem:[%s3994 + $0x28] sm:$0xff]
      %v4001 = vld [vmem:[%s3994 + $0x30] sm:$0xff]
      %v4002 = vld [vmem:[%s3994 + $0x38] sm:$0xff]
      %v4003 = vld [vmem:[%s3994 + $0x40] sm:$0xff]
      %v4004 = vld [vmem:[%s3994 + $0x48] sm:$0xff]
      %v4005 = vld [vmem:[%s3994 + $0x50] sm:$0xff]
      %v4006 = vld [vmem:[%s3994 + $0x58] sm:$0xff]
      %v4007 = vld [vmem:[%s3994 + $0x60] sm:$0xff]
      %v4008 = vld [vmem:[%s3994 + $0x68] sm:$0xff]
      %v4009 = vld [vmem:[%s3994 + $0x70] sm:$0xff]
      %v4010 = vld [vmem:[%s3994 + $0x78] sm:$0xff]
      %v4011 = vld [vmem:[%s3994 + $0x80] sm:$0xff]
      %v4012 = vld [vmem:[%s3994 + $0x88] sm:$0xff]
      %v4013 = vld [vmem:[%s3994 + $0x90] sm:$0xff]
      %v4014 = vld [vmem:[%s3994 + $0x98] sm:$0xff]
      %v4015 = vld [vmem:[%s3994 + $0xa0] sm:$0xff]
      %v4016 = vld [vmem:[%s3994 + $0xa8] sm:$0xff]
      %v4017 = vld [vmem:[%s3994 + $0xb0] sm:$0xff]
      %v4018 = vld [vmem:[%s3994 + $0xb8] sm:$0xff]
      %v4019 = vld [vmem:[%s3994 + $0xc0] sm:$0xff]
      %v4020 = vld [vmem:[%s3994 + $0xc8] sm:$0xff]
      %v4021 = vld [vmem:[%s3994 + $0xd0] sm:$0xff]
      %v4022 = vld [vmem:[%s3994 + $0xd8] sm:$0xff]
      %v4023 = vld [vmem:[%s3994 + $0xe0] sm:$0xff]
      %v4024 = vld [vmem:[%s3994 + $0xe8] sm:$0xff]
      %v4025 = vld [vmem:[%s3994 + $0xf0] sm:$0xff]
      %v4026 = vld [vmem:[%s3994 + $0xf8] sm:$0xff]
      %v4027 = vld [vmem:[%s3994 + $0x100] sm:$0xff]
      %v4028 = vld [vmem:[%s3994 + $0x108] sm:$0xff]
      %v4029 = vld [vmem:[%s3994 + $0x110] sm:$0xff]
      %v4030 = vld [vmem:[%s3994 + $0x118] sm:$0xff]
      %v4031 = vld [vmem:[%s3994 + $0x120] sm:$0xff]
      %v4032 = vld [vmem:[%s3994 + $0x128] sm:$0xff]
      %v4033 = vld [vmem:[%s3994 + $0x130] sm:$0xff]
      %v4034 = vld [vmem:[%s3994 + $0x138] sm:$0xff]
      %v4035 = vld [vmem:[%s3994 + $0x140] sm:$0xff]
      %v4036 = vld [vmem:[%s3994 + $0x148] sm:$0xff]
      %v4037 = vld [vmem:[%s3994 + $0x150] sm:$0xff]
      %v4038 = vld [vmem:[%s3994 + $0x158] sm:$0xff]
      %v4039 = vld [vmem:[%s3994 + $0x160] sm:$0xff]
      %v4040 = vld [vmem:[%s3994 + $0x168] sm:$0xff]
      %v4041 = vld [vmem:[%s3994 + $0x170] sm:$0xff]
      %v4042 = vld [vmem:[%s3994 + $0x178] sm:$0xff]
      %v4043 = vld [vmem:[%s3994 + $0x180] sm:$0xff]
      %v4044 = vld [vmem:[%s3994 + $0x188] sm:$0xff]
      %v4045 = vld [vmem:[%s3994 + $0x190] sm:$0xff]
      %v4046 = vld [vmem:[%s3994 + $0x198] sm:$0xff]
      %v4047 = vld [vmem:[%s3994 + $0x1a0] sm:$0xff]
      %v4048 = vld [vmem:[%s3994 + $0x1a8] sm:$0xff]
      %v4049 = vld [vmem:[%s3994 + $0x1b0] sm:$0xff]
      %v4050 = vld [vmem:[%s3994 + $0x1b8] sm:$0xff]
      %v4051 = vld [vmem:[%s3994 + $0x1c0] sm:$0xff]
      %v4052 = vld [vmem:[%s3994 + $0x1c8] sm:$0xff]
      %v4053 = vld [vmem:[%s3994 + $0x1d0] sm:$0xff]
      %v4054 = vld [vmem:[%s3994 + $0x1d8] sm:$0xff]
      %v4055 = vld [vmem:[%s3994 + $0x1e0] sm:$0xff]
      %v4056 = vld [vmem:[%s3994 + $0x1e8] sm:$0xff]
      %v4057 = vld [vmem:[%s3994 + $0x1f0] sm:$0xff]
      %v4058 = vld [vmem:[%s3994 + $0x1f8] sm:$0xff]
      %v4123 = vunpack.c.l.b16 %v3995
      %v4124 = vunpack.c.h.b16 %v3995
      %v4125 = vunpack.c.l.b16 %v3996
      %v4126 = vunpack.c.h.b16 %v3996
      %v4127 = vunpack.c.l.b16 %v3997
      %v4128 = vunpack.c.h.b16 %v3997
      %v4129 = vunpack.c.l.b16 %v3998
      %v4130 = vunpack.c.h.b16 %v3998
      %v4131 = vunpack.c.l.b16 %v3999
      %v4132 = vunpack.c.h.b16 %v3999
      %v4133 = vunpack.c.l.b16 %v4000
      %v4134 = vunpack.c.h.b16 %v4000
      %v4135 = vunpack.c.l.b16 %v4001
      %v4136 = vunpack.c.h.b16 %v4001
      %v4137 = vunpack.c.l.b16 %v4002
      %v4138 = vunpack.c.h.b16 %v4002
      %v4139 = vunpack.c.l.b16 %v4003
      %v4140 = vunpack.c.h.b16 %v4003
      %v4141 = vunpack.c.l.b16 %v4004
      %v4142 = vunpack.c.h.b16 %v4004
      %v4143 = vunpack.c.l.b16 %v4005
      %v4144 = vunpack.c.h.b16 %v4005
      %v4145 = vunpack.c.l.b16 %v4006
      %v4146 = vunpack.c.h.b16 %v4006
      %v4147 = vunpack.c.l.b16 %v4007
      %v4148 = vunpack.c.h.b16 %v4007
      %v4149 = vunpack.c.l.b16 %v4008
      %v4150 = vunpack.c.h.b16 %v4008
      %v4151 = vunpack.c.l.b16 %v4009
      %v4152 = vunpack.c.h.b16 %v4009
      %v4153 = vunpack.c.l.b16 %v4010
      %v4154 = vunpack.c.h.b16 %v4010
      %v4155 = vunpack.c.l.b16 %v4011
      %v4156 = vunpack.c.h.b16 %v4011
      %v4157 = vunpack.c.l.b16 %v4012
      %v4158 = vunpack.c.h.b16 %v4012
      %v4159 = vunpack.c.l.b16 %v4013
      %v4160 = vunpack.c.h.b16 %v4013
      %v4161 = vunpack.c.l.b16 %v4014
      %v4162 = vunpack.c.h.b16 %v4014
      %v4163 = vunpack.c.l.b16 %v4015
      %v4164 = vunpack.c.h.b16 %v4015
      %v4165 = vunpack.c.l.b16 %v4016
      %v4166 = vunpack.c.h.b16 %v4016
      %v4167 = vunpack.c.l.b16 %v4017
      %v4168 = vunpack.c.h.b16 %v4017
      %v4169 = vunpack.c.l.b16 %v4018
      %v4170 = vunpack.c.h.b16 %v4018
      %v4171 = vunpack.c.l.b16 %v4019
      %v4172 = vunpack.c.h.b16 %v4019
      %v4173 = vunpack.c.l.b16 %v4020
      %v4174 = vunpack.c.h.b16 %v4020
      %v4175 = vunpack.c.l.b16 %v4021
      %v4176 = vunpack.c.h.b16 %v4021
      %v4177 = vunpack.c.l.b16 %v4022
      %v4178 = vunpack.c.h.b16 %v4022
      %v4179 = vunpack.c.l.b16 %v4023
      %v4180 = vunpack.c.h.b16 %v4023
      %v4181 = vunpack.c.l.b16 %v4024
      %v4182 = vunpack.c.h.b16 %v4024
      %v4183 = vunpack.c.l.b16 %v4025
      %v4184 = vunpack.c.h.b16 %v4025
      %v4185 = vunpack.c.l.b16 %v4026
      %v4186 = vunpack.c.h.b16 %v4026
      %v4187 = vunpack.c.l.b16 %v4027
      %v4188 = vunpack.c.h.b16 %v4027
      %v4189 = vunpack.c.l.b16 %v4028
      %v4190 = vunpack.c.h.b16 %v4028
      %v4191 = vunpack.c.l.b16 %v4029
      %v4192 = vunpack.c.h.b16 %v4029
      %v4193 = vunpack.c.l.b16 %v4030
      %v4194 = vunpack.c.h.b16 %v4030
      %v4195 = vunpack.c.l.b16 %v4031
      %v4196 = vunpack.c.h.b16 %v4031
      %v4197 = vunpack.c.l.b16 %v4032
      %v4198 = vunpack.c.h.b16 %v4032
      %v4199 = vunpack.c.l.b16 %v4033
      %v4200 = vunpack.c.h.b16 %v4033
      %v4201 = vunpack.c.l.b16 %v4034
      %v4202 = vunpack.c.h.b16 %v4034
      %v4203 = vunpack.c.l.b16 %v4035
      %v4204 = vunpack.c.h.b16 %v4035
      %v4205 = vunpack.c.l.b16 %v4036
      %v4206 = vunpack.c.h.b16 %v4036
      %v4207 = vunpack.c.l.b16 %v4037
      %v4208 = vunpack.c.h.b16 %v4037
      %v4209 = vunpack.c.l.b16 %v4038
      %v4210 = vunpack.c.h.b16 %v4038
      %v4211 = vunpack.c.l.b16 %v4039
      %v4212 = vunpack.c.h.b16 %v4039
      %v4213 = vunpack.c.l.b16 %v4040
      %v4214 = vunpack.c.h.b16 %v4040
      %v4215 = vunpack.c.l.b16 %v4041
      %v4216 = vunpack.c.h.b16 %v4041
      %v4217 = vunpack.c.l.b16 %v4042
      %v4218 = vunpack.c.h.b16 %v4042
      %v4219 = vunpack.c.l.b16 %v4043
      %v4220 = vunpack.c.h.b16 %v4043
      %v4221 = vunpack.c.l.b16 %v4044
      %v4222 = vunpack.c.h.b16 %v4044
      %v4223 = vunpack.c.l.b16 %v4045
      %v4224 = vunpack.c.h.b16 %v4045
      %v4225 = vunpack.c.l.b16 %v4046
      %v4226 = vunpack.c.h.b16 %v4046
      %v4227 = vunpack.c.l.b16 %v4047
      %v4228 = vunpack.c.h.b16 %v4047
      %v4229 = vunpack.c.l.b16 %v4048
      %v4230 = vunpack.c.h.b16 %v4048
      %v4231 = vunpack.c.l.b16 %v4049
      %v4232 = vunpack.c.h.b16 %v4049
      %v4233 = vunpack.c.l.b16 %v4050
      %v4234 = vunpack.c.h.b16 %v4050
      %v4235 = vunpack.c.l.b16 %v4051
      %v4236 = vunpack.c.h.b16 %v4051
      %v4237 = vunpack.c.l.b16 %v4052
      %v4238 = vunpack.c.h.b16 %v4052
      %v4239 = vunpack.c.l.b16 %v4053
      %v4240 = vunpack.c.h.b16 %v4053
      %v4241 = vunpack.c.l.b16 %v4054
      %v4242 = vunpack.c.h.b16 %v4054
      %v4243 = vunpack.c.l.b16 %v4055
      %v4244 = vunpack.c.h.b16 %v4055
      %v4245 = vunpack.c.l.b16 %v4056
      %v4246 = vunpack.c.h.b16 %v4056
      %v4247 = vunpack.c.l.b16 %v4057
      %v4248 = vunpack.c.h.b16 %v4057
      %v4249 = vunpack.c.l.b16 %v4058
      %v4250 = vunpack.c.h.b16 %v4058
      %v4251 = vpack.c.b16 %v4127, %v4123
      %v4252 = vpack.c.b16 %v4128, %v4124
      %v4253 = vpack.c.b16 %v4129, %v4125
      %v4254 = vpack.c.b16 %v4130, %v4126
      %v4255 = vpack.c.b16 %v4135, %v4131
      %v4256 = vpack.c.b16 %v4136, %v4132
      %v4257 = vpack.c.b16 %v4137, %v4133
      %v4258 = vpack.c.b16 %v4138, %v4134
      %v4259 = vpack.c.b16 %v4143, %v4139
      %v4260 = vpack.c.b16 %v4144, %v4140
      %v4261 = vpack.c.b16 %v4145, %v4141
      %v4262 = vpack.c.b16 %v4146, %v4142
      %v4263 = vpack.c.b16 %v4151, %v4147
      %v4264 = vpack.c.b16 %v4152, %v4148
      %v4265 = vpack.c.b16 %v4153, %v4149
      %v4266 = vpack.c.b16 %v4154, %v4150
      %v4267 = vpack.c.b16 %v4159, %v4155
      %v4268 = vpack.c.b16 %v4160, %v4156
      %v4269 = vpack.c.b16 %v4161, %v4157
      %v4270 = vpack.c.b16 %v4162, %v4158
      %v4271 = vpack.c.b16 %v4167, %v4163
      %v4272 = vpack.c.b16 %v4168, %v4164
      %v4273 = vpack.c.b16 %v4169, %v4165
      %v4274 = vpack.c.b16 %v4170, %v4166
      %v4275 = vpack.c.b16 %v4175, %v4171
      %v4276 = vpack.c.b16 %v4176, %v4172
      %v4277 = vpack.c.b16 %v4177, %v4173
      %v4278 = vpack.c.b16 %v4178, %v4174
      %v4279 = vpack.c.b16 %v4183, %v4179
      %v4280 = vpack.c.b16 %v4184, %v4180
      %v4281 = vpack.c.b16 %v4185, %v4181
      %v4282 = vpack.c.b16 %v4186, %v4182
      %v4283 = vpack.c.b16 %v4191, %v4187
      %v4284 = vpack.c.b16 %v4192, %v4188
      %v4285 = vpack.c.b16 %v4193, %v4189
      %v4286 = vpack.c.b16 %v4194, %v4190
      %v4287 = vpack.c.b16 %v4199, %v4195
      %v4288 = vpack.c.b16 %v4200, %v4196
      %v4289 = vpack.c.b16 %v4201, %v4197
      %v4290 = vpack.c.b16 %v4202, %v4198
      %v4291 = vpack.c.b16 %v4207, %v4203
      %v4292 = vpack.c.b16 %v4208, %v4204
      %v4293 = vpack.c.b16 %v4209, %v4205
      %v4294 = vpack.c.b16 %v4210, %v4206
      %v4295 = vpack.c.b16 %v4215, %v4211
      %v4296 = vpack.c.b16 %v4216, %v4212
      %v4297 = vpack.c.b16 %v4217, %v4213
      %v4298 = vpack.c.b16 %v4218, %v4214
      %v4299 = vpack.c.b16 %v4223, %v4219
      %v4300 = vpack.c.b16 %v4224, %v4220
      %v4301 = vpack.c.b16 %v4225, %v4221
      %v4302 = vpack.c.b16 %v4226, %v4222
      %v4303 = vpack.c.b16 %v4231, %v4227
      %v4304 = vpack.c.b16 %v4232, %v4228
      %v4305 = vpack.c.b16 %v4233, %v4229
      %v4306 = vpack.c.b16 %v4234, %v4230
      %v4307 = vpack.c.b16 %v4239, %v4235
      %v4308 = vpack.c.b16 %v4240, %v4236
      %v4309 = vpack.c.b16 %v4241, %v4237
      %v4310 = vpack.c.b16 %v4242, %v4238
      %v4311 = vpack.c.b16 %v4247, %v4243
      %v4312 = vpack.c.b16 %v4248, %v4244
      %v4313 = vpack.c.b16 %v4249, %v4245
      %v4314 = vpack.c.b16 %v4250, %v4246
      %4379 = vmatprep.subr.bf16.mxu0 %v4280
      %4380 = vmatpush1.bf16.msra.mxu0 %v4279
      %4381 = vmatprep.subr.bf16.mxu0 %v4276
      %4382 = vmatpush1.bf16.msra.mxu0 %v4275
      %4383 = vmatprep.subr.bf16.mxu0 %v4272
      %4384 = vmatpush1.bf16.msra.mxu0 %v4271
      %4385 = vmatprep.subr.bf16.mxu0 %v4268
      %4386 = vmatpush1.bf16.msra.mxu0 %v4267
      %4387 = vmatprep.subr.bf16.mxu0 %v4264
      %4388 = vmatpush1.bf16.msra.mxu0 %v4263
      %4389 = vmatprep.subr.bf16.mxu0 %v4260
      %4390 = vmatpush1.bf16.msra.mxu0 %v4259
      %4391 = vmatprep.subr.bf16.mxu0 %v4256
      %4392 = vmatpush1.bf16.msra.mxu0 %v4255
      %4393 = vmatprep.subr.bf16.mxu0 %v4252
      %4394 = vmatpush1.bf16.msra.mxu0 %v4251
      %4395 = vmatprep.subr.bf16.mxu0 %v4312
      %4396 = vmatpush2.bf16.msra.mxu0 %v4311
      %4397 = vmatprep.subr.bf16.mxu0 %v4308
      %4398 = vmatpush2.bf16.msra.mxu0 %v4307
      %4399 = vmatprep.subr.bf16.mxu0 %v4304
      %4400 = vmatpush2.bf16.msra.mxu0 %v4303
      %4401 = vmatprep.subr.bf16.mxu0 %v4300
      %4402 = vmatpush2.bf16.msra.mxu0 %v4299
      %4403 = vmatprep.subr.bf16.mxu0 %v4296
      %4404 = vmatpush2.bf16.msra.mxu0 %v4295
      %4405 = vmatprep.subr.bf16.mxu0 %v4292
      %4406 = vmatpush2.bf16.msra.mxu0 %v4291
      %4407 = vmatprep.subr.bf16.mxu0 %v4288
      %4408 = vmatpush2.bf16.msra.mxu0 %v4287
      %4409 = vmatprep.subr.bf16.mxu0 %v4284
      %4410 = vmatpush2.bf16.msra.mxu0 %v4283
      %4411 = vmatprep.mubr.bf16.mxu0 %v3993
      %4412 = vmatmul.mubr.bf16.gmra.mxu0 %v3992
      %v4413 = vpop.f32.mrf.mxu0
      %v4414 = vadd.f32 0.0, %v4413
      %v4415 = vpop.f32.mrf.mxu0
      %v4416 = vadd.f32 0.0, %v4415
      %v4417 = vpop.f32.mrf.mxu0
      %v4418 = vpop.f32.mrf.mxu0
      %4419 = vdwg.mxu0
      %4420 = vmatprep.subr.bf16.mxu0 %v4282
      %4421 = vmatpush1.bf16.msra.mxu0 %v4281
      %4422 = vmatprep.subr.bf16.mxu0 %v4278
      %4423 = vmatpush1.bf16.msra.mxu0 %v4277
      %4424 = vmatprep.subr.bf16.mxu0 %v4274
      %4425 = vmatpush1.bf16.msra.mxu0 %v4273
      %4426 = vmatprep.subr.bf16.mxu0 %v4270
      %4427 = vmatpush1.bf16.msra.mxu0 %v4269
      %4428 = vmatprep.subr.bf16.mxu0 %v4266
      %4429 = vmatpush1.bf16.msra.mxu0 %v4265
      %4430 = vmatprep.subr.bf16.mxu0 %v4262
      %4431 = vmatpush1.bf16.msra.mxu0 %v4261
      %4432 = vmatprep.subr.bf16.mxu0 %v4258
      %4433 = vmatpush1.bf16.msra.mxu0 %v4257
      %4434 = vmatprep.subr.bf16.mxu0 %v4254
      %4435 = vmatpush1.bf16.msra.mxu0 %v4253
      %4436 = vmatprep.subr.bf16.mxu0 %v4314
      %4437 = vmatpush2.bf16.msra.mxu0 %v4313
      %4438 = vmatprep.subr.bf16.mxu0 %v4310
      %4439 = vmatpush2.bf16.msra.mxu0 %v4309
      %4440 = vmatprep.subr.bf16.mxu0 %v4306
      %4441 = vmatpush2.bf16.msra.mxu0 %v4305
      %4442 = vmatprep.subr.bf16.mxu0 %v4302
      %4443 = vmatpush2.bf16.msra.mxu0 %v4301
      %4444 = vmatprep.subr.bf16.mxu0 %v4298
      %4445 = vmatpush2.bf16.msra.mxu0 %v4297
      %4446 = vmatprep.subr.bf16.mxu0 %v4294
      %4447 = vmatpush2.bf16.msra.mxu0 %v4293
      %4448 = vmatprep.subr.bf16.mxu0 %v4290
      %4449 = vmatpush2.bf16.msra.mxu0 %v4289
      %4450 = vmatprep.subr.bf16.mxu0 %v4286
      %4451 = vmatpush2.bf16.msra.mxu0 %v4285
      %4452 = vmatprep.mubr.bf16.mxu0 %v3993
      %4453 = vmatmul.mubr.bf16.gmra.mxu0 %v3992
      %v4454 = vpop.f32.mrf.mxu0
      %v4455 = vadd.f32 0.0, %v4454
      %v4456 = vpop.f32.mrf.mxu0
      %v4457 = vadd.f32 0.0, %v4456
      %v4458 = vpop.f32.mrf.mxu0
      %v4459 = vpop.f32.mrf.mxu0
      %4460 = vdwg.mxu0
      %v4461 = vadd.f32 %v3986, %v4414
      %v4462 = vadd.f32 %v3987, %v4416
      %v4463 = vadd.f32 %v3988, %v4455
      %v4464 = vadd.f32 %v3989, %v4457
      %v4465 = vmax.f32 %v1129, %v1131
      %v4466 = vmax.f32 %v1130, %v1132
      %v4467 = vpack.c.bf16 %v4465, %v4465
      %v4468 = vpack.c.bf16 %v4466, %v4466
      %s4469 = scalar_lea.vmem %s3, 3584
      %v4470 = vld [vmem:[%s4469] sm:$0xff]
      %v4471 = vld [vmem:[%s4469 + $0x8] sm:$0xff]
      %v4472 = vld [vmem:[%s4469 + $0x10] sm:$0xff]
      %v4473 = vld [vmem:[%s4469 + $0x18] sm:$0xff]
      %v4474 = vld [vmem:[%s4469 + $0x20] sm:$0xff]
      %v4475 = vld [vmem:[%s4469 + $0x28] sm:$0xff]
      %v4476 = vld [vmem:[%s4469 + $0x30] sm:$0xff]
      %v4477 = vld [vmem:[%s4469 + $0x38] sm:$0xff]
      %v4478 = vld [vmem:[%s4469 + $0x40] sm:$0xff]
      %v4479 = vld [vmem:[%s4469 + $0x48] sm:$0xff]
      %v4480 = vld [vmem:[%s4469 + $0x50] sm:$0xff]
      %v4481 = vld [vmem:[%s4469 + $0x58] sm:$0xff]
      %v4482 = vld [vmem:[%s4469 + $0x60] sm:$0xff]
      %v4483 = vld [vmem:[%s4469 + $0x68] sm:$0xff]
      %v4484 = vld [vmem:[%s4469 + $0x70] sm:$0xff]
      %v4485 = vld [vmem:[%s4469 + $0x78] sm:$0xff]
      %v4486 = vld [vmem:[%s4469 + $0x80] sm:$0xff]
      %v4487 = vld [vmem:[%s4469 + $0x88] sm:$0xff]
      %v4488 = vld [vmem:[%s4469 + $0x90] sm:$0xff]
      %v4489 = vld [vmem:[%s4469 + $0x98] sm:$0xff]
      %v4490 = vld [vmem:[%s4469 + $0xa0] sm:$0xff]
      %v4491 = vld [vmem:[%s4469 + $0xa8] sm:$0xff]
      %v4492 = vld [vmem:[%s4469 + $0xb0] sm:$0xff]
      %v4493 = vld [vmem:[%s4469 + $0xb8] sm:$0xff]
      %v4494 = vld [vmem:[%s4469 + $0xc0] sm:$0xff]
      %v4495 = vld [vmem:[%s4469 + $0xc8] sm:$0xff]
      %v4496 = vld [vmem:[%s4469 + $0xd0] sm:$0xff]
      %v4497 = vld [vmem:[%s4469 + $0xd8] sm:$0xff]
      %v4498 = vld [vmem:[%s4469 + $0xe0] sm:$0xff]
      %v4499 = vld [vmem:[%s4469 + $0xe8] sm:$0xff]
      %v4500 = vld [vmem:[%s4469 + $0xf0] sm:$0xff]
      %v4501 = vld [vmem:[%s4469 + $0xf8] sm:$0xff]
      %v4502 = vld [vmem:[%s4469 + $0x100] sm:$0xff]
      %v4503 = vld [vmem:[%s4469 + $0x108] sm:$0xff]
      %v4504 = vld [vmem:[%s4469 + $0x110] sm:$0xff]
      %v4505 = vld [vmem:[%s4469 + $0x118] sm:$0xff]
      %v4506 = vld [vmem:[%s4469 + $0x120] sm:$0xff]
      %v4507 = vld [vmem:[%s4469 + $0x128] sm:$0xff]
      %v4508 = vld [vmem:[%s4469 + $0x130] sm:$0xff]
      %v4509 = vld [vmem:[%s4469 + $0x138] sm:$0xff]
      %v4510 = vld [vmem:[%s4469 + $0x140] sm:$0xff]
      %v4511 = vld [vmem:[%s4469 + $0x148] sm:$0xff]
      %v4512 = vld [vmem:[%s4469 + $0x150] sm:$0xff]
      %v4513 = vld [vmem:[%s4469 + $0x158] sm:$0xff]
      %v4514 = vld [vmem:[%s4469 + $0x160] sm:$0xff]
      %v4515 = vld [vmem:[%s4469 + $0x168] sm:$0xff]
      %v4516 = vld [vmem:[%s4469 + $0x170] sm:$0xff]
      %v4517 = vld [vmem:[%s4469 + $0x178] sm:$0xff]
      %v4518 = vld [vmem:[%s4469 + $0x180] sm:$0xff]
      %v4519 = vld [vmem:[%s4469 + $0x188] sm:$0xff]
      %v4520 = vld [vmem:[%s4469 + $0x190] sm:$0xff]
      %v4521 = vld [vmem:[%s4469 + $0x198] sm:$0xff]
      %v4522 = vld [vmem:[%s4469 + $0x1a0] sm:$0xff]
      %v4523 = vld [vmem:[%s4469 + $0x1a8] sm:$0xff]
      %v4524 = vld [vmem:[%s4469 + $0x1b0] sm:$0xff]
      %v4525 = vld [vmem:[%s4469 + $0x1b8] sm:$0xff]
      %v4526 = vld [vmem:[%s4469 + $0x1c0] sm:$0xff]
      %v4527 = vld [vmem:[%s4469 + $0x1c8] sm:$0xff]
      %v4528 = vld [vmem:[%s4469 + $0x1d0] sm:$0xff]
      %v4529 = vld [vmem:[%s4469 + $0x1d8] sm:$0xff]
      %v4530 = vld [vmem:[%s4469 + $0x1e0] sm:$0xff]
      %v4531 = vld [vmem:[%s4469 + $0x1e8] sm:$0xff]
      %v4532 = vld [vmem:[%s4469 + $0x1f0] sm:$0xff]
      %v4533 = vld [vmem:[%s4469 + $0x1f8] sm:$0xff]
      %v4598 = vunpack.c.l.b16 %v4470
      %v4599 = vunpack.c.h.b16 %v4470
      %v4600 = vunpack.c.l.b16 %v4471
      %v4601 = vunpack.c.h.b16 %v4471
      %v4602 = vunpack.c.l.b16 %v4472
      %v4603 = vunpack.c.h.b16 %v4472
      %v4604 = vunpack.c.l.b16 %v4473
      %v4605 = vunpack.c.h.b16 %v4473
      %v4606 = vunpack.c.l.b16 %v4474
      %v4607 = vunpack.c.h.b16 %v4474
      %v4608 = vunpack.c.l.b16 %v4475
      %v4609 = vunpack.c.h.b16 %v4475
      %v4610 = vunpack.c.l.b16 %v4476
      %v4611 = vunpack.c.h.b16 %v4476
      %v4612 = vunpack.c.l.b16 %v4477
      %v4613 = vunpack.c.h.b16 %v4477
      %v4614 = vunpack.c.l.b16 %v4478
      %v4615 = vunpack.c.h.b16 %v4478
      %v4616 = vunpack.c.l.b16 %v4479
      %v4617 = vunpack.c.h.b16 %v4479
      %v4618 = vunpack.c.l.b16 %v4480
      %v4619 = vunpack.c.h.b16 %v4480
      %v4620 = vunpack.c.l.b16 %v4481
      %v4621 = vunpack.c.h.b16 %v4481
      %v4622 = vunpack.c.l.b16 %v4482
      %v4623 = vunpack.c.h.b16 %v4482
      %v4624 = vunpack.c.l.b16 %v4483
      %v4625 = vunpack.c.h.b16 %v4483
      %v4626 = vunpack.c.l.b16 %v4484
      %v4627 = vunpack.c.h.b16 %v4484
      %v4628 = vunpack.c.l.b16 %v4485
      %v4629 = vunpack.c.h.b16 %v4485
      %v4630 = vunpack.c.l.b16 %v4486
      %v4631 = vunpack.c.h.b16 %v4486
      %v4632 = vunpack.c.l.b16 %v4487
      %v4633 = vunpack.c.h.b16 %v4487
      %v4634 = vunpack.c.l.b16 %v4488
      %v4635 = vunpack.c.h.b16 %v4488
      %v4636 = vunpack.c.l.b16 %v4489
      %v4637 = vunpack.c.h.b16 %v4489
      %v4638 = vunpack.c.l.b16 %v4490
      %v4639 = vunpack.c.h.b16 %v4490
      %v4640 = vunpack.c.l.b16 %v4491
      %v4641 = vunpack.c.h.b16 %v4491
      %v4642 = vunpack.c.l.b16 %v4492
      %v4643 = vunpack.c.h.b16 %v4492
      %v4644 = vunpack.c.l.b16 %v4493
      %v4645 = vunpack.c.h.b16 %v4493
      %v4646 = vunpack.c.l.b16 %v4494
      %v4647 = vunpack.c.h.b16 %v4494
      %v4648 = vunpack.c.l.b16 %v4495
      %v4649 = vunpack.c.h.b16 %v4495
      %v4650 = vunpack.c.l.b16 %v4496
      %v4651 = vunpack.c.h.b16 %v4496
      %v4652 = vunpack.c.l.b16 %v4497
      %v4653 = vunpack.c.h.b16 %v4497
      %v4654 = vunpack.c.l.b16 %v4498
      %v4655 = vunpack.c.h.b16 %v4498
      %v4656 = vunpack.c.l.b16 %v4499
      %v4657 = vunpack.c.h.b16 %v4499
      %v4658 = vunpack.c.l.b16 %v4500
      %v4659 = vunpack.c.h.b16 %v4500
      %v4660 = vunpack.c.l.b16 %v4501
      %v4661 = vunpack.c.h.b16 %v4501
      %v4662 = vunpack.c.l.b16 %v4502
      %v4663 = vunpack.c.h.b16 %v4502
      %v4664 = vunpack.c.l.b16 %v4503
      %v4665 = vunpack.c.h.b16 %v4503
      %v4666 = vunpack.c.l.b16 %v4504
      %v4667 = vunpack.c.h.b16 %v4504
      %v4668 = vunpack.c.l.b16 %v4505
      %v4669 = vunpack.c.h.b16 %v4505
      %v4670 = vunpack.c.l.b16 %v4506
      %v4671 = vunpack.c.h.b16 %v4506
      %v4672 = vunpack.c.l.b16 %v4507
      %v4673 = vunpack.c.h.b16 %v4507
      %v4674 = vunpack.c.l.b16 %v4508
      %v4675 = vunpack.c.h.b16 %v4508
      %v4676 = vunpack.c.l.b16 %v4509
      %v4677 = vunpack.c.h.b16 %v4509
      %v4678 = vunpack.c.l.b16 %v4510
      %v4679 = vunpack.c.h.b16 %v4510
      %v4680 = vunpack.c.l.b16 %v4511
      %v4681 = vunpack.c.h.b16 %v4511
      %v4682 = vunpack.c.l.b16 %v4512
      %v4683 = vunpack.c.h.b16 %v4512
      %v4684 = vunpack.c.l.b16 %v4513
      %v4685 = vunpack.c.h.b16 %v4513
      %v4686 = vunpack.c.l.b16 %v4514
      %v4687 = vunpack.c.h.b16 %v4514
      %v4688 = vunpack.c.l.b16 %v4515
      %v4689 = vunpack.c.h.b16 %v4515
      %v4690 = vunpack.c.l.b16 %v4516
      %v4691 = vunpack.c.h.b16 %v4516
      %v4692 = vunpack.c.l.b16 %v4517
      %v4693 = vunpack.c.h.b16 %v4517
      %v4694 = vunpack.c.l.b16 %v4518
      %v4695 = vunpack.c.h.b16 %v4518
      %v4696 = vunpack.c.l.b16 %v4519
      %v4697 = vunpack.c.h.b16 %v4519
      %v4698 = vunpack.c.l.b16 %v4520
      %v4699 = vunpack.c.h.b16 %v4520
      %v4700 = vunpack.c.l.b16 %v4521
      %v4701 = vunpack.c.h.b16 %v4521
      %v4702 = vunpack.c.l.b16 %v4522
      %v4703 = vunpack.c.h.b16 %v4522
      %v4704 = vunpack.c.l.b16 %v4523
      %v4705 = vunpack.c.h.b16 %v4523
      %v4706 = vunpack.c.l.b16 %v4524
      %v4707 = vunpack.c.h.b16 %v4524
      %v4708 = vunpack.c.l.b16 %v4525
      %v4709 = vunpack.c.h.b16 %v4525
      %v4710 = vunpack.c.l.b16 %v4526
      %v4711 = vunpack.c.h.b16 %v4526
      %v4712 = vunpack.c.l.b16 %v4527
      %v4713 = vunpack.c.h.b16 %v4527
      %v4714 = vunpack.c.l.b16 %v4528
      %v4715 = vunpack.c.h.b16 %v4528
      %v4716 = vunpack.c.l.b16 %v4529
      %v4717 = vunpack.c.h.b16 %v4529
      %v4718 = vunpack.c.l.b16 %v4530
      %v4719 = vunpack.c.h.b16 %v4530
      %v4720 = vunpack.c.l.b16 %v4531
      %v4721 = vunpack.c.h.b16 %v4531
      %v4722 = vunpack.c.l.b16 %v4532
      %v4723 = vunpack.c.h.b16 %v4532
      %v4724 = vunpack.c.l.b16 %v4533
      %v4725 = vunpack.c.h.b16 %v4533
      %v4726 = vpack.c.b16 %v4602, %v4598
      %v4727 = vpack.c.b16 %v4603, %v4599
      %v4728 = vpack.c.b16 %v4604, %v4600
      %v4729 = vpack.c.b16 %v4605, %v4601
      %v4730 = vpack.c.b16 %v4610, %v4606
      %v4731 = vpack.c.b16 %v4611, %v4607
      %v4732 = vpack.c.b16 %v4612, %v4608
      %v4733 = vpack.c.b16 %v4613, %v4609
      %v4734 = vpack.c.b16 %v4618, %v4614
      %v4735 = vpack.c.b16 %v4619, %v4615
      %v4736 = vpack.c.b16 %v4620, %v4616
      %v4737 = vpack.c.b16 %v4621, %v4617
      %v4738 = vpack.c.b16 %v4626, %v4622
      %v4739 = vpack.c.b16 %v4627, %v4623
      %v4740 = vpack.c.b16 %v4628, %v4624
      %v4741 = vpack.c.b16 %v4629, %v4625
      %v4742 = vpack.c.b16 %v4634, %v4630
      %v4743 = vpack.c.b16 %v4635, %v4631
      %v4744 = vpack.c.b16 %v4636, %v4632
      %v4745 = vpack.c.b16 %v4637, %v4633
      %v4746 = vpack.c.b16 %v4642, %v4638
      %v4747 = vpack.c.b16 %v4643, %v4639
      %v4748 = vpack.c.b16 %v4644, %v4640
      %v4749 = vpack.c.b16 %v4645, %v4641
      %v4750 = vpack.c.b16 %v4650, %v4646
      %v4751 = vpack.c.b16 %v4651, %v4647
      %v4752 = vpack.c.b16 %v4652, %v4648
      %v4753 = vpack.c.b16 %v4653, %v4649
      %v4754 = vpack.c.b16 %v4658, %v4654
      %v4755 = vpack.c.b16 %v4659, %v4655
      %v4756 = vpack.c.b16 %v4660, %v4656
      %v4757 = vpack.c.b16 %v4661, %v4657
      %v4758 = vpack.c.b16 %v4666, %v4662
      %v4759 = vpack.c.b16 %v4667, %v4663
      %v4760 = vpack.c.b16 %v4668, %v4664
      %v4761 = vpack.c.b16 %v4669, %v4665
      %v4762 = vpack.c.b16 %v4674, %v4670
      %v4763 = vpack.c.b16 %v4675, %v4671
      %v4764 = vpack.c.b16 %v4676, %v4672
      %v4765 = vpack.c.b16 %v4677, %v4673
      %v4766 = vpack.c.b16 %v4682, %v4678
      %v4767 = vpack.c.b16 %v4683, %v4679
      %v4768 = vpack.c.b16 %v4684, %v4680
      %v4769 = vpack.c.b16 %v4685, %v4681
      %v4770 = vpack.c.b16 %v4690, %v4686
      %v4771 = vpack.c.b16 %v4691, %v4687
      %v4772 = vpack.c.b16 %v4692, %v4688
      %v4773 = vpack.c.b16 %v4693, %v4689
      %v4774 = vpack.c.b16 %v4698, %v4694
      %v4775 = vpack.c.b16 %v4699, %v4695
      %v4776 = vpack.c.b16 %v4700, %v4696
      %v4777 = vpack.c.b16 %v4701, %v4697
      %v4778 = vpack.c.b16 %v4706, %v4702
      %v4779 = vpack.c.b16 %v4707, %v4703
      %v4780 = vpack.c.b16 %v4708, %v4704
      %v4781 = vpack.c.b16 %v4709, %v4705
      %v4782 = vpack.c.b16 %v4714, %v4710
      %v4783 = vpack.c.b16 %v4715, %v4711
      %v4784 = vpack.c.b16 %v4716, %v4712
      %v4785 = vpack.c.b16 %v4717, %v4713
      %v4786 = vpack.c.b16 %v4722, %v4718
      %v4787 = vpack.c.b16 %v4723, %v4719
      %v4788 = vpack.c.b16 %v4724, %v4720
      %v4789 = vpack.c.b16 %v4725, %v4721
      %4854 = vmatprep.subr.bf16.mxu0 %v4755
      %4855 = vmatpush1.bf16.msra.mxu0 %v4754
      %4856 = vmatprep.subr.bf16.mxu0 %v4751
      %4857 = vmatpush1.bf16.msra.mxu0 %v4750
      %4858 = vmatprep.subr.bf16.mxu0 %v4747
      %4859 = vmatpush1.bf16.msra.mxu0 %v4746
      %4860 = vmatprep.subr.bf16.mxu0 %v4743
      %4861 = vmatpush1.bf16.msra.mxu0 %v4742
      %4862 = vmatprep.subr.bf16.mxu0 %v4739
      %4863 = vmatpush1.bf16.msra.mxu0 %v4738
      %4864 = vmatprep.subr.bf16.mxu0 %v4735
      %4865 = vmatpush1.bf16.msra.mxu0 %v4734
      %4866 = vmatprep.subr.bf16.mxu0 %v4731
      %4867 = vmatpush1.bf16.msra.mxu0 %v4730
      %4868 = vmatprep.subr.bf16.mxu0 %v4727
      %4869 = vmatpush1.bf16.msra.mxu0 %v4726
      %4870 = vmatprep.subr.bf16.mxu0 %v4787
      %4871 = vmatpush2.bf16.msra.mxu0 %v4786
      %4872 = vmatprep.subr.bf16.mxu0 %v4783
      %4873 = vmatpush2.bf16.msra.mxu0 %v4782
      %4874 = vmatprep.subr.bf16.mxu0 %v4779
      %4875 = vmatpush2.bf16.msra.mxu0 %v4778
      %4876 = vmatprep.subr.bf16.mxu0 %v4775
      %4877 = vmatpush2.bf16.msra.mxu0 %v4774
      %4878 = vmatprep.subr.bf16.mxu0 %v4771
      %4879 = vmatpush2.bf16.msra.mxu0 %v4770
      %4880 = vmatprep.subr.bf16.mxu0 %v4767
      %4881 = vmatpush2.bf16.msra.mxu0 %v4766
      %4882 = vmatprep.subr.bf16.mxu0 %v4763
      %4883 = vmatpush2.bf16.msra.mxu0 %v4762
      %4884 = vmatprep.subr.bf16.mxu0 %v4759
      %4885 = vmatpush2.bf16.msra.mxu0 %v4758
      %4886 = vmatprep.mubr.bf16.mxu0 %v4468
      %4887 = vmatmul.mubr.bf16.gmra.mxu0 %v4467
      %v4888 = vpop.f32.mrf.mxu0
      %v4889 = vadd.f32 0.0, %v4888
      %v4890 = vpop.f32.mrf.mxu0
      %v4891 = vadd.f32 0.0, %v4890
      %v4892 = vpop.f32.mrf.mxu0
      %v4893 = vpop.f32.mrf.mxu0
      %4894 = vdwg.mxu0
      %4895 = vmatprep.subr.bf16.mxu0 %v4757
      %4896 = vmatpush1.bf16.msra.mxu0 %v4756
      %4897 = vmatprep.subr.bf16.mxu0 %v4753
      %4898 = vmatpush1.bf16.msra.mxu0 %v4752
      %4899 = vmatprep.subr.bf16.mxu0 %v4749
      %4900 = vmatpush1.bf16.msra.mxu0 %v4748
      %4901 = vmatprep.subr.bf16.mxu0 %v4745
      %4902 = vmatpush1.bf16.msra.mxu0 %v4744
      %4903 = vmatprep.subr.bf16.mxu0 %v4741
      %4904 = vmatpush1.bf16.msra.mxu0 %v4740
      %4905 = vmatprep.subr.bf16.mxu0 %v4737
      %4906 = vmatpush1.bf16.msra.mxu0 %v4736
      %4907 = vmatprep.subr.bf16.mxu0 %v4733
      %4908 = vmatpush1.bf16.msra.mxu0 %v4732
      %4909 = vmatprep.subr.bf16.mxu0 %v4729
      %4910 = vmatpush1.bf16.msra.mxu0 %v4728
      %4911 = vmatprep.subr.bf16.mxu0 %v4789
      %4912 = vmatpush2.bf16.msra.mxu0 %v4788
      %4913 = vmatprep.subr.bf16.mxu0 %v4785
      %4914 = vmatpush2.bf16.msra.mxu0 %v4784
      %4915 = vmatprep.subr.bf16.mxu0 %v4781
      %4916 = vmatpush2.bf16.msra.mxu0 %v4780
      %4917 = vmatprep.subr.bf16.mxu0 %v4777
      %4918 = vmatpush2.bf16.msra.mxu0 %v4776
      %4919 = vmatprep.subr.bf16.mxu0 %v4773
      %4920 = vmatpush2.bf16.msra.mxu0 %v4772
      %4921 = vmatprep.subr.bf16.mxu0 %v4769
      %4922 = vmatpush2.bf16.msra.mxu0 %v4768
      %4923 = vmatprep.subr.bf16.mxu0 %v4765
      %4924 = vmatpush2.bf16.msra.mxu0 %v4764
      %4925 = vmatprep.subr.bf16.mxu0 %v4761
      %4926 = vmatpush2.bf16.msra.mxu0 %v4760
      %4927 = vmatprep.mubr.bf16.mxu0 %v4468
      %4928 = vmatmul.mubr.bf16.gmra.mxu0 %v4467
      %v4929 = vpop.f32.mrf.mxu0
      %v4930 = vadd.f32 0.0, %v4929
      %v4931 = vpop.f32.mrf.mxu0
      %v4932 = vadd.f32 0.0, %v4931
      %v4933 = vpop.f32.mrf.mxu0
      %v4934 = vpop.f32.mrf.mxu0
      %4935 = vdwg.mxu0
      %v4936 = vadd.f32 %v4461, %v4889
      %v4937 = vadd.f32 %v4462, %v4891
      %v4938 = vadd.f32 %v4463, %v4930
      %v4939 = vadd.f32 %v4464, %v4932
      %v4940 = vmax.f32 %v1133, %v1135
      %v4941 = vmax.f32 %v1134, %v1136
      %v4942 = vpack.c.bf16 %v4940, %v4940
      %v4943 = vpack.c.bf16 %v4941, %v4941
      %s4944 = scalar_lea.vmem %s3, 4096
      %v4945 = vld [vmem:[%s4944] sm:$0xff]
      %v4946 = vld [vmem:[%s4944 + $0x8] sm:$0xff]
      %v4947 = vld [vmem:[%s4944 + $0x10] sm:$0xff]
      %v4948 = vld [vmem:[%s4944 + $0x18] sm:$0xff]
      %v4949 = vld [vmem:[%s4944 + $0x20] sm:$0xff]
      %v4950 = vld [vmem:[%s4944 + $0x28] sm:$0xff]
      %v4951 = vld [vmem:[%s4944 + $0x30] sm:$0xff]
      %v4952 = vld [vmem:[%s4944 + $0x38] sm:$0xff]
      %v4953 = vld [vmem:[%s4944 + $0x40] sm:$0xff]
      %v4954 = vld [vmem:[%s4944 + $0x48] sm:$0xff]
      %v4955 = vld [vmem:[%s4944 + $0x50] sm:$0xff]
      %v4956 = vld [vmem:[%s4944 + $0x58] sm:$0xff]
      %v4957 = vld [vmem:[%s4944 + $0x60] sm:$0xff]
      %v4958 = vld [vmem:[%s4944 + $0x68] sm:$0xff]
      %v4959 = vld [vmem:[%s4944 + $0x70] sm:$0xff]
      %v4960 = vld [vmem:[%s4944 + $0x78] sm:$0xff]
      %v4961 = vld [vmem:[%s4944 + $0x80] sm:$0xff]
      %v4962 = vld [vmem:[%s4944 + $0x88] sm:$0xff]
      %v4963 = vld [vmem:[%s4944 + $0x90] sm:$0xff]
      %v4964 = vld [vmem:[%s4944 + $0x98] sm:$0xff]
      %v4965 = vld [vmem:[%s4944 + $0xa0] sm:$0xff]
      %v4966 = vld [vmem:[%s4944 + $0xa8] sm:$0xff]
      %v4967 = vld [vmem:[%s4944 + $0xb0] sm:$0xff]
      %v4968 = vld [vmem:[%s4944 + $0xb8] sm:$0xff]
      %v4969 = vld [vmem:[%s4944 + $0xc0] sm:$0xff]
      %v4970 = vld [vmem:[%s4944 + $0xc8] sm:$0xff]
      %v4971 = vld [vmem:[%s4944 + $0xd0] sm:$0xff]
      %v4972 = vld [vmem:[%s4944 + $0xd8] sm:$0xff]
      %v4973 = vld [vmem:[%s4944 + $0xe0] sm:$0xff]
      %v4974 = vld [vmem:[%s4944 + $0xe8] sm:$0xff]
      %v4975 = vld [vmem:[%s4944 + $0xf0] sm:$0xff]
      %v4976 = vld [vmem:[%s4944 + $0xf8] sm:$0xff]
      %v4977 = vld [vmem:[%s4944 + $0x100] sm:$0xff]
      %v4978 = vld [vmem:[%s4944 + $0x108] sm:$0xff]
      %v4979 = vld [vmem:[%s4944 + $0x110] sm:$0xff]
      %v4980 = vld [vmem:[%s4944 + $0x118] sm:$0xff]
      %v4981 = vld [vmem:[%s4944 + $0x120] sm:$0xff]
      %v4982 = vld [vmem:[%s4944 + $0x128] sm:$0xff]
      %v4983 = vld [vmem:[%s4944 + $0x130] sm:$0xff]
      %v4984 = vld [vmem:[%s4944 + $0x138] sm:$0xff]
      %v4985 = vld [vmem:[%s4944 + $0x140] sm:$0xff]
      %v4986 = vld [vmem:[%s4944 + $0x148] sm:$0xff]
      %v4987 = vld [vmem:[%s4944 + $0x150] sm:$0xff]
      %v4988 = vld [vmem:[%s4944 + $0x158] sm:$0xff]
      %v4989 = vld [vmem:[%s4944 + $0x160] sm:$0xff]
      %v4990 = vld [vmem:[%s4944 + $0x168] sm:$0xff]
      %v4991 = vld [vmem:[%s4944 + $0x170] sm:$0xff]
      %v4992 = vld [vmem:[%s4944 + $0x178] sm:$0xff]
      %v4993 = vld [vmem:[%s4944 + $0x180] sm:$0xff]
      %v4994 = vld [vmem:[%s4944 + $0x188] sm:$0xff]
      %v4995 = vld [vmem:[%s4944 + $0x190] sm:$0xff]
      %v4996 = vld [vmem:[%s4944 + $0x198] sm:$0xff]
      %v4997 = vld [vmem:[%s4944 + $0x1a0] sm:$0xff]
      %v4998 = vld [vmem:[%s4944 + $0x1a8] sm:$0xff]
      %v4999 = vld [vmem:[%s4944 + $0x1b0] sm:$0xff]
      %v5000 = vld [vmem:[%s4944 + $0x1b8] sm:$0xff]
      %v5001 = vld [vmem:[%s4944 + $0x1c0] sm:$0xff]
      %v5002 = vld [vmem:[%s4944 + $0x1c8] sm:$0xff]
      %v5003 = vld [vmem:[%s4944 + $0x1d0] sm:$0xff]
      %v5004 = vld [vmem:[%s4944 + $0x1d8] sm:$0xff]
      %v5005 = vld [vmem:[%s4944 + $0x1e0] sm:$0xff]
      %v5006 = vld [vmem:[%s4944 + $0x1e8] sm:$0xff]
      %v5007 = vld [vmem:[%s4944 + $0x1f0] sm:$0xff]
      %v5008 = vld [vmem:[%s4944 + $0x1f8] sm:$0xff]
      %v5073 = vunpack.c.l.b16 %v4945
      %v5074 = vunpack.c.h.b16 %v4945
      %v5075 = vunpack.c.l.b16 %v4946
      %v5076 = vunpack.c.h.b16 %v4946
      %v5077 = vunpack.c.l.b16 %v4947
      %v5078 = vunpack.c.h.b16 %v4947
      %v5079 = vunpack.c.l.b16 %v4948
      %v5080 = vunpack.c.h.b16 %v4948
      %v5081 = vunpack.c.l.b16 %v4949
      %v5082 = vunpack.c.h.b16 %v4949
      %v5083 = vunpack.c.l.b16 %v4950
      %v5084 = vunpack.c.h.b16 %v4950
      %v5085 = vunpack.c.l.b16 %v4951
      %v5086 = vunpack.c.h.b16 %v4951
      %v5087 = vunpack.c.l.b16 %v4952
      %v5088 = vunpack.c.h.b16 %v4952
      %v5089 = vunpack.c.l.b16 %v4953
      %v5090 = vunpack.c.h.b16 %v4953
      %v5091 = vunpack.c.l.b16 %v4954
      %v5092 = vunpack.c.h.b16 %v4954
      %v5093 = vunpack.c.l.b16 %v4955
      %v5094 = vunpack.c.h.b16 %v4955
      %v5095 = vunpack.c.l.b16 %v4956
      %v5096 = vunpack.c.h.b16 %v4956
      %v5097 = vunpack.c.l.b16 %v4957
      %v5098 = vunpack.c.h.b16 %v4957
      %v5099 = vunpack.c.l.b16 %v4958
      %v5100 = vunpack.c.h.b16 %v4958
      %v5101 = vunpack.c.l.b16 %v4959
      %v5102 = vunpack.c.h.b16 %v4959
      %v5103 = vunpack.c.l.b16 %v4960
      %v5104 = vunpack.c.h.b16 %v4960
      %v5105 = vunpack.c.l.b16 %v4961
      %v5106 = vunpack.c.h.b16 %v4961
      %v5107 = vunpack.c.l.b16 %v4962
      %v5108 = vunpack.c.h.b16 %v4962
      %v5109 = vunpack.c.l.b16 %v4963
      %v5110 = vunpack.c.h.b16 %v4963
      %v5111 = vunpack.c.l.b16 %v4964
      %v5112 = vunpack.c.h.b16 %v4964
      %v5113 = vunpack.c.l.b16 %v4965
      %v5114 = vunpack.c.h.b16 %v4965
      %v5115 = vunpack.c.l.b16 %v4966
      %v5116 = vunpack.c.h.b16 %v4966
      %v5117 = vunpack.c.l.b16 %v4967
      %v5118 = vunpack.c.h.b16 %v4967
      %v5119 = vunpack.c.l.b16 %v4968
      %v5120 = vunpack.c.h.b16 %v4968
      %v5121 = vunpack.c.l.b16 %v4969
      %v5122 = vunpack.c.h.b16 %v4969
      %v5123 = vunpack.c.l.b16 %v4970
      %v5124 = vunpack.c.h.b16 %v4970
      %v5125 = vunpack.c.l.b16 %v4971
      %v5126 = vunpack.c.h.b16 %v4971
      %v5127 = vunpack.c.l.b16 %v4972
      %v5128 = vunpack.c.h.b16 %v4972
      %v5129 = vunpack.c.l.b16 %v4973
      %v5130 = vunpack.c.h.b16 %v4973
      %v5131 = vunpack.c.l.b16 %v4974
      %v5132 = vunpack.c.h.b16 %v4974
      %v5133 = vunpack.c.l.b16 %v4975
      %v5134 = vunpack.c.h.b16 %v4975
      %v5135 = vunpack.c.l.b16 %v4976
      %v5136 = vunpack.c.h.b16 %v4976
      %v5137 = vunpack.c.l.b16 %v4977
      %v5138 = vunpack.c.h.b16 %v4977
      %v5139 = vunpack.c.l.b16 %v4978
      %v5140 = vunpack.c.h.b16 %v4978
      %v5141 = vunpack.c.l.b16 %v4979
      %v5142 = vunpack.c.h.b16 %v4979
      %v5143 = vunpack.c.l.b16 %v4980
      %v5144 = vunpack.c.h.b16 %v4980
      %v5145 = vunpack.c.l.b16 %v4981
      %v5146 = vunpack.c.h.b16 %v4981
      %v5147 = vunpack.c.l.b16 %v4982
      %v5148 = vunpack.c.h.b16 %v4982
      %v5149 = vunpack.c.l.b16 %v4983
      %v5150 = vunpack.c.h.b16 %v4983
      %v5151 = vunpack.c.l.b16 %v4984
      %v5152 = vunpack.c.h.b16 %v4984
      %v5153 = vunpack.c.l.b16 %v4985
      %v5154 = vunpack.c.h.b16 %v4985
      %v5155 = vunpack.c.l.b16 %v4986
      %v5156 = vunpack.c.h.b16 %v4986
      %v5157 = vunpack.c.l.b16 %v4987
      %v5158 = vunpack.c.h.b16 %v4987
      %v5159 = vunpack.c.l.b16 %v4988
      %v5160 = vunpack.c.h.b16 %v4988
      %v5161 = vunpack.c.l.b16 %v4989
      %v5162 = vunpack.c.h.b16 %v4989
      %v5163 = vunpack.c.l.b16 %v4990
      %v5164 = vunpack.c.h.b16 %v4990
      %v5165 = vunpack.c.l.b16 %v4991
      %v5166 = vunpack.c.h.b16 %v4991
      %v5167 = vunpack.c.l.b16 %v4992
      %v5168 = vunpack.c.h.b16 %v4992
      %v5169 = vunpack.c.l.b16 %v4993
      %v5170 = vunpack.c.h.b16 %v4993
      %v5171 = vunpack.c.l.b16 %v4994
      %v5172 = vunpack.c.h.b16 %v4994
      %v5173 = vunpack.c.l.b16 %v4995
      %v5174 = vunpack.c.h.b16 %v4995
      %v5175 = vunpack.c.l.b16 %v4996
      %v5176 = vunpack.c.h.b16 %v4996
      %v5177 = vunpack.c.l.b16 %v4997
      %v5178 = vunpack.c.h.b16 %v4997
      %v5179 = vunpack.c.l.b16 %v4998
      %v5180 = vunpack.c.h.b16 %v4998
      %v5181 = vunpack.c.l.b16 %v4999
      %v5182 = vunpack.c.h.b16 %v4999
      %v5183 = vunpack.c.l.b16 %v5000
      %v5184 = vunpack.c.h.b16 %v5000
      %v5185 = vunpack.c.l.b16 %v5001
      %v5186 = vunpack.c.h.b16 %v5001
      %v5187 = vunpack.c.l.b16 %v5002
      %v5188 = vunpack.c.h.b16 %v5002
      %v5189 = vunpack.c.l.b16 %v5003
      %v5190 = vunpack.c.h.b16 %v5003
      %v5191 = vunpack.c.l.b16 %v5004
      %v5192 = vunpack.c.h.b16 %v5004
      %v5193 = vunpack.c.l.b16 %v5005
      %v5194 = vunpack.c.h.b16 %v5005
      %v5195 = vunpack.c.l.b16 %v5006
      %v5196 = vunpack.c.h.b16 %v5006
      %v5197 = vunpack.c.l.b16 %v5007
      %v5198 = vunpack.c.h.b16 %v5007
      %v5199 = vunpack.c.l.b16 %v5008
      %v5200 = vunpack.c.h.b16 %v5008
      %v5201 = vpack.c.b16 %v5077, %v5073
      %v5202 = vpack.c.b16 %v5078, %v5074
      %v5203 = vpack.c.b16 %v5079, %v5075
      %v5204 = vpack.c.b16 %v5080, %v5076
      %v5205 = vpack.c.b16 %v5085, %v5081
      %v5206 = vpack.c.b16 %v5086, %v5082
      %v5207 = vpack.c.b16 %v5087, %v5083
      %v5208 = vpack.c.b16 %v5088, %v5084
      %v5209 = vpack.c.b16 %v5093, %v5089
      %v5210 = vpack.c.b16 %v5094, %v5090
      %v5211 = vpack.c.b16 %v5095, %v5091
      %v5212 = vpack.c.b16 %v5096, %v5092
      %v5213 = vpack.c.b16 %v5101, %v5097
      %v5214 = vpack.c.b16 %v5102, %v5098
      %v5215 = vpack.c.b16 %v5103, %v5099
      %v5216 = vpack.c.b16 %v5104, %v5100
      %v5217 = vpack.c.b16 %v5109, %v5105
      %v5218 = vpack.c.b16 %v5110, %v5106
      %v5219 = vpack.c.b16 %v5111, %v5107
      %v5220 = vpack.c.b16 %v5112, %v5108
      %v5221 = vpack.c.b16 %v5117, %v5113
      %v5222 = vpack.c.b16 %v5118, %v5114
      %v5223 = vpack.c.b16 %v5119, %v5115
      %v5224 = vpack.c.b16 %v5120, %v5116
      %v5225 = vpack.c.b16 %v5125, %v5121
      %v5226 = vpack.c.b16 %v5126, %v5122
      %v5227 = vpack.c.b16 %v5127, %v5123
      %v5228 = vpack.c.b16 %v5128, %v5124
      %v5229 = vpack.c.b16 %v5133, %v5129
      %v5230 = vpack.c.b16 %v5134, %v5130
      %v5231 = vpack.c.b16 %v5135, %v5131
      %v5232 = vpack.c.b16 %v5136, %v5132
      %v5233 = vpack.c.b16 %v5141, %v5137
      %v5234 = vpack.c.b16 %v5142, %v5138
      %v5235 = vpack.c.b16 %v5143, %v5139
      %v5236 = vpack.c.b16 %v5144, %v5140
      %v5237 = vpack.c.b16 %v5149, %v5145
      %v5238 = vpack.c.b16 %v5150, %v5146
      %v5239 = vpack.c.b16 %v5151, %v5147
      %v5240 = vpack.c.b16 %v5152, %v5148
      %v5241 = vpack.c.b16 %v5157, %v5153
      %v5242 = vpack.c.b16 %v5158, %v5154
      %v5243 = vpack.c.b16 %v5159, %v5155
      %v5244 = vpack.c.b16 %v5160, %v5156
      %v5245 = vpack.c.b16 %v5165, %v5161
      %v5246 = vpack.c.b16 %v5166, %v5162
      %v5247 = vpack.c.b16 %v5167, %v5163
      %v5248 = vpack.c.b16 %v5168, %v5164
      %v5249 = vpack.c.b16 %v5173, %v5169
      %v5250 = vpack.c.b16 %v5174, %v5170
      %v5251 = vpack.c.b16 %v5175, %v5171
      %v5252 = vpack.c.b16 %v5176, %v5172
      %v5253 = vpack.c.b16 %v5181, %v5177
      %v5254 = vpack.c.b16 %v5182, %v5178
      %v5255 = vpack.c.b16 %v5183, %v5179
      %v5256 = vpack.c.b16 %v5184, %v5180
      %v5257 = vpack.c.b16 %v5189, %v5185
      %v5258 = vpack.c.b16 %v5190, %v5186
      %v5259 = vpack.c.b16 %v5191, %v5187
      %v5260 = vpack.c.b16 %v5192, %v5188
      %v5261 = vpack.c.b16 %v5197, %v5193
      %v5262 = vpack.c.b16 %v5198, %v5194
      %v5263 = vpack.c.b16 %v5199, %v5195
      %v5264 = vpack.c.b16 %v5200, %v5196
      %5329 = vmatprep.subr.bf16.mxu0 %v5230
      %5330 = vmatpush1.bf16.msra.mxu0 %v5229
      %5331 = vmatprep.subr.bf16.mxu0 %v5226
      %5332 = vmatpush1.bf16.msra.mxu0 %v5225
      %5333 = vmatprep.subr.bf16.mxu0 %v5222
      %5334 = vmatpush1.bf16.msra.mxu0 %v5221
      %5335 = vmatprep.subr.bf16.mxu0 %v5218
      %5336 = vmatpush1.bf16.msra.mxu0 %v5217
      %5337 = vmatprep.subr.bf16.mxu0 %v5214
      %5338 = vmatpush1.bf16.msra.mxu0 %v5213
      %5339 = vmatprep.subr.bf16.mxu0 %v5210
      %5340 = vmatpush1.bf16.msra.mxu0 %v5209
      %5341 = vmatprep.subr.bf16.mxu0 %v5206
      %5342 = vmatpush1.bf16.msra.mxu0 %v5205
      %5343 = vmatprep.subr.bf16.mxu0 %v5202
      %5344 = vmatpush1.bf16.msra.mxu0 %v5201
      %5345 = vmatprep.subr.bf16.mxu0 %v5262
      %5346 = vmatpush2.bf16.msra.mxu0 %v5261
      %5347 = vmatprep.subr.bf16.mxu0 %v5258
      %5348 = vmatpush2.bf16.msra.mxu0 %v5257
      %5349 = vmatprep.subr.bf16.mxu0 %v5254
      %5350 = vmatpush2.bf16.msra.mxu0 %v5253
      %5351 = vmatprep.subr.bf16.mxu0 %v5250
      %5352 = vmatpush2.bf16.msra.mxu0 %v5249
      %5353 = vmatprep.subr.bf16.mxu0 %v5246
      %5354 = vmatpush2.bf16.msra.mxu0 %v5245
      %5355 = vmatprep.subr.bf16.mxu0 %v5242
      %5356 = vmatpush2.bf16.msra.mxu0 %v5241
      %5357 = vmatprep.subr.bf16.mxu0 %v5238
      %5358 = vmatpush2.bf16.msra.mxu0 %v5237
      %5359 = vmatprep.subr.bf16.mxu0 %v5234
      %5360 = vmatpush2.bf16.msra.mxu0 %v5233
      %5361 = vmatprep.mubr.bf16.mxu0 %v4943
      %5362 = vmatmul.mubr.bf16.gmra.mxu0 %v4942
      %v5363 = vpop.f32.mrf.mxu0
      %v5364 = vadd.f32 0.0, %v5363
      %v5365 = vpop.f32.mrf.mxu0
      %v5366 = vadd.f32 0.0, %v5365
      %v5367 = vpop.f32.mrf.mxu0
      %v5368 = vpop.f32.mrf.mxu0
      %5369 = vdwg.mxu0
      %5370 = vmatprep.subr.bf16.mxu0 %v5232
      %5371 = vmatpush1.bf16.msra.mxu0 %v5231
      %5372 = vmatprep.subr.bf16.mxu0 %v5228
      %5373 = vmatpush1.bf16.msra.mxu0 %v5227
      %5374 = vmatprep.subr.bf16.mxu0 %v5224
      %5375 = vmatpush1.bf16.msra.mxu0 %v5223
      %5376 = vmatprep.subr.bf16.mxu0 %v5220
      %5377 = vmatpush1.bf16.msra.mxu0 %v5219
      %5378 = vmatprep.subr.bf16.mxu0 %v5216
      %5379 = vmatpush1.bf16.msra.mxu0 %v5215
      %5380 = vmatprep.subr.bf16.mxu0 %v5212
      %5381 = vmatpush1.bf16.msra.mxu0 %v5211
      %5382 = vmatprep.subr.bf16.mxu0 %v5208
      %5383 = vmatpush1.bf16.msra.mxu0 %v5207
      %5384 = vmatprep.subr.bf16.mxu0 %v5204
      %5385 = vmatpush1.bf16.msra.mxu0 %v5203
      %5386 = vmatprep.subr.bf16.mxu0 %v5264
      %5387 = vmatpush2.bf16.msra.mxu0 %v5263
      %5388 = vmatprep.subr.bf16.mxu0 %v5260
      %5389 = vmatpush2.bf16.msra.mxu0 %v5259
      %5390 = vmatprep.subr.bf16.mxu0 %v5256
      %5391 = vmatpush2.bf16.msra.mxu0 %v5255
      %5392 = vmatprep.subr.bf16.mxu0 %v5252
      %5393 = vmatpush2.bf16.msra.mxu0 %v5251
      %5394 = vmatprep.subr.bf16.mxu0 %v5248
      %5395 = vmatpush2.bf16.msra.mxu0 %v5247
      %5396 = vmatprep.subr.bf16.mxu0 %v5244
      %5397 = vmatpush2.bf16.msra.mxu0 %v5243
      %5398 = vmatprep.subr.bf16.mxu0 %v5240
      %5399 = vmatpush2.bf16.msra.mxu0 %v5239
      %5400 = vmatprep.subr.bf16.mxu0 %v5236
      %5401 = vmatpush2.bf16.msra.mxu0 %v5235
      %5402 = vmatprep.mubr.bf16.mxu0 %v4943
      %5403 = vmatmul.mubr.bf16.gmra.mxu0 %v4942
      %v5404 = vpop.f32.mrf.mxu0
      %v5405 = vadd.f32 0.0, %v5404
      %v5406 = vpop.f32.mrf.mxu0
      %v5407 = vadd.f32 0.0, %v5406
      %v5408 = vpop.f32.mrf.mxu0
      %v5409 = vpop.f32.mrf.mxu0
      %5410 = vdwg.mxu0
      %v5411 = vadd.f32 %v4936, %v5364
      %v5412 = vadd.f32 %v4937, %v5366
      %v5413 = vadd.f32 %v4938, %v5405
      %v5414 = vadd.f32 %v4939, %v5407
      %v5415 = vmax.f32 %v1137, %v1139
      %v5416 = vmax.f32 %v1138, %v1140
      %v5417 = vpack.c.bf16 %v5415, %v5415
      %v5418 = vpack.c.bf16 %v5416, %v5416
      %s5419 = scalar_lea.vmem %s3, 4608
      %v5420 = vld [vmem:[%s5419] sm:$0xff]
      %v5421 = vld [vmem:[%s5419 + $0x8] sm:$0xff]
      %v5422 = vld [vmem:[%s5419 + $0x10] sm:$0xff]
      %v5423 = vld [vmem:[%s5419 + $0x18] sm:$0xff]
      %v5424 = vld [vmem:[%s5419 + $0x20] sm:$0xff]
      %v5425 = vld [vmem:[%s5419 + $0x28] sm:$0xff]
      %v5426 = vld [vmem:[%s5419 + $0x30] sm:$0xff]
      %v5427 = vld [vmem:[%s5419 + $0x38] sm:$0xff]
      %v5428 = vld [vmem:[%s5419 + $0x40] sm:$0xff]
      %v5429 = vld [vmem:[%s5419 + $0x48] sm:$0xff]
      %v5430 = vld [vmem:[%s5419 + $0x50] sm:$0xff]
      %v5431 = vld [vmem:[%s5419 + $0x58] sm:$0xff]
      %v5432 = vld [vmem:[%s5419 + $0x60] sm:$0xff]
      %v5433 = vld [vmem:[%s5419 + $0x68] sm:$0xff]
      %v5434 = vld [vmem:[%s5419 + $0x70] sm:$0xff]
      %v5435 = vld [vmem:[%s5419 + $0x78] sm:$0xff]
      %v5436 = vld [vmem:[%s5419 + $0x80] sm:$0xff]
      %v5437 = vld [vmem:[%s5419 + $0x88] sm:$0xff]
      %v5438 = vld [vmem:[%s5419 + $0x90] sm:$0xff]
      %v5439 = vld [vmem:[%s5419 + $0x98] sm:$0xff]
      %v5440 = vld [vmem:[%s5419 + $0xa0] sm:$0xff]
      %v5441 = vld [vmem:[%s5419 + $0xa8] sm:$0xff]
      %v5442 = vld [vmem:[%s5419 + $0xb0] sm:$0xff]
      %v5443 = vld [vmem:[%s5419 + $0xb8] sm:$0xff]
      %v5444 = vld [vmem:[%s5419 + $0xc0] sm:$0xff]
      %v5445 = vld [vmem:[%s5419 + $0xc8] sm:$0xff]
      %v5446 = vld [vmem:[%s5419 + $0xd0] sm:$0xff]
      %v5447 = vld [vmem:[%s5419 + $0xd8] sm:$0xff]
      %v5448 = vld [vmem:[%s5419 + $0xe0] sm:$0xff]
      %v5449 = vld [vmem:[%s5419 + $0xe8] sm:$0xff]
      %v5450 = vld [vmem:[%s5419 + $0xf0] sm:$0xff]
      %v5451 = vld [vmem:[%s5419 + $0xf8] sm:$0xff]
      %v5452 = vld [vmem:[%s5419 + $0x100] sm:$0xff]
      %v5453 = vld [vmem:[%s5419 + $0x108] sm:$0xff]
      %v5454 = vld [vmem:[%s5419 + $0x110] sm:$0xff]
      %v5455 = vld [vmem:[%s5419 + $0x118] sm:$0xff]
      %v5456 = vld [vmem:[%s5419 + $0x120] sm:$0xff]
      %v5457 = vld [vmem:[%s5419 + $0x128] sm:$0xff]
      %v5458 = vld [vmem:[%s5419 + $0x130] sm:$0xff]
      %v5459 = vld [vmem:[%s5419 + $0x138] sm:$0xff]
      %v5460 = vld [vmem:[%s5419 + $0x140] sm:$0xff]
      %v5461 = vld [vmem:[%s5419 + $0x148] sm:$0xff]
      %v5462 = vld [vmem:[%s5419 + $0x150] sm:$0xff]
      %v5463 = vld [vmem:[%s5419 + $0x158] sm:$0xff]
      %v5464 = vld [vmem:[%s5419 + $0x160] sm:$0xff]
      %v5465 = vld [vmem:[%s5419 + $0x168] sm:$0xff]
      %v5466 = vld [vmem:[%s5419 + $0x170] sm:$0xff]
      %v5467 = vld [vmem:[%s5419 + $0x178] sm:$0xff]
      %v5468 = vld [vmem:[%s5419 + $0x180] sm:$0xff]
      %v5469 = vld [vmem:[%s5419 + $0x188] sm:$0xff]
      %v5470 = vld [vmem:[%s5419 + $0x190] sm:$0xff]
      %v5471 = vld [vmem:[%s5419 + $0x198] sm:$0xff]
      %v5472 = vld [vmem:[%s5419 + $0x1a0] sm:$0xff]
      %v5473 = vld [vmem:[%s5419 + $0x1a8] sm:$0xff]
      %v5474 = vld [vmem:[%s5419 + $0x1b0] sm:$0xff]
      %v5475 = vld [vmem:[%s5419 + $0x1b8] sm:$0xff]
      %v5476 = vld [vmem:[%s5419 + $0x1c0] sm:$0xff]
      %v5477 = vld [vmem:[%s5419 + $0x1c8] sm:$0xff]
      %v5478 = vld [vmem:[%s5419 + $0x1d0] sm:$0xff]
      %v5479 = vld [vmem:[%s5419 + $0x1d8] sm:$0xff]
      %v5480 = vld [vmem:[%s5419 + $0x1e0] sm:$0xff]
      %v5481 = vld [vmem:[%s5419 + $0x1e8] sm:$0xff]
      %v5482 = vld [vmem:[%s5419 + $0x1f0] sm:$0xff]
      %v5483 = vld [vmem:[%s5419 + $0x1f8] sm:$0xff]
      %v5548 = vunpack.c.l.b16 %v5420
      %v5549 = vunpack.c.h.b16 %v5420
      %v5550 = vunpack.c.l.b16 %v5421
      %v5551 = vunpack.c.h.b16 %v5421
      %v5552 = vunpack.c.l.b16 %v5422
      %v5553 = vunpack.c.h.b16 %v5422
      %v5554 = vunpack.c.l.b16 %v5423
      %v5555 = vunpack.c.h.b16 %v5423
      %v5556 = vunpack.c.l.b16 %v5424
      %v5557 = vunpack.c.h.b16 %v5424
      %v5558 = vunpack.c.l.b16 %v5425
      %v5559 = vunpack.c.h.b16 %v5425
      %v5560 = vunpack.c.l.b16 %v5426
      %v5561 = vunpack.c.h.b16 %v5426
      %v5562 = vunpack.c.l.b16 %v5427
      %v5563 = vunpack.c.h.b16 %v5427
      %v5564 = vunpack.c.l.b16 %v5428
      %v5565 = vunpack.c.h.b16 %v5428
      %v5566 = vunpack.c.l.b16 %v5429
      %v5567 = vunpack.c.h.b16 %v5429
      %v5568 = vunpack.c.l.b16 %v5430
      %v5569 = vunpack.c.h.b16 %v5430
      %v5570 = vunpack.c.l.b16 %v5431
      %v5571 = vunpack.c.h.b16 %v5431
      %v5572 = vunpack.c.l.b16 %v5432
      %v5573 = vunpack.c.h.b16 %v5432
      %v5574 = vunpack.c.l.b16 %v5433
      %v5575 = vunpack.c.h.b16 %v5433
      %v5576 = vunpack.c.l.b16 %v5434
      %v5577 = vunpack.c.h.b16 %v5434
      %v5578 = vunpack.c.l.b16 %v5435
      %v5579 = vunpack.c.h.b16 %v5435
      %v5580 = vunpack.c.l.b16 %v5436
      %v5581 = vunpack.c.h.b16 %v5436
      %v5582 = vunpack.c.l.b16 %v5437
      %v5583 = vunpack.c.h.b16 %v5437
      %v5584 = vunpack.c.l.b16 %v5438
      %v5585 = vunpack.c.h.b16 %v5438
      %v5586 = vunpack.c.l.b16 %v5439
      %v5587 = vunpack.c.h.b16 %v5439
      %v5588 = vunpack.c.l.b16 %v5440
      %v5589 = vunpack.c.h.b16 %v5440
      %v5590 = vunpack.c.l.b16 %v5441
      %v5591 = vunpack.c.h.b16 %v5441
      %v5592 = vunpack.c.l.b16 %v5442
      %v5593 = vunpack.c.h.b16 %v5442
      %v5594 = vunpack.c.l.b16 %v5443
      %v5595 = vunpack.c.h.b16 %v5443
      %v5596 = vunpack.c.l.b16 %v5444
      %v5597 = vunpack.c.h.b16 %v5444
      %v5598 = vunpack.c.l.b16 %v5445
      %v5599 = vunpack.c.h.b16 %v5445
      %v5600 = vunpack.c.l.b16 %v5446
      %v5601 = vunpack.c.h.b16 %v5446
      %v5602 = vunpack.c.l.b16 %v5447
      %v5603 = vunpack.c.h.b16 %v5447
      %v5604 = vunpack.c.l.b16 %v5448
      %v5605 = vunpack.c.h.b16 %v5448
      %v5606 = vunpack.c.l.b16 %v5449
      %v5607 = vunpack.c.h.b16 %v5449
      %v5608 = vunpack.c.l.b16 %v5450
      %v5609 = vunpack.c.h.b16 %v5450
      %v5610 = vunpack.c.l.b16 %v5451
      %v5611 = vunpack.c.h.b16 %v5451
      %v5612 = vunpack.c.l.b16 %v5452
      %v5613 = vunpack.c.h.b16 %v5452
      %v5614 = vunpack.c.l.b16 %v5453
      %v5615 = vunpack.c.h.b16 %v5453
      %v5616 = vunpack.c.l.b16 %v5454
      %v5617 = vunpack.c.h.b16 %v5454
      %v5618 = vunpack.c.l.b16 %v5455
      %v5619 = vunpack.c.h.b16 %v5455
      %v5620 = vunpack.c.l.b16 %v5456
      %v5621 = vunpack.c.h.b16 %v5456
      %v5622 = vunpack.c.l.b16 %v5457
      %v5623 = vunpack.c.h.b16 %v5457
      %v5624 = vunpack.c.l.b16 %v5458
      %v5625 = vunpack.c.h.b16 %v5458
      %v5626 = vunpack.c.l.b16 %v5459
      %v5627 = vunpack.c.h.b16 %v5459
      %v5628 = vunpack.c.l.b16 %v5460
      %v5629 = vunpack.c.h.b16 %v5460
      %v5630 = vunpack.c.l.b16 %v5461
      %v5631 = vunpack.c.h.b16 %v5461
      %v5632 = vunpack.c.l.b16 %v5462
      %v5633 = vunpack.c.h.b16 %v5462
      %v5634 = vunpack.c.l.b16 %v5463
      %v5635 = vunpack.c.h.b16 %v5463
      %v5636 = vunpack.c.l.b16 %v5464
      %v5637 = vunpack.c.h.b16 %v5464
      %v5638 = vunpack.c.l.b16 %v5465
      %v5639 = vunpack.c.h.b16 %v5465
      %v5640 = vunpack.c.l.b16 %v5466
      %v5641 = vunpack.c.h.b16 %v5466
      %v5642 = vunpack.c.l.b16 %v5467
      %v5643 = vunpack.c.h.b16 %v5467
      %v5644 = vunpack.c.l.b16 %v5468
      %v5645 = vunpack.c.h.b16 %v5468
      %v5646 = vunpack.c.l.b16 %v5469
      %v5647 = vunpack.c.h.b16 %v5469
      %v5648 = vunpack.c.l.b16 %v5470
      %v5649 = vunpack.c.h.b16 %v5470
      %v5650 = vunpack.c.l.b16 %v5471
      %v5651 = vunpack.c.h.b16 %v5471
      %v5652 = vunpack.c.l.b16 %v5472
      %v5653 = vunpack.c.h.b16 %v5472
      %v5654 = vunpack.c.l.b16 %v5473
      %v5655 = vunpack.c.h.b16 %v5473
      %v5656 = vunpack.c.l.b16 %v5474
      %v5657 = vunpack.c.h.b16 %v5474
      %v5658 = vunpack.c.l.b16 %v5475
      %v5659 = vunpack.c.h.b16 %v5475
      %v5660 = vunpack.c.l.b16 %v5476
      %v5661 = vunpack.c.h.b16 %v5476
      %v5662 = vunpack.c.l.b16 %v5477
      %v5663 = vunpack.c.h.b16 %v5477
      %v5664 = vunpack.c.l.b16 %v5478
      %v5665 = vunpack.c.h.b16 %v5478
      %v5666 = vunpack.c.l.b16 %v5479
      %v5667 = vunpack.c.h.b16 %v5479
      %v5668 = vunpack.c.l.b16 %v5480
      %v5669 = vunpack.c.h.b16 %v5480
      %v5670 = vunpack.c.l.b16 %v5481
      %v5671 = vunpack.c.h.b16 %v5481
      %v5672 = vunpack.c.l.b16 %v5482
      %v5673 = vunpack.c.h.b16 %v5482
      %v5674 = vunpack.c.l.b16 %v5483
      %v5675 = vunpack.c.h.b16 %v5483
      %v5676 = vpack.c.b16 %v5552, %v5548
      %v5677 = vpack.c.b16 %v5553, %v5549
      %v5678 = vpack.c.b16 %v5554, %v5550
      %v5679 = vpack.c.b16 %v5555, %v5551
      %v5680 = vpack.c.b16 %v5560, %v5556
      %v5681 = vpack.c.b16 %v5561, %v5557
      %v5682 = vpack.c.b16 %v5562, %v5558
      %v5683 = vpack.c.b16 %v5563, %v5559
      %v5684 = vpack.c.b16 %v5568, %v5564
      %v5685 = vpack.c.b16 %v5569, %v5565
      %v5686 = vpack.c.b16 %v5570, %v5566
      %v5687 = vpack.c.b16 %v5571, %v5567
      %v5688 = vpack.c.b16 %v5576, %v5572
      %v5689 = vpack.c.b16 %v5577, %v5573
      %v5690 = vpack.c.b16 %v5578, %v5574
      %v5691 = vpack.c.b16 %v5579, %v5575
      %v5692 = vpack.c.b16 %v5584, %v5580
      %v5693 = vpack.c.b16 %v5585, %v5581
      %v5694 = vpack.c.b16 %v5586, %v5582
      %v5695 = vpack.c.b16 %v5587, %v5583
      %v5696 = vpack.c.b16 %v5592, %v5588
      %v5697 = vpack.c.b16 %v5593, %v5589
      %v5698 = vpack.c.b16 %v5594, %v5590
      %v5699 = vpack.c.b16 %v5595, %v5591
      %v5700 = vpack.c.b16 %v5600, %v5596
      %v5701 = vpack.c.b16 %v5601, %v5597
      %v5702 = vpack.c.b16 %v5602, %v5598
      %v5703 = vpack.c.b16 %v5603, %v5599
      %v5704 = vpack.c.b16 %v5608, %v5604
      %v5705 = vpack.c.b16 %v5609, %v5605
      %v5706 = vpack.c.b16 %v5610, %v5606
      %v5707 = vpack.c.b16 %v5611, %v5607
      %v5708 = vpack.c.b16 %v5616, %v5612
      %v5709 = vpack.c.b16 %v5617, %v5613
      %v5710 = vpack.c.b16 %v5618, %v5614
      %v5711 = vpack.c.b16 %v5619, %v5615
      %v5712 = vpack.c.b16 %v5624, %v5620
      %v5713 = vpack.c.b16 %v5625, %v5621
      %v5714 = vpack.c.b16 %v5626, %v5622
      %v5715 = vpack.c.b16 %v5627, %v5623
      %v5716 = vpack.c.b16 %v5632, %v5628
      %v5717 = vpack.c.b16 %v5633, %v5629
      %v5718 = vpack.c.b16 %v5634, %v5630
      %v5719 = vpack.c.b16 %v5635, %v5631
      %v5720 = vpack.c.b16 %v5640, %v5636
      %v5721 = vpack.c.b16 %v5641, %v5637
      %v5722 = vpack.c.b16 %v5642, %v5638
      %v5723 = vpack.c.b16 %v5643, %v5639
      %v5724 = vpack.c.b16 %v5648, %v5644
      %v5725 = vpack.c.b16 %v5649, %v5645
      %v5726 = vpack.c.b16 %v5650, %v5646
      %v5727 = vpack.c.b16 %v5651, %v5647
      %v5728 = vpack.c.b16 %v5656, %v5652
      %v5729 = vpack.c.b16 %v5657, %v5653
      %v5730 = vpack.c.b16 %v5658, %v5654
      %v5731 = vpack.c.b16 %v5659, %v5655
      %v5732 = vpack.c.b16 %v5664, %v5660
      %v5733 = vpack.c.b16 %v5665, %v5661
      %v5734 = vpack.c.b16 %v5666, %v5662
      %v5735 = vpack.c.b16 %v5667, %v5663
      %v5736 = vpack.c.b16 %v5672, %v5668
      %v5737 = vpack.c.b16 %v5673, %v5669
      %v5738 = vpack.c.b16 %v5674, %v5670
      %v5739 = vpack.c.b16 %v5675, %v5671
      %5804 = vmatprep.subr.bf16.mxu0 %v5705
      %5805 = vmatpush1.bf16.msra.mxu0 %v5704
      %5806 = vmatprep.subr.bf16.mxu0 %v5701
      %5807 = vmatpush1.bf16.msra.mxu0 %v5700
      %5808 = vmatprep.subr.bf16.mxu0 %v5697
      %5809 = vmatpush1.bf16.msra.mxu0 %v5696
      %5810 = vmatprep.subr.bf16.mxu0 %v5693
      %5811 = vmatpush1.bf16.msra.mxu0 %v5692
      %5812 = vmatprep.subr.bf16.mxu0 %v5689
      %5813 = vmatpush1.bf16.msra.mxu0 %v5688
      %5814 = vmatprep.subr.bf16.mxu0 %v5685
      %5815 = vmatpush1.bf16.msra.mxu0 %v5684
      %5816 = vmatprep.subr.bf16.mxu0 %v5681
      %5817 = vmatpush1.bf16.msra.mxu0 %v5680
      %5818 = vmatprep.subr.bf16.mxu0 %v5677
      %5819 = vmatpush1.bf16.msra.mxu0 %v5676
      %5820 = vmatprep.subr.bf16.mxu0 %v5737
      %5821 = vmatpush2.bf16.msra.mxu0 %v5736
      %5822 = vmatprep.subr.bf16.mxu0 %v5733
      %5823 = vmatpush2.bf16.msra.mxu0 %v5732
      %5824 = vmatprep.subr.bf16.mxu0 %v5729
      %5825 = vmatpush2.bf16.msra.mxu0 %v5728
      %5826 = vmatprep.subr.bf16.mxu0 %v5725
      %5827 = vmatpush2.bf16.msra.mxu0 %v5724
      %5828 = vmatprep.subr.bf16.mxu0 %v5721
      %5829 = vmatpush2.bf16.msra.mxu0 %v5720
      %5830 = vmatprep.subr.bf16.mxu0 %v5717
      %5831 = vmatpush2.bf16.msra.mxu0 %v5716
      %5832 = vmatprep.subr.bf16.mxu0 %v5713
      %5833 = vmatpush2.bf16.msra.mxu0 %v5712
      %5834 = vmatprep.subr.bf16.mxu0 %v5709
      %5835 = vmatpush2.bf16.msra.mxu0 %v5708
      %5836 = vmatprep.mubr.bf16.mxu0 %v5418
      %5837 = vmatmul.mubr.bf16.gmra.mxu0 %v5417
      %v5838 = vpop.f32.mrf.mxu0
      %v5839 = vadd.f32 0.0, %v5838
      %v5840 = vpop.f32.mrf.mxu0
      %v5841 = vadd.f32 0.0, %v5840
      %v5842 = vpop.f32.mrf.mxu0
      %v5843 = vpop.f32.mrf.mxu0
      %5844 = vdwg.mxu0
      %5845 = vmatprep.subr.bf16.mxu0 %v5707
      %5846 = vmatpush1.bf16.msra.mxu0 %v5706
      %5847 = vmatprep.subr.bf16.mxu0 %v5703
      %5848 = vmatpush1.bf16.msra.mxu0 %v5702
      %5849 = vmatprep.subr.bf16.mxu0 %v5699
      %5850 = vmatpush1.bf16.msra.mxu0 %v5698
      %5851 = vmatprep.subr.bf16.mxu0 %v5695
      %5852 = vmatpush1.bf16.msra.mxu0 %v5694
      %5853 = vmatprep.subr.bf16.mxu0 %v5691
      %5854 = vmatpush1.bf16.msra.mxu0 %v5690
      %5855 = vmatprep.subr.bf16.mxu0 %v5687
      %5856 = vmatpush1.bf16.msra.mxu0 %v5686
      %5857 = vmatprep.subr.bf16.mxu0 %v5683
      %5858 = vmatpush1.bf16.msra.mxu0 %v5682
      %5859 = vmatprep.subr.bf16.mxu0 %v5679
      %5860 = vmatpush1.bf16.msra.mxu0 %v5678
      %5861 = vmatprep.subr.bf16.mxu0 %v5739
      %5862 = vmatpush2.bf16.msra.mxu0 %v5738
      %5863 = vmatprep.subr.bf16.mxu0 %v5735
      %5864 = vmatpush2.bf16.msra.mxu0 %v5734
      %5865 = vmatprep.subr.bf16.mxu0 %v5731
      %5866 = vmatpush2.bf16.msra.mxu0 %v5730
      %5867 = vmatprep.subr.bf16.mxu0 %v5727
      %5868 = vmatpush2.bf16.msra.mxu0 %v5726
      %5869 = vmatprep.subr.bf16.mxu0 %v5723
      %5870 = vmatpush2.bf16.msra.mxu0 %v5722
      %5871 = vmatprep.subr.bf16.mxu0 %v5719
      %5872 = vmatpush2.bf16.msra.mxu0 %v5718
      %5873 = vmatprep.subr.bf16.mxu0 %v5715
      %5874 = vmatpush2.bf16.msra.mxu0 %v5714
      %5875 = vmatprep.subr.bf16.mxu0 %v5711
      %5876 = vmatpush2.bf16.msra.mxu0 %v5710
      %5877 = vmatprep.mubr.bf16.mxu0 %v5418
      %5878 = vmatmul.mubr.bf16.gmra.mxu0 %v5417
      %v5879 = vpop.f32.mrf.mxu0
      %v5880 = vadd.f32 0.0, %v5879
      %v5881 = vpop.f32.mrf.mxu0
      %v5882 = vadd.f32 0.0, %v5881
      %v5883 = vpop.f32.mrf.mxu0
      %v5884 = vpop.f32.mrf.mxu0
      %5885 = vdwg.mxu0
      %v5886 = vadd.f32 %v5411, %v5839
      %v5887 = vadd.f32 %v5412, %v5841
      %v5888 = vadd.f32 %v5413, %v5880
      %v5889 = vadd.f32 %v5414, %v5882
      %v5890 = vmax.f32 %v1141, %v1143
      %v5891 = vmax.f32 %v1142, %v1144
      %v5892 = vpack.c.bf16 %v5890, %v5890
      %v5893 = vpack.c.bf16 %v5891, %v5891
      %s5894 = scalar_lea.vmem %s3, 5120
      %v5895 = vld [vmem:[%s5894] sm:$0xff]
      %v5896 = vld [vmem:[%s5894 + $0x8] sm:$0xff]
      %v5897 = vld [vmem:[%s5894 + $0x10] sm:$0xff]
      %v5898 = vld [vmem:[%s5894 + $0x18] sm:$0xff]
      %v5899 = vld [vmem:[%s5894 + $0x20] sm:$0xff]
      %v5900 = vld [vmem:[%s5894 + $0x28] sm:$0xff]
      %v5901 = vld [vmem:[%s5894 + $0x30] sm:$0xff]
      %v5902 = vld [vmem:[%s5894 + $0x38] sm:$0xff]
      %v5903 = vld [vmem:[%s5894 + $0x40] sm:$0xff]
      %v5904 = vld [vmem:[%s5894 + $0x48] sm:$0xff]
      %v5905 = vld [vmem:[%s5894 + $0x50] sm:$0xff]
      %v5906 = vld [vmem:[%s5894 + $0x58] sm:$0xff]
      %v5907 = vld [vmem:[%s5894 + $0x60] sm:$0xff]
      %v5908 = vld [vmem:[%s5894 + $0x68] sm:$0xff]
      %v5909 = vld [vmem:[%s5894 + $0x70] sm:$0xff]
      %v5910 = vld [vmem:[%s5894 + $0x78] sm:$0xff]
      %v5911 = vld [vmem:[%s5894 + $0x80] sm:$0xff]
      %v5912 = vld [vmem:[%s5894 + $0x88] sm:$0xff]
      %v5913 = vld [vmem:[%s5894 + $0x90] sm:$0xff]
      %v5914 = vld [vmem:[%s5894 + $0x98] sm:$0xff]
      %v5915 = vld [vmem:[%s5894 + $0xa0] sm:$0xff]
      %v5916 = vld [vmem:[%s5894 + $0xa8] sm:$0xff]
      %v5917 = vld [vmem:[%s5894 + $0xb0] sm:$0xff]
      %v5918 = vld [vmem:[%s5894 + $0xb8] sm:$0xff]
      %v5919 = vld [vmem:[%s5894 + $0xc0] sm:$0xff]
      %v5920 = vld [vmem:[%s5894 + $0xc8] sm:$0xff]
      %v5921 = vld [vmem:[%s5894 + $0xd0] sm:$0xff]
      %v5922 = vld [vmem:[%s5894 + $0xd8] sm:$0xff]
      %v5923 = vld [vmem:[%s5894 + $0xe0] sm:$0xff]
      %v5924 = vld [vmem:[%s5894 + $0xe8] sm:$0xff]
      %v5925 = vld [vmem:[%s5894 + $0xf0] sm:$0xff]
      %v5926 = vld [vmem:[%s5894 + $0xf8] sm:$0xff]
      %v5927 = vld [vmem:[%s5894 + $0x100] sm:$0xff]
      %v5928 = vld [vmem:[%s5894 + $0x108] sm:$0xff]
      %v5929 = vld [vmem:[%s5894 + $0x110] sm:$0xff]
      %v5930 = vld [vmem:[%s5894 + $0x118] sm:$0xff]
      %v5931 = vld [vmem:[%s5894 + $0x120] sm:$0xff]
      %v5932 = vld [vmem:[%s5894 + $0x128] sm:$0xff]
      %v5933 = vld [vmem:[%s5894 + $0x130] sm:$0xff]
      %v5934 = vld [vmem:[%s5894 + $0x138] sm:$0xff]
      %v5935 = vld [vmem:[%s5894 + $0x140] sm:$0xff]
      %v5936 = vld [vmem:[%s5894 + $0x148] sm:$0xff]
      %v5937 = vld [vmem:[%s5894 + $0x150] sm:$0xff]
      %v5938 = vld [vmem:[%s5894 + $0x158] sm:$0xff]
      %v5939 = vld [vmem:[%s5894 + $0x160] sm:$0xff]
      %v5940 = vld [vmem:[%s5894 + $0x168] sm:$0xff]
      %v5941 = vld [vmem:[%s5894 + $0x170] sm:$0xff]
      %v5942 = vld [vmem:[%s5894 + $0x178] sm:$0xff]
      %v5943 = vld [vmem:[%s5894 + $0x180] sm:$0xff]
      %v5944 = vld [vmem:[%s5894 + $0x188] sm:$0xff]
      %v5945 = vld [vmem:[%s5894 + $0x190] sm:$0xff]
      %v5946 = vld [vmem:[%s5894 + $0x198] sm:$0xff]
      %v5947 = vld [vmem:[%s5894 + $0x1a0] sm:$0xff]
      %v5948 = vld [vmem:[%s5894 + $0x1a8] sm:$0xff]
      %v5949 = vld [vmem:[%s5894 + $0x1b0] sm:$0xff]
      %v5950 = vld [vmem:[%s5894 + $0x1b8] sm:$0xff]
      %v5951 = vld [vmem:[%s5894 + $0x1c0] sm:$0xff]
      %v5952 = vld [vmem:[%s5894 + $0x1c8] sm:$0xff]
      %v5953 = vld [vmem:[%s5894 + $0x1d0] sm:$0xff]
      %v5954 = vld [vmem:[%s5894 + $0x1d8] sm:$0xff]
      %v5955 = vld [vmem:[%s5894 + $0x1e0] sm:$0xff]
      %v5956 = vld [vmem:[%s5894 + $0x1e8] sm:$0xff]
      %v5957 = vld [vmem:[%s5894 + $0x1f0] sm:$0xff]
      %v5958 = vld [vmem:[%s5894 + $0x1f8] sm:$0xff]
      %v6023 = vunpack.c.l.b16 %v5895
      %v6024 = vunpack.c.h.b16 %v5895
      %v6025 = vunpack.c.l.b16 %v5896
      %v6026 = vunpack.c.h.b16 %v5896
      %v6027 = vunpack.c.l.b16 %v5897
      %v6028 = vunpack.c.h.b16 %v5897
      %v6029 = vunpack.c.l.b16 %v5898
      %v6030 = vunpack.c.h.b16 %v5898
      %v6031 = vunpack.c.l.b16 %v5899
      %v6032 = vunpack.c.h.b16 %v5899
      %v6033 = vunpack.c.l.b16 %v5900
      %v6034 = vunpack.c.h.b16 %v5900
      %v6035 = vunpack.c.l.b16 %v5901
      %v6036 = vunpack.c.h.b16 %v5901
      %v6037 = vunpack.c.l.b16 %v5902
      %v6038 = vunpack.c.h.b16 %v5902
      %v6039 = vunpack.c.l.b16 %v5903
      %v6040 = vunpack.c.h.b16 %v5903
      %v6041 = vunpack.c.l.b16 %v5904
      %v6042 = vunpack.c.h.b16 %v5904
      %v6043 = vunpack.c.l.b16 %v5905
      %v6044 = vunpack.c.h.b16 %v5905
      %v6045 = vunpack.c.l.b16 %v5906
      %v6046 = vunpack.c.h.b16 %v5906
      %v6047 = vunpack.c.l.b16 %v5907
      %v6048 = vunpack.c.h.b16 %v5907
      %v6049 = vunpack.c.l.b16 %v5908
      %v6050 = vunpack.c.h.b16 %v5908
      %v6051 = vunpack.c.l.b16 %v5909
      %v6052 = vunpack.c.h.b16 %v5909
      %v6053 = vunpack.c.l.b16 %v5910
      %v6054 = vunpack.c.h.b16 %v5910
      %v6055 = vunpack.c.l.b16 %v5911
      %v6056 = vunpack.c.h.b16 %v5911
      %v6057 = vunpack.c.l.b16 %v5912
      %v6058 = vunpack.c.h.b16 %v5912
      %v6059 = vunpack.c.l.b16 %v5913
      %v6060 = vunpack.c.h.b16 %v5913
      %v6061 = vunpack.c.l.b16 %v5914
      %v6062 = vunpack.c.h.b16 %v5914
      %v6063 = vunpack.c.l.b16 %v5915
      %v6064 = vunpack.c.h.b16 %v5915
      %v6065 = vunpack.c.l.b16 %v5916
      %v6066 = vunpack.c.h.b16 %v5916
      %v6067 = vunpack.c.l.b16 %v5917
      %v6068 = vunpack.c.h.b16 %v5917
      %v6069 = vunpack.c.l.b16 %v5918
      %v6070 = vunpack.c.h.b16 %v5918
      %v6071 = vunpack.c.l.b16 %v5919
      %v6072 = vunpack.c.h.b16 %v5919
      %v6073 = vunpack.c.l.b16 %v5920
      %v6074 = vunpack.c.h.b16 %v5920
      %v6075 = vunpack.c.l.b16 %v5921
      %v6076 = vunpack.c.h.b16 %v5921
      %v6077 = vunpack.c.l.b16 %v5922
      %v6078 = vunpack.c.h.b16 %v5922
      %v6079 = vunpack.c.l.b16 %v5923
      %v6080 = vunpack.c.h.b16 %v5923
      %v6081 = vunpack.c.l.b16 %v5924
      %v6082 = vunpack.c.h.b16 %v5924
      %v6083 = vunpack.c.l.b16 %v5925
      %v6084 = vunpack.c.h.b16 %v5925
      %v6085 = vunpack.c.l.b16 %v5926
      %v6086 = vunpack.c.h.b16 %v5926
      %v6087 = vunpack.c.l.b16 %v5927
      %v6088 = vunpack.c.h.b16 %v5927
      %v6089 = vunpack.c.l.b16 %v5928
      %v6090 = vunpack.c.h.b16 %v5928
      %v6091 = vunpack.c.l.b16 %v5929
      %v6092 = vunpack.c.h.b16 %v5929
      %v6093 = vunpack.c.l.b16 %v5930
      %v6094 = vunpack.c.h.b16 %v5930
      %v6095 = vunpack.c.l.b16 %v5931
      %v6096 = vunpack.c.h.b16 %v5931
      %v6097 = vunpack.c.l.b16 %v5932
      %v6098 = vunpack.c.h.b16 %v5932
      %v6099 = vunpack.c.l.b16 %v5933
      %v6100 = vunpack.c.h.b16 %v5933
      %v6101 = vunpack.c.l.b16 %v5934
      %v6102 = vunpack.c.h.b16 %v5934
      %v6103 = vunpack.c.l.b16 %v5935
      %v6104 = vunpack.c.h.b16 %v5935
      %v6105 = vunpack.c.l.b16 %v5936
      %v6106 = vunpack.c.h.b16 %v5936
      %v6107 = vunpack.c.l.b16 %v5937
      %v6108 = vunpack.c.h.b16 %v5937
      %v6109 = vunpack.c.l.b16 %v5938
      %v6110 = vunpack.c.h.b16 %v5938
      %v6111 = vunpack.c.l.b16 %v5939
      %v6112 = vunpack.c.h.b16 %v5939
      %v6113 = vunpack.c.l.b16 %v5940
      %v6114 = vunpack.c.h.b16 %v5940
      %v6115 = vunpack.c.l.b16 %v5941
      %v6116 = vunpack.c.h.b16 %v5941
      %v6117 = vunpack.c.l.b16 %v5942
      %v6118 = vunpack.c.h.b16 %v5942
      %v6119 = vunpack.c.l.b16 %v5943
      %v6120 = vunpack.c.h.b16 %v5943
      %v6121 = vunpack.c.l.b16 %v5944
      %v6122 = vunpack.c.h.b16 %v5944
      %v6123 = vunpack.c.l.b16 %v5945
      %v6124 = vunpack.c.h.b16 %v5945
      %v6125 = vunpack.c.l.b16 %v5946
      %v6126 = vunpack.c.h.b16 %v5946
      %v6127 = vunpack.c.l.b16 %v5947
      %v6128 = vunpack.c.h.b16 %v5947
      %v6129 = vunpack.c.l.b16 %v5948
      %v6130 = vunpack.c.h.b16 %v5948
      %v6131 = vunpack.c.l.b16 %v5949
      %v6132 = vunpack.c.h.b16 %v5949
      %v6133 = vunpack.c.l.b16 %v5950
      %v6134 = vunpack.c.h.b16 %v5950
      %v6135 = vunpack.c.l.b16 %v5951
      %v6136 = vunpack.c.h.b16 %v5951
      %v6137 = vunpack.c.l.b16 %v5952
      %v6138 = vunpack.c.h.b16 %v5952
      %v6139 = vunpack.c.l.b16 %v5953
      %v6140 = vunpack.c.h.b16 %v5953
      %v6141 = vunpack.c.l.b16 %v5954
      %v6142 = vunpack.c.h.b16 %v5954
      %v6143 = vunpack.c.l.b16 %v5955
      %v6144 = vunpack.c.h.b16 %v5955
      %v6145 = vunpack.c.l.b16 %v5956
      %v6146 = vunpack.c.h.b16 %v5956
      %v6147 = vunpack.c.l.b16 %v5957
      %v6148 = vunpack.c.h.b16 %v5957
      %v6149 = vunpack.c.l.b16 %v5958
      %v6150 = vunpack.c.h.b16 %v5958
      %v6151 = vpack.c.b16 %v6027, %v6023
      %v6152 = vpack.c.b16 %v6028, %v6024
      %v6153 = vpack.c.b16 %v6029, %v6025
      %v6154 = vpack.c.b16 %v6030, %v6026
      %v6155 = vpack.c.b16 %v6035, %v6031
      %v6156 = vpack.c.b16 %v6036, %v6032
      %v6157 = vpack.c.b16 %v6037, %v6033
      %v6158 = vpack.c.b16 %v6038, %v6034
      %v6159 = vpack.c.b16 %v6043, %v6039
      %v6160 = vpack.c.b16 %v6044, %v6040
      %v6161 = vpack.c.b16 %v6045, %v6041
      %v6162 = vpack.c.b16 %v6046, %v6042
      %v6163 = vpack.c.b16 %v6051, %v6047
      %v6164 = vpack.c.b16 %v6052, %v6048
      %v6165 = vpack.c.b16 %v6053, %v6049
      %v6166 = vpack.c.b16 %v6054, %v6050
      %v6167 = vpack.c.b16 %v6059, %v6055
      %v6168 = vpack.c.b16 %v6060, %v6056
      %v6169 = vpack.c.b16 %v6061, %v6057
      %v6170 = vpack.c.b16 %v6062, %v6058
      %v6171 = vpack.c.b16 %v6067, %v6063
      %v6172 = vpack.c.b16 %v6068, %v6064
      %v6173 = vpack.c.b16 %v6069, %v6065
      %v6174 = vpack.c.b16 %v6070, %v6066
      %v6175 = vpack.c.b16 %v6075, %v6071
      %v6176 = vpack.c.b16 %v6076, %v6072
      %v6177 = vpack.c.b16 %v6077, %v6073
      %v6178 = vpack.c.b16 %v6078, %v6074
      %v6179 = vpack.c.b16 %v6083, %v6079
      %v6180 = vpack.c.b16 %v6084, %v6080
      %v6181 = vpack.c.b16 %v6085, %v6081
      %v6182 = vpack.c.b16 %v6086, %v6082
      %v6183 = vpack.c.b16 %v6091, %v6087
      %v6184 = vpack.c.b16 %v6092, %v6088
      %v6185 = vpack.c.b16 %v6093, %v6089
      %v6186 = vpack.c.b16 %v6094, %v6090
      %v6187 = vpack.c.b16 %v6099, %v6095
      %v6188 = vpack.c.b16 %v6100, %v6096
      %v6189 = vpack.c.b16 %v6101, %v6097
      %v6190 = vpack.c.b16 %v6102, %v6098
      %v6191 = vpack.c.b16 %v6107, %v6103
      %v6192 = vpack.c.b16 %v6108, %v6104
      %v6193 = vpack.c.b16 %v6109, %v6105
      %v6194 = vpack.c.b16 %v6110, %v6106
      %v6195 = vpack.c.b16 %v6115, %v6111
      %v6196 = vpack.c.b16 %v6116, %v6112
      %v6197 = vpack.c.b16 %v6117, %v6113
      %v6198 = vpack.c.b16 %v6118, %v6114
      %v6199 = vpack.c.b16 %v6123, %v6119
      %v6200 = vpack.c.b16 %v6124, %v6120
      %v6201 = vpack.c.b16 %v6125, %v6121
      %v6202 = vpack.c.b16 %v6126, %v6122
      %v6203 = vpack.c.b16 %v6131, %v6127
      %v6204 = vpack.c.b16 %v6132, %v6128
      %v6205 = vpack.c.b16 %v6133, %v6129
      %v6206 = vpack.c.b16 %v6134, %v6130
      %v6207 = vpack.c.b16 %v6139, %v6135
      %v6208 = vpack.c.b16 %v6140, %v6136
      %v6209 = vpack.c.b16 %v6141, %v6137
      %v6210 = vpack.c.b16 %v6142, %v6138
      %v6211 = vpack.c.b16 %v6147, %v6143
      %v6212 = vpack.c.b16 %v6148, %v6144
      %v6213 = vpack.c.b16 %v6149, %v6145
      %v6214 = vpack.c.b16 %v6150, %v6146
      %6279 = vmatprep.subr.bf16.mxu0 %v6180
      %6280 = vmatpush1.bf16.msra.mxu0 %v6179
      %6281 = vmatprep.subr.bf16.mxu0 %v6176
      %6282 = vmatpush1.bf16.msra.mxu0 %v6175
      %6283 = vmatprep.subr.bf16.mxu0 %v6172
      %6284 = vmatpush1.bf16.msra.mxu0 %v6171
      %6285 = vmatprep.subr.bf16.mxu0 %v6168
      %6286 = vmatpush1.bf16.msra.mxu0 %v6167
      %6287 = vmatprep.subr.bf16.mxu0 %v6164
      %6288 = vmatpush1.bf16.msra.mxu0 %v6163
      %6289 = vmatprep.subr.bf16.mxu0 %v6160
      %6290 = vmatpush1.bf16.msra.mxu0 %v6159
      %6291 = vmatprep.subr.bf16.mxu0 %v6156
      %6292 = vmatpush1.bf16.msra.mxu0 %v6155
      %6293 = vmatprep.subr.bf16.mxu0 %v6152
      %6294 = vmatpush1.bf16.msra.mxu0 %v6151
      %6295 = vmatprep.subr.bf16.mxu0 %v6212
      %6296 = vmatpush2.bf16.msra.mxu0 %v6211
      %6297 = vmatprep.subr.bf16.mxu0 %v6208
      %6298 = vmatpush2.bf16.msra.mxu0 %v6207
      %6299 = vmatprep.subr.bf16.mxu0 %v6204
      %6300 = vmatpush2.bf16.msra.mxu0 %v6203
      %6301 = vmatprep.subr.bf16.mxu0 %v6200
      %6302 = vmatpush2.bf16.msra.mxu0 %v6199
      %6303 = vmatprep.subr.bf16.mxu0 %v6196
      %6304 = vmatpush2.bf16.msra.mxu0 %v6195
      %6305 = vmatprep.subr.bf16.mxu0 %v6192
      %6306 = vmatpush2.bf16.msra.mxu0 %v6191
      %6307 = vmatprep.subr.bf16.mxu0 %v6188
      %6308 = vmatpush2.bf16.msra.mxu0 %v6187
      %6309 = vmatprep.subr.bf16.mxu0 %v6184
      %6310 = vmatpush2.bf16.msra.mxu0 %v6183
      %6311 = vmatprep.mubr.bf16.mxu0 %v5893
      %6312 = vmatmul.mubr.bf16.gmra.mxu0 %v5892
      %v6313 = vpop.f32.mrf.mxu0
      %v6314 = vadd.f32 0.0, %v6313
      %v6315 = vpop.f32.mrf.mxu0
      %v6316 = vadd.f32 0.0, %v6315
      %v6317 = vpop.f32.mrf.mxu0
      %v6318 = vpop.f32.mrf.mxu0
      %6319 = vdwg.mxu0
      %6320 = vmatprep.subr.bf16.mxu0 %v6182
      %6321 = vmatpush1.bf16.msra.mxu0 %v6181
      %6322 = vmatprep.subr.bf16.mxu0 %v6178
      %6323 = vmatpush1.bf16.msra.mxu0 %v6177
      %6324 = vmatprep.subr.bf16.mxu0 %v6174
      %6325 = vmatpush1.bf16.msra.mxu0 %v6173
      %6326 = vmatprep.subr.bf16.mxu0 %v6170
      %6327 = vmatpush1.bf16.msra.mxu0 %v6169
      %6328 = vmatprep.subr.bf16.mxu0 %v6166
      %6329 = vmatpush1.bf16.msra.mxu0 %v6165
      %6330 = vmatprep.subr.bf16.mxu0 %v6162
      %6331 = vmatpush1.bf16.msra.mxu0 %v6161
      %6332 = vmatprep.subr.bf16.mxu0 %v6158
      %6333 = vmatpush1.bf16.msra.mxu0 %v6157
      %6334 = vmatprep.subr.bf16.mxu0 %v6154
      %6335 = vmatpush1.bf16.msra.mxu0 %v6153
      %6336 = vmatprep.subr.bf16.mxu0 %v6214
      %6337 = vmatpush2.bf16.msra.mxu0 %v6213
      %6338 = vmatprep.subr.bf16.mxu0 %v6210
      %6339 = vmatpush2.bf16.msra.mxu0 %v6209
      %6340 = vmatprep.subr.bf16.mxu0 %v6206
      %6341 = vmatpush2.bf16.msra.mxu0 %v6205
      %6342 = vmatprep.subr.bf16.mxu0 %v6202
      %6343 = vmatpush2.bf16.msra.mxu0 %v6201
      %6344 = vmatprep.subr.bf16.mxu0 %v6198
      %6345 = vmatpush2.bf16.msra.mxu0 %v6197
      %6346 = vmatprep.subr.bf16.mxu0 %v6194
      %6347 = vmatpush2.bf16.msra.mxu0 %v6193
      %6348 = vmatprep.subr.bf16.mxu0 %v6190
      %6349 = vmatpush2.bf16.msra.mxu0 %v6189
      %6350 = vmatprep.subr.bf16.mxu0 %v6186
      %6351 = vmatpush2.bf16.msra.mxu0 %v6185
      %6352 = vmatprep.mubr.bf16.mxu0 %v5893
      %6353 = vmatmul.mubr.bf16.gmra.mxu0 %v5892
      %v6354 = vpop.f32.mrf.mxu0
      %v6355 = vadd.f32 0.0, %v6354
      %v6356 = vpop.f32.mrf.mxu0
      %v6357 = vadd.f32 0.0, %v6356
      %v6358 = vpop.f32.mrf.mxu0
      %v6359 = vpop.f32.mrf.mxu0
      %6360 = vdwg.mxu0
      %v6361 = vadd.f32 %v5886, %v6314
      %v6362 = vadd.f32 %v5887, %v6316
      %v6363 = vadd.f32 %v5888, %v6355
      %v6364 = vadd.f32 %v5889, %v6357
      %v6365 = vmax.f32 %v1145, %v1147
      %v6366 = vmax.f32 %v1146, %v1148
      %v6367 = vpack.c.bf16 %v6365, %v6365
      %v6368 = vpack.c.bf16 %v6366, %v6366
      %s6369 = scalar_lea.vmem %s3, 5632
      %v6370 = vld [vmem:[%s6369] sm:$0xff]
      %v6371 = vld [vmem:[%s6369 + $0x8] sm:$0xff]
      %v6372 = vld [vmem:[%s6369 + $0x10] sm:$0xff]
      %v6373 = vld [vmem:[%s6369 + $0x18] sm:$0xff]
      %v6374 = vld [vmem:[%s6369 + $0x20] sm:$0xff]
      %v6375 = vld [vmem:[%s6369 + $0x28] sm:$0xff]
      %v6376 = vld [vmem:[%s6369 + $0x30] sm:$0xff]
      %v6377 = vld [vmem:[%s6369 + $0x38] sm:$0xff]
      %v6378 = vld [vmem:[%s6369 + $0x40] sm:$0xff]
      %v6379 = vld [vmem:[%s6369 + $0x48] sm:$0xff]
      %v6380 = vld [vmem:[%s6369 + $0x50] sm:$0xff]
      %v6381 = vld [vmem:[%s6369 + $0x58] sm:$0xff]
      %v6382 = vld [vmem:[%s6369 + $0x60] sm:$0xff]
      %v6383 = vld [vmem:[%s6369 + $0x68] sm:$0xff]
      %v6384 = vld [vmem:[%s6369 + $0x70] sm:$0xff]
      %v6385 = vld [vmem:[%s6369 + $0x78] sm:$0xff]
      %v6386 = vld [vmem:[%s6369 + $0x80] sm:$0xff]
      %v6387 = vld [vmem:[%s6369 + $0x88] sm:$0xff]
      %v6388 = vld [vmem:[%s6369 + $0x90] sm:$0xff]
      %v6389 = vld [vmem:[%s6369 + $0x98] sm:$0xff]
      %v6390 = vld [vmem:[%s6369 + $0xa0] sm:$0xff]
      %v6391 = vld [vmem:[%s6369 + $0xa8] sm:$0xff]
      %v6392 = vld [vmem:[%s6369 + $0xb0] sm:$0xff]
      %v6393 = vld [vmem:[%s6369 + $0xb8] sm:$0xff]
      %v6394 = vld [vmem:[%s6369 + $0xc0] sm:$0xff]
      %v6395 = vld [vmem:[%s6369 + $0xc8] sm:$0xff]
      %v6396 = vld [vmem:[%s6369 + $0xd0] sm:$0xff]
      %v6397 = vld [vmem:[%s6369 + $0xd8] sm:$0xff]
      %v6398 = vld [vmem:[%s6369 + $0xe0] sm:$0xff]
      %v6399 = vld [vmem:[%s6369 + $0xe8] sm:$0xff]
      %v6400 = vld [vmem:[%s6369 + $0xf0] sm:$0xff]
      %v6401 = vld [vmem:[%s6369 + $0xf8] sm:$0xff]
      %v6402 = vld [vmem:[%s6369 + $0x100] sm:$0xff]
      %v6403 = vld [vmem:[%s6369 + $0x108] sm:$0xff]
      %v6404 = vld [vmem:[%s6369 + $0x110] sm:$0xff]
      %v6405 = vld [vmem:[%s6369 + $0x118] sm:$0xff]
      %v6406 = vld [vmem:[%s6369 + $0x120] sm:$0xff]
      %v6407 = vld [vmem:[%s6369 + $0x128] sm:$0xff]
      %v6408 = vld [vmem:[%s6369 + $0x130] sm:$0xff]
      %v6409 = vld [vmem:[%s6369 + $0x138] sm:$0xff]
      %v6410 = vld [vmem:[%s6369 + $0x140] sm:$0xff]
      %v6411 = vld [vmem:[%s6369 + $0x148] sm:$0xff]
      %v6412 = vld [vmem:[%s6369 + $0x150] sm:$0xff]
      %v6413 = vld [vmem:[%s6369 + $0x158] sm:$0xff]
      %v6414 = vld [vmem:[%s6369 + $0x160] sm:$0xff]
      %v6415 = vld [vmem:[%s6369 + $0x168] sm:$0xff]
      %v6416 = vld [vmem:[%s6369 + $0x170] sm:$0xff]
      %v6417 = vld [vmem:[%s6369 + $0x178] sm:$0xff]
      %v6418 = vld [vmem:[%s6369 + $0x180] sm:$0xff]
      %v6419 = vld [vmem:[%s6369 + $0x188] sm:$0xff]
      %v6420 = vld [vmem:[%s6369 + $0x190] sm:$0xff]
      %v6421 = vld [vmem:[%s6369 + $0x198] sm:$0xff]
      %v6422 = vld [vmem:[%s6369 + $0x1a0] sm:$0xff]
      %v6423 = vld [vmem:[%s6369 + $0x1a8] sm:$0xff]
      %v6424 = vld [vmem:[%s6369 + $0x1b0] sm:$0xff]
      %v6425 = vld [vmem:[%s6369 + $0x1b8] sm:$0xff]
      %v6426 = vld [vmem:[%s6369 + $0x1c0] sm:$0xff]
      %v6427 = vld [vmem:[%s6369 + $0x1c8] sm:$0xff]
      %v6428 = vld [vmem:[%s6369 + $0x1d0] sm:$0xff]
      %v6429 = vld [vmem:[%s6369 + $0x1d8] sm:$0xff]
      %v6430 = vld [vmem:[%s6369 + $0x1e0] sm:$0xff]
      %v6431 = vld [vmem:[%s6369 + $0x1e8] sm:$0xff]
      %v6432 = vld [vmem:[%s6369 + $0x1f0] sm:$0xff]
      %v6433 = vld [vmem:[%s6369 + $0x1f8] sm:$0xff]
      %v6498 = vunpack.c.l.b16 %v6370
      %v6499 = vunpack.c.h.b16 %v6370
      %v6500 = vunpack.c.l.b16 %v6371
      %v6501 = vunpack.c.h.b16 %v6371
      %v6502 = vunpack.c.l.b16 %v6372
      %v6503 = vunpack.c.h.b16 %v6372
      %v6504 = vunpack.c.l.b16 %v6373
      %v6505 = vunpack.c.h.b16 %v6373
      %v6506 = vunpack.c.l.b16 %v6374
      %v6507 = vunpack.c.h.b16 %v6374
      %v6508 = vunpack.c.l.b16 %v6375
      %v6509 = vunpack.c.h.b16 %v6375
      %v6510 = vunpack.c.l.b16 %v6376
      %v6511 = vunpack.c.h.b16 %v6376
      %v6512 = vunpack.c.l.b16 %v6377
      %v6513 = vunpack.c.h.b16 %v6377
      %v6514 = vunpack.c.l.b16 %v6378
      %v6515 = vunpack.c.h.b16 %v6378
      %v6516 = vunpack.c.l.b16 %v6379
      %v6517 = vunpack.c.h.b16 %v6379
      %v6518 = vunpack.c.l.b16 %v6380
      %v6519 = vunpack.c.h.b16 %v6380
      %v6520 = vunpack.c.l.b16 %v6381
      %v6521 = vunpack.c.h.b16 %v6381
      %v6522 = vunpack.c.l.b16 %v6382
      %v6523 = vunpack.c.h.b16 %v6382
      %v6524 = vunpack.c.l.b16 %v6383
      %v6525 = vunpack.c.h.b16 %v6383
      %v6526 = vunpack.c.l.b16 %v6384
      %v6527 = vunpack.c.h.b16 %v6384
      %v6528 = vunpack.c.l.b16 %v6385
      %v6529 = vunpack.c.h.b16 %v6385
      %v6530 = vunpack.c.l.b16 %v6386
      %v6531 = vunpack.c.h.b16 %v6386
      %v6532 = vunpack.c.l.b16 %v6387
      %v6533 = vunpack.c.h.b16 %v6387
      %v6534 = vunpack.c.l.b16 %v6388
      %v6535 = vunpack.c.h.b16 %v6388
      %v6536 = vunpack.c.l.b16 %v6389
      %v6537 = vunpack.c.h.b16 %v6389
      %v6538 = vunpack.c.l.b16 %v6390
      %v6539 = vunpack.c.h.b16 %v6390
      %v6540 = vunpack.c.l.b16 %v6391
      %v6541 = vunpack.c.h.b16 %v6391
      %v6542 = vunpack.c.l.b16 %v6392
      %v6543 = vunpack.c.h.b16 %v6392
      %v6544 = vunpack.c.l.b16 %v6393
      %v6545 = vunpack.c.h.b16 %v6393
      %v6546 = vunpack.c.l.b16 %v6394
      %v6547 = vunpack.c.h.b16 %v6394
      %v6548 = vunpack.c.l.b16 %v6395
      %v6549 = vunpack.c.h.b16 %v6395
      %v6550 = vunpack.c.l.b16 %v6396
      %v6551 = vunpack.c.h.b16 %v6396
      %v6552 = vunpack.c.l.b16 %v6397
      %v6553 = vunpack.c.h.b16 %v6397
      %v6554 = vunpack.c.l.b16 %v6398
      %v6555 = vunpack.c.h.b16 %v6398
      %v6556 = vunpack.c.l.b16 %v6399
      %v6557 = vunpack.c.h.b16 %v6399
      %v6558 = vunpack.c.l.b16 %v6400
      %v6559 = vunpack.c.h.b16 %v6400
      %v6560 = vunpack.c.l.b16 %v6401
      %v6561 = vunpack.c.h.b16 %v6401
      %v6562 = vunpack.c.l.b16 %v6402
      %v6563 = vunpack.c.h.b16 %v6402
      %v6564 = vunpack.c.l.b16 %v6403
      %v6565 = vunpack.c.h.b16 %v6403
      %v6566 = vunpack.c.l.b16 %v6404
      %v6567 = vunpack.c.h.b16 %v6404
      %v6568 = vunpack.c.l.b16 %v6405
      %v6569 = vunpack.c.h.b16 %v6405
      %v6570 = vunpack.c.l.b16 %v6406
      %v6571 = vunpack.c.h.b16 %v6406
      %v6572 = vunpack.c.l.b16 %v6407
      %v6573 = vunpack.c.h.b16 %v6407
      %v6574 = vunpack.c.l.b16 %v6408
      %v6575 = vunpack.c.h.b16 %v6408
      %v6576 = vunpack.c.l.b16 %v6409
      %v6577 = vunpack.c.h.b16 %v6409
      %v6578 = vunpack.c.l.b16 %v6410
      %v6579 = vunpack.c.h.b16 %v6410
      %v6580 = vunpack.c.l.b16 %v6411
      %v6581 = vunpack.c.h.b16 %v6411
      %v6582 = vunpack.c.l.b16 %v6412
      %v6583 = vunpack.c.h.b16 %v6412
      %v6584 = vunpack.c.l.b16 %v6413
      %v6585 = vunpack.c.h.b16 %v6413
      %v6586 = vunpack.c.l.b16 %v6414
      %v6587 = vunpack.c.h.b16 %v6414
      %v6588 = vunpack.c.l.b16 %v6415
      %v6589 = vunpack.c.h.b16 %v6415
      %v6590 = vunpack.c.l.b16 %v6416
      %v6591 = vunpack.c.h.b16 %v6416
      %v6592 = vunpack.c.l.b16 %v6417
      %v6593 = vunpack.c.h.b16 %v6417
      %v6594 = vunpack.c.l.b16 %v6418
      %v6595 = vunpack.c.h.b16 %v6418
      %v6596 = vunpack.c.l.b16 %v6419
      %v6597 = vunpack.c.h.b16 %v6419
      %v6598 = vunpack.c.l.b16 %v6420
      %v6599 = vunpack.c.h.b16 %v6420
      %v6600 = vunpack.c.l.b16 %v6421
      %v6601 = vunpack.c.h.b16 %v6421
      %v6602 = vunpack.c.l.b16 %v6422
      %v6603 = vunpack.c.h.b16 %v6422
      %v6604 = vunpack.c.l.b16 %v6423
      %v6605 = vunpack.c.h.b16 %v6423
      %v6606 = vunpack.c.l.b16 %v6424
      %v6607 = vunpack.c.h.b16 %v6424
      %v6608 = vunpack.c.l.b16 %v6425
      %v6609 = vunpack.c.h.b16 %v6425
      %v6610 = vunpack.c.l.b16 %v6426
      %v6611 = vunpack.c.h.b16 %v6426
      %v6612 = vunpack.c.l.b16 %v6427
      %v6613 = vunpack.c.h.b16 %v6427
      %v6614 = vunpack.c.l.b16 %v6428
      %v6615 = vunpack.c.h.b16 %v6428
      %v6616 = vunpack.c.l.b16 %v6429
      %v6617 = vunpack.c.h.b16 %v6429
      %v6618 = vunpack.c.l.b16 %v6430
      %v6619 = vunpack.c.h.b16 %v6430
      %v6620 = vunpack.c.l.b16 %v6431
      %v6621 = vunpack.c.h.b16 %v6431
      %v6622 = vunpack.c.l.b16 %v6432
      %v6623 = vunpack.c.h.b16 %v6432
      %v6624 = vunpack.c.l.b16 %v6433
      %v6625 = vunpack.c.h.b16 %v6433
      %v6626 = vpack.c.b16 %v6502, %v6498
      %v6627 = vpack.c.b16 %v6503, %v6499
      %v6628 = vpack.c.b16 %v6504, %v6500
      %v6629 = vpack.c.b16 %v6505, %v6501
      %v6630 = vpack.c.b16 %v6510, %v6506
      %v6631 = vpack.c.b16 %v6511, %v6507
      %v6632 = vpack.c.b16 %v6512, %v6508
      %v6633 = vpack.c.b16 %v6513, %v6509
      %v6634 = vpack.c.b16 %v6518, %v6514
      %v6635 = vpack.c.b16 %v6519, %v6515
      %v6636 = vpack.c.b16 %v6520, %v6516
      %v6637 = vpack.c.b16 %v6521, %v6517
      %v6638 = vpack.c.b16 %v6526, %v6522
      %v6639 = vpack.c.b16 %v6527, %v6523
      %v6640 = vpack.c.b16 %v6528, %v6524
      %v6641 = vpack.c.b16 %v6529, %v6525
      %v6642 = vpack.c.b16 %v6534, %v6530
      %v6643 = vpack.c.b16 %v6535, %v6531
      %v6644 = vpack.c.b16 %v6536, %v6532
      %v6645 = vpack.c.b16 %v6537, %v6533
      %v6646 = vpack.c.b16 %v6542, %v6538
      %v6647 = vpack.c.b16 %v6543, %v6539
      %v6648 = vpack.c.b16 %v6544, %v6540
      %v6649 = vpack.c.b16 %v6545, %v6541
      %v6650 = vpack.c.b16 %v6550, %v6546
      %v6651 = vpack.c.b16 %v6551, %v6547
      %v6652 = vpack.c.b16 %v6552, %v6548
      %v6653 = vpack.c.b16 %v6553, %v6549
      %v6654 = vpack.c.b16 %v6558, %v6554
      %v6655 = vpack.c.b16 %v6559, %v6555
      %v6656 = vpack.c.b16 %v6560, %v6556
      %v6657 = vpack.c.b16 %v6561, %v6557
      %v6658 = vpack.c.b16 %v6566, %v6562
      %v6659 = vpack.c.b16 %v6567, %v6563
      %v6660 = vpack.c.b16 %v6568, %v6564
      %v6661 = vpack.c.b16 %v6569, %v6565
      %v6662 = vpack.c.b16 %v6574, %v6570
      %v6663 = vpack.c.b16 %v6575, %v6571
      %v6664 = vpack.c.b16 %v6576, %v6572
      %v6665 = vpack.c.b16 %v6577, %v6573
      %v6666 = vpack.c.b16 %v6582, %v6578
      %v6667 = vpack.c.b16 %v6583, %v6579
      %v6668 = vpack.c.b16 %v6584, %v6580
      %v6669 = vpack.c.b16 %v6585, %v6581
      %v6670 = vpack.c.b16 %v6590, %v6586
      %v6671 = vpack.c.b16 %v6591, %v6587
      %v6672 = vpack.c.b16 %v6592, %v6588
      %v6673 = vpack.c.b16 %v6593, %v6589
      %v6674 = vpack.c.b16 %v6598, %v6594
      %v6675 = vpack.c.b16 %v6599, %v6595
      %v6676 = vpack.c.b16 %v6600, %v6596
      %v6677 = vpack.c.b16 %v6601, %v6597
      %v6678 = vpack.c.b16 %v6606, %v6602
      %v6679 = vpack.c.b16 %v6607, %v6603
      %v6680 = vpack.c.b16 %v6608, %v6604
      %v6681 = vpack.c.b16 %v6609, %v6605
      %v6682 = vpack.c.b16 %v6614, %v6610
      %v6683 = vpack.c.b16 %v6615, %v6611
      %v6684 = vpack.c.b16 %v6616, %v6612
      %v6685 = vpack.c.b16 %v6617, %v6613
      %v6686 = vpack.c.b16 %v6622, %v6618
      %v6687 = vpack.c.b16 %v6623, %v6619
      %v6688 = vpack.c.b16 %v6624, %v6620
      %v6689 = vpack.c.b16 %v6625, %v6621
      %6754 = vmatprep.subr.bf16.mxu0 %v6655
      %6755 = vmatpush1.bf16.msra.mxu0 %v6654
      %6756 = vmatprep.subr.bf16.mxu0 %v6651
      %6757 = vmatpush1.bf16.msra.mxu0 %v6650
      %6758 = vmatprep.subr.bf16.mxu0 %v6647
      %6759 = vmatpush1.bf16.msra.mxu0 %v6646
      %6760 = vmatprep.subr.bf16.mxu0 %v6643
      %6761 = vmatpush1.bf16.msra.mxu0 %v6642
      %6762 = vmatprep.subr.bf16.mxu0 %v6639
      %6763 = vmatpush1.bf16.msra.mxu0 %v6638
      %6764 = vmatprep.subr.bf16.mxu0 %v6635
      %6765 = vmatpush1.bf16.msra.mxu0 %v6634
      %6766 = vmatprep.subr.bf16.mxu0 %v6631
      %6767 = vmatpush1.bf16.msra.mxu0 %v6630
      %6768 = vmatprep.subr.bf16.mxu0 %v6627
      %6769 = vmatpush1.bf16.msra.mxu0 %v6626
      %6770 = vmatprep.subr.bf16.mxu0 %v6687
      %6771 = vmatpush2.bf16.msra.mxu0 %v6686
      %6772 = vmatprep.subr.bf16.mxu0 %v6683
      %6773 = vmatpush2.bf16.msra.mxu0 %v6682
      %6774 = vmatprep.subr.bf16.mxu0 %v6679
      %6775 = vmatpush2.bf16.msra.mxu0 %v6678
      %6776 = vmatprep.subr.bf16.mxu0 %v6675
      %6777 = vmatpush2.bf16.msra.mxu0 %v6674
      %6778 = vmatprep.subr.bf16.mxu0 %v6671
      %6779 = vmatpush2.bf16.msra.mxu0 %v6670
      %6780 = vmatprep.subr.bf16.mxu0 %v6667
      %6781 = vmatpush2.bf16.msra.mxu0 %v6666
      %6782 = vmatprep.subr.bf16.mxu0 %v6663
      %6783 = vmatpush2.bf16.msra.mxu0 %v6662
      %6784 = vmatprep.subr.bf16.mxu0 %v6659
      %6785 = vmatpush2.bf16.msra.mxu0 %v6658
      %6786 = vmatprep.mubr.bf16.mxu0 %v6368
      %6787 = vmatmul.mubr.bf16.gmra.mxu0 %v6367
      %v6788 = vpop.f32.mrf.mxu0
      %v6789 = vadd.f32 0.0, %v6788
      %v6790 = vpop.f32.mrf.mxu0
      %v6791 = vadd.f32 0.0, %v6790
      %v6792 = vpop.f32.mrf.mxu0
      %v6793 = vpop.f32.mrf.mxu0
      %6794 = vdwg.mxu0
      %6795 = vmatprep.subr.bf16.mxu0 %v6657
      %6796 = vmatpush1.bf16.msra.mxu0 %v6656
      %6797 = vmatprep.subr.bf16.mxu0 %v6653
      %6798 = vmatpush1.bf16.msra.mxu0 %v6652
      %6799 = vmatprep.subr.bf16.mxu0 %v6649
      %6800 = vmatpush1.bf16.msra.mxu0 %v6648
      %6801 = vmatprep.subr.bf16.mxu0 %v6645
      %6802 = vmatpush1.bf16.msra.mxu0 %v6644
      %6803 = vmatprep.subr.bf16.mxu0 %v6641
      %6804 = vmatpush1.bf16.msra.mxu0 %v6640
      %6805 = vmatprep.subr.bf16.mxu0 %v6637
      %6806 = vmatpush1.bf16.msra.mxu0 %v6636
      %6807 = vmatprep.subr.bf16.mxu0 %v6633
      %6808 = vmatpush1.bf16.msra.mxu0 %v6632
      %6809 = vmatprep.subr.bf16.mxu0 %v6629
      %6810 = vmatpush1.bf16.msra.mxu0 %v6628
      %6811 = vmatprep.subr.bf16.mxu0 %v6689
      %6812 = vmatpush2.bf16.msra.mxu0 %v6688
      %6813 = vmatprep.subr.bf16.mxu0 %v6685
      %6814 = vmatpush2.bf16.msra.mxu0 %v6684
      %6815 = vmatprep.subr.bf16.mxu0 %v6681
      %6816 = vmatpush2.bf16.msra.mxu0 %v6680
      %6817 = vmatprep.subr.bf16.mxu0 %v6677
      %6818 = vmatpush2.bf16.msra.mxu0 %v6676
      %6819 = vmatprep.subr.bf16.mxu0 %v6673
      %6820 = vmatpush2.bf16.msra.mxu0 %v6672
      %6821 = vmatprep.subr.bf16.mxu0 %v6669
      %6822 = vmatpush2.bf16.msra.mxu0 %v6668
      %6823 = vmatprep.subr.bf16.mxu0 %v6665
      %6824 = vmatpush2.bf16.msra.mxu0 %v6664
      %6825 = vmatprep.subr.bf16.mxu0 %v6661
      %6826 = vmatpush2.bf16.msra.mxu0 %v6660
      %6827 = vmatprep.mubr.bf16.mxu0 %v6368
      %6828 = vmatmul.mubr.bf16.gmra.mxu0 %v6367
      %v6829 = vpop.f32.mrf.mxu0
      %v6830 = vadd.f32 0.0, %v6829
      %v6831 = vpop.f32.mrf.mxu0
      %v6832 = vadd.f32 0.0, %v6831
      %v6833 = vpop.f32.mrf.mxu0
      %v6834 = vpop.f32.mrf.mxu0
      %6835 = vdwg.mxu0
      %v6836 = vadd.f32 %v6361, %v6789
      %v6837 = vadd.f32 %v6362, %v6791
      %v6838 = vadd.f32 %v6363, %v6830
      %v6839 = vadd.f32 %v6364, %v6832
      %v6840 = vld [vmem:[%s4] sm:$0xf]
      %v6842 = vlaneseq
      %v6843 = vshrl.u32 %v6842, 7
      %v6844 = vsub.s32 0, %v6843
      %v6845 = vrot.slane %v6840, %v6844
      %v6846 = vlaneseq
      %v6847 = vshrl.u32 %v6846, 7
      %v6848 = vsub.s32 1, %v6847
      %v6849 = vrot.slane %v6840, %v6848
      %v6850 = vlaneseq
      %v6851 = vshrl.u32 %v6850, 7
      %v6852 = vsub.s32 2, %v6851
      %v6853 = vrot.slane %v6840, %v6852
      %v6854 = vlaneseq
      %v6855 = vshrl.u32 %v6854, 7
      %v6856 = vsub.s32 3, %v6855
      %v6857 = vrot.slane %v6840, %v6856
      %v6862 = vadd.f32 %v6836, %v6845
      %v6863 = vadd.f32 %v6837, %v6849
      %v6864 = vadd.f32 %v6838, %v6853
      %v6865 = vadd.f32 %v6839, %v6857
      %v6866 = vmax.f32 %v6862, 0.0
      %v6867 = vmax.f32 %v6863, 0.0
      %v6868 = vmax.f32 %v6864, 0.0
      %v6869 = vmax.f32 %v6865, 0.0
      %v6870 = vpack.c.bf16 %v6866, %v6866
      %v6871 = vpack.c.bf16 %v6867, %v6867
      %v6872 = vpack.c.bf16 %v6868, %v6868
      %v6873 = vpack.c.bf16 %v6869, %v6869
      %v6874 = vld [vmem:[%s5] sm:$0xf]
      %v6875 = vld [vmem:[%s5 + $0x4] sm:$0xf]
      %v6876 = vld [vmem:[%s5 + $0x8] sm:$0xf]
      %v6877 = vld [vmem:[%s5 + $0xc] sm:$0xf]
      %v6878 = vld [vmem:[%s5 + $0x10] sm:$0xf]
      %v6879 = vld [vmem:[%s5 + $0x14] sm:$0xf]
      %v6880 = vld [vmem:[%s5 + $0x18] sm:$0xf]
      %v6881 = vld [vmem:[%s5 + $0x1c] sm:$0xf]
      %v6882 = vld [vmem:[%s5 + $0x20] sm:$0xf]
      %v6883 = vld [vmem:[%s5 + $0x24] sm:$0xf]
      %v6884 = vld [vmem:[%s5 + $0x28] sm:$0xf]
      %v6885 = vld [vmem:[%s5 + $0x2c] sm:$0xf]
      %v6886 = vld [vmem:[%s5 + $0x30] sm:$0xf]
      %v6887 = vld [vmem:[%s5 + $0x34] sm:$0xf]
      %v6888 = vld [vmem:[%s5 + $0x38] sm:$0xf]
      %v6889 = vld [vmem:[%s5 + $0x3c] sm:$0xf]
      %v6890 = vld [vmem:[%s5 + $0x40] sm:$0xf]
      %v6891 = vld [vmem:[%s5 + $0x44] sm:$0xf]
      %v6892 = vld [vmem:[%s5 + $0x48] sm:$0xf]
      %v6893 = vld [vmem:[%s5 + $0x4c] sm:$0xf]
      %v6894 = vld [vmem:[%s5 + $0x50] sm:$0xf]
      %v6895 = vld [vmem:[%s5 + $0x54] sm:$0xf]
      %v6896 = vld [vmem:[%s5 + $0x58] sm:$0xf]
      %v6897 = vld [vmem:[%s5 + $0x5c] sm:$0xf]
      %v6898 = vld [vmem:[%s5 + $0x60] sm:$0xf]
      %v6899 = vld [vmem:[%s5 + $0x64] sm:$0xf]
      %v6900 = vld [vmem:[%s5 + $0x68] sm:$0xf]
      %v6901 = vld [vmem:[%s5 + $0x6c] sm:$0xf]
      %v6902 = vld [vmem:[%s5 + $0x70] sm:$0xf]
      %v6903 = vld [vmem:[%s5 + $0x74] sm:$0xf]
      %v6904 = vld [vmem:[%s5 + $0x78] sm:$0xf]
      %v6905 = vld [vmem:[%s5 + $0x7c] sm:$0xf]
      %v6906 = vld [vmem:[%s5 + $0x80] sm:$0xf]
      %v6907 = vld [vmem:[%s5 + $0x84] sm:$0xf]
      %v6908 = vld [vmem:[%s5 + $0x88] sm:$0xf]
      %v6909 = vld [vmem:[%s5 + $0x8c] sm:$0xf]
      %v6910 = vld [vmem:[%s5 + $0x90] sm:$0xf]
      %v6911 = vld [vmem:[%s5 + $0x94] sm:$0xf]
      %v6912 = vld [vmem:[%s5 + $0x98] sm:$0xf]
      %v6913 = vld [vmem:[%s5 + $0x9c] sm:$0xf]
      %v6914 = vld [vmem:[%s5 + $0xa0] sm:$0xf]
      %v6915 = vld [vmem:[%s5 + $0xa4] sm:$0xf]
      %v6916 = vld [vmem:[%s5 + $0xa8] sm:$0xf]
      %v6917 = vld [vmem:[%s5 + $0xac] sm:$0xf]
      %v6918 = vld [vmem:[%s5 + $0xb0] sm:$0xf]
      %v6919 = vld [vmem:[%s5 + $0xb4] sm:$0xf]
      %v6920 = vld [vmem:[%s5 + $0xb8] sm:$0xf]
      %v6921 = vld [vmem:[%s5 + $0xbc] sm:$0xf]
      %v6922 = vld [vmem:[%s5 + $0xc0] sm:$0xf]
      %v6923 = vld [vmem:[%s5 + $0xc4] sm:$0xf]
      %v6924 = vld [vmem:[%s5 + $0xc8] sm:$0xf]
      %v6925 = vld [vmem:[%s5 + $0xcc] sm:$0xf]
      %v6926 = vld [vmem:[%s5 + $0xd0] sm:$0xf]
      %v6927 = vld [vmem:[%s5 + $0xd4] sm:$0xf]
      %v6928 = vld [vmem:[%s5 + $0xd8] sm:$0xf]
      %v6929 = vld [vmem:[%s5 + $0xdc] sm:$0xf]
      %v6930 = vld [vmem:[%s5 + $0xe0] sm:$0xf]
      %v6931 = vld [vmem:[%s5 + $0xe4] sm:$0xf]
      %v6932 = vld [vmem:[%s5 + $0xe8] sm:$0xf]
      %v6933 = vld [vmem:[%s5 + $0xec] sm:$0xf]
      %v6934 = vld [vmem:[%s5 + $0xf0] sm:$0xf]
      %v6935 = vld [vmem:[%s5 + $0xf4] sm:$0xf]
      %v6936 = vld [vmem:[%s5 + $0xf8] sm:$0xf]
      %v6937 = vld [vmem:[%s5 + $0xfc] sm:$0xf]
      %v6938 = vld [vmem:[%s6] sm:$0x1]
      %v6940 = vlaneseq
      %v6941 = vshrl.u32 %v6940, 7
      %v6942 = vsub.s32 0, %v6941
      %v6943 = vrot.slane %v6938, %v6942
      %v7009 = vunpack.c.l.b16 %v6874
      %v7010 = vunpack.c.l.b16 %v6875
      %v7011 = vunpack.c.l.b16 %v6876
      %v7012 = vunpack.c.l.b16 %v6877
      %v7013 = vunpack.c.l.b16 %v6878
      %v7014 = vunpack.c.l.b16 %v6879
      %v7015 = vunpack.c.l.b16 %v6880
      %v7016 = vunpack.c.l.b16 %v6881
      %v7017 = vunpack.c.l.b16 %v6882
      %v7018 = vunpack.c.l.b16 %v6883
      %v7019 = vunpack.c.l.b16 %v6884
      %v7020 = vunpack.c.l.b16 %v6885
      %v7021 = vunpack.c.l.b16 %v6886
      %v7022 = vunpack.c.l.b16 %v6887
      %v7023 = vunpack.c.l.b16 %v6888
      %v7024 = vunpack.c.l.b16 %v6889
      %v7025 = vunpack.c.l.b16 %v6890
      %v7026 = vunpack.c.l.b16 %v6891
      %v7027 = vunpack.c.l.b16 %v6892
      %v7028 = vunpack.c.l.b16 %v6893
      %v7029 = vunpack.c.l.b16 %v6894
      %v7030 = vunpack.c.l.b16 %v6895
      %v7031 = vunpack.c.l.b16 %v6896
      %v7032 = vunpack.c.l.b16 %v6897
      %v7033 = vunpack.c.l.b16 %v6898
      %v7034 = vunpack.c.l.b16 %v6899
      %v7035 = vunpack.c.l.b16 %v6900
      %v7036 = vunpack.c.l.b16 %v6901
      %v7037 = vunpack.c.l.b16 %v6902
      %v7038 = vunpack.c.l.b16 %v6903
      %v7039 = vunpack.c.l.b16 %v6904
      %v7040 = vunpack.c.l.b16 %v6905
      %v7041 = vunpack.c.l.b16 %v6906
      %v7042 = vunpack.c.l.b16 %v6907
      %v7043 = vunpack.c.l.b16 %v6908
      %v7044 = vunpack.c.l.b16 %v6909
      %v7045 = vunpack.c.l.b16 %v6910
      %v7046 = vunpack.c.l.b16 %v6911
      %v7047 = vunpack.c.l.b16 %v6912
      %v7048 = vunpack.c.l.b16 %v6913
      %v7049 = vunpack.c.l.b16 %v6914
      %v7050 = vunpack.c.l.b16 %v6915
      %v7051 = vunpack.c.l.b16 %v6916
      %v7052 = vunpack.c.l.b16 %v6917
      %v7053 = vunpack.c.l.b16 %v6918
      %v7054 = vunpack.c.l.b16 %v6919
      %v7055 = vunpack.c.l.b16 %v6920
      %v7056 = vunpack.c.l.b16 %v6921
      %v7057 = vunpack.c.l.b16 %v6922
      %v7058 = vunpack.c.l.b16 %v6923
      %v7059 = vunpack.c.l.b16 %v6924
      %v7060 = vunpack.c.l.b16 %v6925
      %v7061 = vunpack.c.l.b16 %v6926
      %v7062 = vunpack.c.l.b16 %v6927
      %v7063 = vunpack.c.l.b16 %v6928
      %v7064 = vunpack.c.l.b16 %v6929
      %v7065 = vunpack.c.l.b16 %v6930
      %v7066 = vunpack.c.l.b16 %v6931
      %v7067 = vunpack.c.l.b16 %v6932
      %v7068 = vunpack.c.l.b16 %v6933
      %v7069 = vunpack.c.l.b16 %v6934
      %v7070 = vunpack.c.l.b16 %v6935
      %v7071 = vunpack.c.l.b16 %v6936
      %v7072 = vunpack.c.l.b16 %v6937
      %v7073 = vpack.c.b16 %v7010, %v7009
      %v7074 = vpack.c.b16 %v7012, %v7011
      %v7075 = vpack.c.b16 %v7014, %v7013
      %v7076 = vpack.c.b16 %v7016, %v7015
      %v7077 = vpack.c.b16 %v7018, %v7017
      %v7078 = vpack.c.b16 %v7020, %v7019
      %v7079 = vpack.c.b16 %v7022, %v7021
      %v7080 = vpack.c.b16 %v7024, %v7023
      %v7081 = vpack.c.b16 %v7026, %v7025
      %v7082 = vpack.c.b16 %v7028, %v7027
      %v7083 = vpack.c.b16 %v7030, %v7029
      %v7084 = vpack.c.b16 %v7032, %v7031
      %v7085 = vpack.c.b16 %v7034, %v7033
      %v7086 = vpack.c.b16 %v7036, %v7035
      %v7087 = vpack.c.b16 %v7038, %v7037
      %v7088 = vpack.c.b16 %v7040, %v7039
      %v7089 = vpack.c.b16 %v7042, %v7041
      %v7090 = vpack.c.b16 %v7044, %v7043
      %v7091 = vpack.c.b16 %v7046, %v7045
      %v7092 = vpack.c.b16 %v7048, %v7047
      %v7093 = vpack.c.b16 %v7050, %v7049
      %v7094 = vpack.c.b16 %v7052, %v7051
      %v7095 = vpack.c.b16 %v7054, %v7053
      %v7096 = vpack.c.b16 %v7056, %v7055
      %v7097 = vpack.c.b16 %v7058, %v7057
      %v7098 = vpack.c.b16 %v7060, %v7059
      %v7099 = vpack.c.b16 %v7062, %v7061
      %v7100 = vpack.c.b16 %v7064, %v7063
      %v7101 = vpack.c.b16 %v7066, %v7065
      %v7102 = vpack.c.b16 %v7068, %v7067
      %v7103 = vpack.c.b16 %v7070, %v7069
      %v7104 = vpack.c.b16 %v7072, %v7071
      %7137 = vmatprep.subr.bf16.mxu0 0
      %7138 = vmatpush1.bf16.msra.mxu0 %v7080
      %7139 = vmatprep.subr.bf16.mxu0 0
      %7140 = vmatpush1.bf16.msra.mxu0 %v7079
      %7141 = vmatprep.subr.bf16.mxu0 0
      %7142 = vmatpush1.bf16.msra.mxu0 %v7078
      %7143 = vmatprep.subr.bf16.mxu0 0
      %7144 = vmatpush1.bf16.msra.mxu0 %v7077
      %7145 = vmatprep.subr.bf16.mxu0 0
      %7146 = vmatpush1.bf16.msra.mxu0 %v7076
      %7147 = vmatprep.subr.bf16.mxu0 0
      %7148 = vmatpush1.bf16.msra.mxu0 %v7075
      %7149 = vmatprep.subr.bf16.mxu0 0
      %7150 = vmatpush1.bf16.msra.mxu0 %v7074
      %7151 = vmatprep.subr.bf16.mxu0 0
      %7152 = vmatpush1.bf16.msra.mxu0 %v7073
      %7153 = vmatprep.subr.bf16.mxu0 0
      %7154 = vmatpush2.bf16.msra.mxu0 %v7088
      %7155 = vmatprep.subr.bf16.mxu0 0
      %7156 = vmatpush2.bf16.msra.mxu0 %v7087
      %7157 = vmatprep.subr.bf16.mxu0 0
      %7158 = vmatpush2.bf16.msra.mxu0 %v7086
      %7159 = vmatprep.subr.bf16.mxu0 0
      %7160 = vmatpush2.bf16.msra.mxu0 %v7085
      %7161 = vmatprep.subr.bf16.mxu0 0
      %7162 = vmatpush2.bf16.msra.mxu0 %v7084
      %7163 = vmatprep.subr.bf16.mxu0 0
      %7164 = vmatpush2.bf16.msra.mxu0 %v7083
      %7165 = vmatprep.subr.bf16.mxu0 0
      %7166 = vmatpush2.bf16.msra.mxu0 %v7082
      %7167 = vmatprep.subr.bf16.mxu0 0
      %7168 = vmatpush2.bf16.msra.mxu0 %v7081
      %7169 = vmatprep.mubr.bf16.mxu0 %v6871
      %7170 = vmatmul.mubr.bf16.gmra.mxu0 %v6870
      %v7171 = vpop.f32.mrf.mxu0
      %v7172 = vadd.f32 %v6943, %v7171
      %v7173 = vpop.f32.mrf.mxu0
      %v7174 = vpop.f32.mrf.mxu0
      %v7175 = vpop.f32.mrf.mxu0
      %7176 = vdwg.mxu0
      %7177 = vmatprep.subr.bf16.mxu0 0
      %7178 = vmatpush1.bf16.msra.mxu0 %v7096
      %7179 = vmatprep.subr.bf16.mxu0 0
      %7180 = vmatpush1.bf16.msra.mxu0 %v7095
      %7181 = vmatprep.subr.bf16.mxu0 0
      %7182 = vmatpush1.bf16.msra.mxu0 %v7094
      %7183 = vmatprep.subr.bf16.mxu0 0
      %7184 = vmatpush1.bf16.msra.mxu0 %v7093
      %7185 = vmatprep.subr.bf16.mxu0 0
      %7186 = vmatpush1.bf16.msra.mxu0 %v7092
      %7187 = vmatprep.subr.bf16.mxu0 0
      %7188 = vmatpush1.bf16.msra.mxu0 %v7091
      %7189 = vmatprep.subr.bf16.mxu0 0
      %7190 = vmatpush1.bf16.msra.mxu0 %v7090
      %7191 = vmatprep.subr.bf16.mxu0 0
      %7192 = vmatpush1.bf16.msra.mxu0 %v7089
      %7193 = vmatprep.subr.bf16.mxu0 0
      %7194 = vmatpush2.bf16.msra.mxu0 %v7104
      %7195 = vmatprep.subr.bf16.mxu0 0
      %7196 = vmatpush2.bf16.msra.mxu0 %v7103
      %7197 = vmatprep.subr.bf16.mxu0 0
      %7198 = vmatpush2.bf16.msra.mxu0 %v7102
      %7199 = vmatprep.subr.bf16.mxu0 0
      %7200 = vmatpush2.bf16.msra.mxu0 %v7101
      %7201 = vmatprep.subr.bf16.mxu0 0
      %7202 = vmatpush2.bf16.msra.mxu0 %v7100
      %7203 = vmatprep.subr.bf16.mxu0 0
      %7204 = vmatpush2.bf16.msra.mxu0 %v7099
      %7205 = vmatprep.subr.bf16.mxu0 0
      %7206 = vmatpush2.bf16.msra.mxu0 %v7098
      %7207 = vmatprep.subr.bf16.mxu0 0
      %7208 = vmatpush2.bf16.msra.mxu0 %v7097
      %7209 = vmatprep.mubr.bf16.mxu0 %v6873
      %7210 = vmatmul.mubr.bf16.gmra.mxu0 %v6872
      %v7211 = vpop.f32.mrf.mxu0
      %v7212 = vadd.f32 %v7172, %v7211
      %v7213 = vpop.f32.mrf.mxu0
      %v7214 = vpop.f32.mrf.mxu0
      %v7215 = vpop.f32.mrf.mxu0
      %7216 = vdwg.mxu0
      %7217 = vmax.xlane.f32.xlu0 %v7212
      %v7218 = vpop.xlane.xlu0 %7217
      %v7219 = vsub.f32 %v7212, %v7218
      %v7220 = vmul.f32 %v7219, 1.442695
      %v7221 = vpow.pop %v7220
      %7222 = vadd.xlane.f32.xlu0 %v7221
      %v7223 = vpop.xlane.xlu0 %7222
      %v7224 = vlog2.pop %v7223
      %v7225 = vmul.f32 %v7224, 0.6931472
      %v7226 = vadd.f32 %v7218, %v7225
      %v7227 = vsub.f32 %v7212, %v7226
      %7228 = vst [vmem:[%s281] sm:$0xff] %v7227
      %p7229 = scmp.lt.s32.totalorder %s18, 1
      %s7230 = scalar_select %p7229, %s18, 1
      %s7231 = smul.addr %s7230, 8
      %s7232 = scalar_lea.vmem %s7, %s7231
      // Predicated region
      $region49: #{simple_cnn_forward.1} parent=47 // pred_check
        %p7233 = pneg %p188
      $region50: #{simple_cnn_forward.1} parent=47 // pred_check_branch
        %7235 = sbr.rel (%p7233) target = $region52
      $region51: #{simple_cnn_forward.1} parent=47 // pred_region
        _
      $region52: #{simple_cnn_forward.1} parent=47 // pred_fallthru
        _
    $region48: #{simple_cnn_forward.1} parent=5 // pred_fallthru
      _
    %p7236 = scmp.le.s32.totalorder 2, %s13
    // Predicated region
    $region53: #{simple_cnn_forward.1} parent=5 // pred_check
      %p7237 = pneg %p7236
    $region54: #{simple_cnn_forward.1} parent=5 // pred_check_branch
      %7239 = sbr.rel (%p7237) target = $region56
    $region55: #{simple_cnn_forward.1} parent=5 // pred_region
      %s7240 = ssub.s32 %s13, 2
      // Predicated region
      $region57: #{simple_cnn_forward.1} parent=55 // pred_check
        %p7241 = pneg %p194
      $region58: #{simple_cnn_forward.1} parent=55 // pred_check_branch
        %7243 = sbr.rel (%p7241) target = $region60
      $region59: #{simple_cnn_forward.1} parent=55 // pred_region
        %p7244 = scmp.lt.s32.totalorder %s19, 1
        %s7245 = scalar_select %p7244, %s19, 1
        %s7246 = smul.addr %s7245, 8
        %s7247 = scalar_lea.vmem %s7, %s7246
      $region60: #{simple_cnn_forward.1} parent=55 // pred_fallthru
        _
    $region56: #{simple_cnn_forward.1} parent=5 // pred_fallthru
      _
  $region6: #{simple_cnn_forward.1} parent=0 // loop_footer
    %s17 = sadd.s32 1, %s13
  $region7: #{simple_cnn_forward.1} parent=0 // loop_footer_branch
    %12 = sbr.rel target = $region3
  $region8: #{simple_cnn_forward.1} parent=0 // loop_exit
    _

</llo_original>
